<compile_context>
chip_gen: v6e
topology: v6e:2x2x1
jax: 0.10.0
libtpu: 0.0.40
codegen_flags: <defaults>
</compile_context>

<pallas_src>
import functools

import jax
import jax.numpy as jnp
from jax.experimental import pallas as pl
from jax.experimental.pallas import tpu as pltpu

GOP = 4


# ----------------------------------------------------------------------------
# Deformable-conv (k=1) sampling, pooled:  build the mean (over output
# positions) bilinear sampling weight vector per image.  Pure elementwise /
# compare math in XLA glue (no gather); the actual sampling becomes a tiny
# MXU matmul inside kernel 1.
# ----------------------------------------------------------------------------
def _pooled_sample_weights(offset, hh, ww):
    """offset: (N, 2, hh, ww) with [dy, dx] like torchvision. Returns (N, hh*ww)."""
    n = offset.shape[0]
    hw = hh * ww
    dy = offset[:, 0]
    dx = offset[:, 1]
    gy = jnp.arange(hh, dtype=jnp.float32)[None, :, None] + dy          # (N, hh, ww)
    gx = jnp.arange(ww, dtype=jnp.float32)[None, None, :] + dx
    y0 = jnp.floor(gy)
    x0 = jnp.floor(gx)
    wy1 = gy - y0
    wy0 = 1.0 - wy1
    wx1 = gx - x0
    wx0 = 1.0 - wx1
    lane = jnp.arange(hw, dtype=jnp.int32)
    s = jnp.zeros((n, hh, ww, hw), jnp.float32)
    for yy, xx, wgt in ((y0, x0, wy0 * wx0), (y0, x0 + 1.0, wy0 * wx1),
                        (y0 + 1.0, x0, wy1 * wx0), (y0 + 1.0, x0 + 1.0, wy1 * wx1)):
        valid = ((yy >= 0) & (yy <= hh - 1) & (xx >= 0) & (xx <= ww - 1)).astype(jnp.float32)
        yi = jnp.clip(yy.astype(jnp.int32), 0, hh - 1)
        xi = jnp.clip(xx.astype(jnp.int32), 0, ww - 1)
        idx = yi * ww + xi                                              # (N, hh, ww)
        onehot = (idx[..., None] == lane).astype(jnp.float32)           # (N, hh, ww, hw)
        s = s + onehot * (wgt * valid)[..., None]
    # mean over output positions == adaptive_avg_pool2d(1) commuted through the
    # (linear) bilinear sampling.
    return s.reshape(n, hw, hw).mean(axis=1)                            # (N, hw)


# ----------------------------------------------------------------------------
# Kernel 1: per-GOP  backbone-patchify + embedding + deform-conv + spatial pool.
# ----------------------------------------------------------------------------
def _gop_kernel(patches_ref, svec_ref, wbb_ref, wemb_ref, bemb_ref,
                wdc_ref, bdc_ref, o_ref, *, gop):
    f32 = jnp.float32
    bf16 = jnp.bfloat16

    # backbone stand-in: patchify conv + ReLU      (hw, C*64) @ (C*64, in_feat)
    feat = jnp.dot(patches_ref[...], wbb_ref[...], preferred_element_type=f32)
    feat = jnp.maximum(feat, 0.0)
    # trans_imgs_embedding: 1x1 conv               (hw, in_feat) @ (in_feat, dim)
    ifeat = jnp.dot(feat.astype(bf16), wemb_ref[...], preferred_element_type=f32)
    ifeat = ifeat + bemb_ref[...]                                       # (hw, dim) f32

    # I-frame: adaptive_avg_pool2d(1)
    pooled_i = jnp.mean(ifeat, axis=0, keepdims=True)                   # (1, dim)

    # P-frames: pooled bilinear sample (deform k=1) then 1x1 conv + bias
    sampled = jnp.dot(svec_ref[...], ifeat.astype(bf16),
                      preferred_element_type=f32)                       # (gop-1, dim)
    pooled_p = jnp.dot(sampled.astype(bf16), wdc_ref[...],
                       preferred_element_type=f32) + bdc_ref[...]       # (gop-1, dim)

    o_ref[0:1, :] = pooled_i.astype(o_ref.dtype)
    o_ref[pl.ds(1, gop - 1), :] = pooled_p.astype(o_ref.dtype)


# ----------------------------------------------------------------------------
# Kernel 2: per-batch  temporal convs + LeftRight extractor + MLP head,
#            all activations resident in VMEM, convs as shifted-slice dots.
# ----------------------------------------------------------------------------
def _seq_kernel(x_ref, wt_ref, bt_ref, wl_ref, wr_ref,
                w1_ref, b1_ref, w2_ref, b2_ref, lng_ref, lnb_ref,
                wc_ref, bc_ref, o_ref, xpad_ref, lpad_ref, rpad_ref,
                *, T, dim, k):
    f32 = jnp.float32
    bf16 = jnp.bfloat16

    xt = x_ref[...]                                                     # (T, dim) f32

    # ---- temporal_embedding: 4 x (Conv1d k=3 pad=1 -> folded BN -> ReLU) ----
    xpad_ref[0:1, :] = jnp.zeros((1, dim), f32)
    xpad_ref[T + 1:T + 2, :] = jnp.zeros((1, dim), f32)
    for l in range(4):
        xpad_ref[pl.ds(1, T), :] = xt
        acc = jnp.zeros((T, dim), f32)
        for m in range(3):
            acc += jnp.dot(xpad_ref[pl.ds(m, T), :].astype(bf16), wt_ref[l, m],
                           preferred_element_type=f32)
        xt = jnp.maximum(acc + bt_ref[l], 0.0)                          # (T, dim)

    # ---- LeftRightFeatureExtractor (k=8, stride=1, replicate padding) ----
    lpad_ref[pl.ds(0, k), :] = jnp.broadcast_to(xt[0:1], (k, dim))
    lpad_ref[pl.ds(k, T - 1), :] = xt[0:T - 1]
    rpad_ref[pl.ds(0, T - 1), :] = xt[1:T]
    rpad_ref[pl.ds(T - 1, k), :] = jnp.broadcast_to(xt[T - 1:T], (k, dim))

    left = jnp.zeros((T, dim), f32)
    right = jnp.zeros((T, dim), f32)
    for m in range(k):
        left += jnp.dot(lpad_ref[pl.ds(m, T), :].astype(bf16), wl_ref[m],
                        preferred_element_type=f32)
        right += jnp.dot(rpad_ref[pl.ds(m, T), :].astype(bf16), wr_ref[m],
                         preferred_element_type=f32)

    # ---- output MLP: Linear(2d,d) -> ReLU -> Linear(d,2d) -> Dropout(id) -> LN ----
    # concat([left, right]) @ w1  ==  left @ w1[:d] + right @ w1[d:]
    h = jnp.dot(left.astype(bf16), w1_ref[pl.ds(0, dim), :], preferred_element_type=f32)
    h += jnp.dot(right.astype(bf16), w1_ref[pl.ds(dim, dim), :], preferred_element_type=f32)
    h = jnp.maximum(h + b1_ref[...], 0.0)                               # (T, dim)
    y = jnp.dot(h.astype(bf16), w2_ref[...], preferred_element_type=f32) + b2_ref[...]
    mu = jnp.mean(y, axis=-1, keepdims=True)
    var = jnp.mean((y - mu) ** 2, axis=-1, keepdims=True)
    yn = (y - mu) * jax.lax.rsqrt(var + 1e-5)
    yn = yn * lng_ref[...] + lnb_ref[...]                               # (T, 2*dim)

    # ---- classifier Linear(2d, 1) + sigmoid ----
    logit = jnp.sum(yn * wc_ref[...], axis=-1, keepdims=True) + bc_ref[...]   # (T, 1)
    o_ref[...] = jax.nn.sigmoid(logit)


# ----------------------------------------------------------------------------
# Deterministic parameter init (shapes implied by the module, scaled down:
# in_feat_dim=64, dim=32 instead of 512).  BN (eval) is folded into conv w/b.
# Matmul weights stored bf16, biases / LN params f32.
# ----------------------------------------------------------------------------
def init_params(key, in_feat_dim=64, dim=32, k=8):
    keys = jax.random.split(key, 64)
    it = iter(keys)

    def nrm(shape, scale=0.05):
        return (scale * jax.random.normal(next(it), shape)).astype(jnp.float32)

    p = {}
    # backbone stand-in: 8x8-stride patchify conv, 3 -> in_feat_dim
    p["w_backbone"] = nrm((3 * 8 * 8, in_feat_dim)).astype(jnp.bfloat16)
    # trans_imgs_embedding: Conv2d(in_feat_dim, dim, 1)
    p["w_emb"] = nrm((in_feat_dim, dim)).astype(jnp.bfloat16)
    p["b_emb"] = nrm((dim,)).reshape(1, dim)
    # de_conv1: DeformConv2d(dim, dim, 1) -> 1x1 conv after deformable sampling
    p["w_dc"] = nrm((dim, dim)).astype(jnp.bfloat16)
    p["b_dc"] = nrm((dim,)).reshape(1, dim)
    # temporal_embedding: 4 x [Conv1d(dim,dim,3,pad=1) + BN1d(eval, folded) + ReLU]
    wt_list, bt_list = [], []
    for _ in range(4):
        wconv = nrm((dim, dim, 3), 0.1)                     # (out, in, k) PyTorch layout
        bconv = nrm((dim,))
        gamma = 1.0 + nrm((dim,), 0.1)
        beta = nrm((dim,), 0.1)
        rmean = nrm((dim,), 0.1)
        rvar = 1.0 + jnp.abs(nrm((dim,), 0.1))
        s = gamma / jnp.sqrt(rvar + 1e-5)
        wf = wconv * s[:, None, None]                       # fold BN scale into weight
        wt_list.append(jnp.stack([wf[:, :, m].T for m in range(3)], axis=0))   # (3, in, out)
        bt_list.append((bconv - rmean) * s + beta)
    p["w_temporal"] = jnp.stack(wt_list, axis=0).astype(jnp.bfloat16)   # (4, 3, dim, dim)
    p["b_temporal"] = jnp.stack(bt_list, axis=0).reshape(4, 1, dim)
    # LeftRightFeatureExtractor: two Conv1d(dim, dim, k=8, bias=False)
    wl = nrm((dim, dim, k), 0.05)
    wr = nrm((dim, dim, k), 0.05)
    p["w_left"] = jnp.stack([wl[:, :, m].T for m in range(k)], axis=0).astype(jnp.bfloat16)
    p["w_right"] = jnp.stack([wr[:, :, m].T for m in range(k)], axis=0).astype(jnp.bfloat16)
    # output: Linear(2d, d) -> ReLU -> Linear(d, 2d) -> Dropout -> LayerNorm(2d)
    p["w_out1"] = nrm((2 * dim, dim)).astype(jnp.bfloat16)
    p["b_out1"] = nrm((dim,)).reshape(1, dim)
    p["w_out2"] = nrm((dim, 2 * dim)).astype(jnp.bfloat16)
    p["b_out2"] = nrm((2 * dim,)).reshape(1, 2 * dim)
    p["ln_g"] = (1.0 + nrm((2 * dim,), 0.1)).reshape(1, 2 * dim)
    p["ln_b"] = nrm((2 * dim,), 0.1).reshape(1, 2 * dim)
    # classifier: Linear(2d, 1)
    p["w_cls_row"] = nrm((1, 2 * dim))
    p["b_cls"] = nrm((1,)).reshape(1, 1)
    return p


# ----------------------------------------------------------------------------
# Forward pass (eval).  Mirrors E2ECompressedGEBDModel.forward.
# imgs: (B, T, 3, H, W), mv: (B, T, 2, H, W) (PyTorch NCHW per frame).
# frame_mask only matters in the (untranslated) training branch.
# ----------------------------------------------------------------------------
def forward(params, imgs, mv, frame_mask=None):
    B, T, C, H, W = imgs.shape
    num_gop = T // GOP
    G = B * num_gop
    hh, ww = H // 8, W // 8
    hw = hh * ww
    in_feat = params["w_backbone"].shape[1]
    dim = params["w_emb"].shape[1]
    k = params["w_left"].shape[0]

    # --- I-frame patchify im2col (layout only, feeds the backbone stand-in) ---
    i_imgs = imgs[:, ::GOP]                                          # (B, n, 3, H, W)
    x = i_imgs.reshape(G, C, hh, 8, ww, 8)
    patches = x.transpose(0, 2, 4, 1, 3, 5).reshape(G, hw, C * 64).astype(jnp.bfloat16)

    # --- motion vectors -> pooled bilinear sampling weight vectors (no gather) ---
    p_motions = mv.reshape(G, GOP, 2, H, W)[:, 1:]                   # (G, GOP-1, 2, H, W)
    pm = p_motions.reshape(G * (GOP - 1), 2, H, W)
    pm = jax.image.resize(pm, (pm.shape[0], 2, hh, ww), method="linear",
                          antialias=False) * (ww / W)
    svec = _pooled_sample_weights(pm, hh, ww)                        # (G*(GOP-1), hw)
    svec = svec.reshape(G, GOP - 1, hw).astype(jnp.bfloat16)

    # --- kernel 1: backbone + embedding + deform conv + spatial pooling -------
    pooled = pl.pallas_call(
        functools.partial(_gop_kernel, gop=GOP),
        out_shape=jax.ShapeDtypeStruct((G, GOP, dim), jnp.float32),
        grid=(G,),
        in_specs=[
            pl.BlockSpec((None, hw, C * 64), lambda g: (g, 0, 0)),
            pl.BlockSpec((None, GOP - 1, hw), lambda g: (g, 0, 0)),
            pl.BlockSpec((C * 64, in_feat), lambda g: (0, 0)),
            pl.BlockSpec((in_feat, dim), lambda g: (0, 0)),
            pl.BlockSpec((1, dim), lambda g: (0, 0)),
            pl.BlockSpec((dim, dim), lambda g: (0, 0)),
            pl.BlockSpec((1, dim), lambda g: (0, 0)),
        ],
        out_specs=pl.BlockSpec((None, GOP, dim), lambda g: (g, 0, 0)),
        compiler_params=pltpu.CompilerParams(dimension_semantics=("parallel",)),
    )(patches, svec, params["w_backbone"], params["w_emb"], params["b_emb"],
      params["w_dc"], params["b_dc"])

    xseq = pooled.reshape(B, T, dim)                                 # (B, T, dim)

    # --- kernel 2: temporal convs + LeftRight extractor + head (VMEM-resident) ---
    scores = pl.pallas_call(
        functools.partial(_seq_kernel, T=T, dim=dim, k=k),
        out_shape=jax.ShapeDtypeStruct((B, T, 1), jnp.float32),
        grid=(B,),
        in_specs=[
            pl.BlockSpec((None, T, dim), lambda b: (b, 0, 0)),
            pl.BlockSpec((4, 3, dim, dim), lambda b: (0, 0, 0, 0)),
            pl.BlockSpec((4, 1, dim), lambda b: (0, 0, 0)),
            pl.BlockSpec((k, dim, dim), lambda b: (0, 0, 0)),
            pl.BlockSpec((k, dim, dim), lambda b: (0, 0, 0)),
            pl.BlockSpec((2 * dim, dim), lambda b: (0, 0)),
            pl.BlockSpec((1, dim), lambda b: (0, 0)),
            pl.BlockSpec((dim, 2 * dim), lambda b: (0, 0)),
            pl.BlockSpec((1, 2 * dim), lambda b: (0, 0)),
            pl.BlockSpec((1, 2 * dim), lambda b: (0, 0)),
            pl.BlockSpec((1, 2 * dim), lambda b: (0, 0)),
            pl.BlockSpec((1, 2 * dim), lambda b: (0, 0)),
            pl.BlockSpec((1, 1), lambda b: (0, 0)),
        ],
        out_specs=pl.BlockSpec((None, T, 1), lambda b: (b, 0, 0)),
        scratch_shapes=[
            pltpu.VMEM((T + 2, dim), jnp.float32),       # zero-padded temporal buffer
            pltpu.VMEM((T + k - 1, dim), jnp.float32),   # replicate-padded (left)
            pltpu.VMEM((T + k - 1, dim), jnp.float32),   # replicate-padded (right)
        ],
        compiler_params=pltpu.CompilerParams(dimension_semantics=("parallel",)),
    )(xseq, params["w_temporal"], params["b_temporal"],
      params["w_left"], params["w_right"],
      params["w_out1"], params["b_out1"], params["w_out2"], params["b_out2"],
      params["ln_g"], params["ln_b"], params["w_cls_row"], params["b_cls"])

    return scores[:, :, 0]                                           # sigmoid(logits)[:, :, 0]


if __name__ == "__main__":
    key = jax.random.PRNGKey(0)
    k_imgs, k_mv, k_param = jax.random.split(key, 3)
    B, T, H, W = 2, 8, 32, 32
    imgs = jax.random.normal(k_imgs, (B, T, 3, H, W), jnp.float32)
    mv = 2.0 * jax.random.normal(k_mv, (B, T, 2, H, W), jnp.float32)
    frame_mask = jnp.ones((B, T), jnp.int32)
    params = init_params(k_param)

    fwd = jax.jit(forward)
    scores = fwd(params, imgs, mv, frame_mask)
    scores = jax.block_until_ready(scores)
    assert scores.shape == (B, T)
    assert bool(jnp.all(jnp.isfinite(scores)))
    assert bool(jnp.all((scores >= 0.0) & (scores <= 1.0)))
    print("KERNEL_OK")
</pallas_src>

<mosaic_0001>
module attributes {stable_mosaic.version = 11 : i64} {
  func.func @_seq_kernel(%arg0: i32, %arg1: memref<1x8x32xf32, #tpu.memory_space<vmem>>, %arg2: memref<4x3x32x32xbf16, #tpu.memory_space<vmem>>, %arg3: memref<4x1x32xf32, #tpu.memory_space<vmem>>, %arg4: memref<8x32x32xbf16, #tpu.memory_space<vmem>>, %arg5: memref<8x32x32xbf16, #tpu.memory_space<vmem>>, %arg6: memref<64x32xbf16, #tpu.memory_space<vmem>>, %arg7: memref<1x32xf32, #tpu.memory_space<vmem>>, %arg8: memref<32x64xbf16, #tpu.memory_space<vmem>>, %arg9: memref<1x64xf32, #tpu.memory_space<vmem>>, %arg10: memref<1x64xf32, #tpu.memory_space<vmem>>, %arg11: memref<1x64xf32, #tpu.memory_space<vmem>>, %arg12: memref<1x64xf32, #tpu.memory_space<vmem>>, %arg13: memref<1x1xf32, #tpu.memory_space<vmem>>, %arg14: memref<1x8x1xf32, #tpu.memory_space<vmem>>, %arg15: memref<10x32xf32, #tpu.memory_space<vmem>>, %arg16: memref<15x32xf32, #tpu.memory_space<vmem>>, %arg17: memref<15x32xf32, #tpu.memory_space<vmem>>) attributes {dimension_semantics = [#tpu.dimension_semantics<parallel>], iteration_bounds = array<i64: 2>, scalar_prefetch = 0 : i64, scratch_operands = 3 : i64, tpu.core_type = #tpu.core_type<tc>, window_params = [{transform_indices = @transform_0, window_bounds = array<i64: 1, 8, 32>}, {pipeline_mode = #tpu.pipeline_mode<synchronous>, transform_indices = @transform_1, window_bounds = array<i64: 4, 3, 32, 32>}, {pipeline_mode = #tpu.pipeline_mode<synchronous>, transform_indices = @transform_2, window_bounds = array<i64: 4, 1, 32>}, {pipeline_mode = #tpu.pipeline_mode<synchronous>, transform_indices = @transform_3, window_bounds = array<i64: 8, 32, 32>}, {pipeline_mode = #tpu.pipeline_mode<synchronous>, transform_indices = @transform_4, window_bounds = array<i64: 8, 32, 32>}, {pipeline_mode = #tpu.pipeline_mode<synchronous>, transform_indices = @transform_5, window_bounds = array<i64: 64, 32>}, {pipeline_mode = #tpu.pipeline_mode<synchronous>, transform_indices = @transform_6, window_bounds = array<i64: 1, 32>}, {pipeline_mode = #tpu.pipeline_mode<synchronous>, transform_indices = @transform_7, window_bounds = array<i64: 32, 64>}, {pipeline_mode = #tpu.pipeline_mode<synchronous>, transform_indices = @transform_8, window_bounds = array<i64: 1, 64>}, {pipeline_mode = #tpu.pipeline_mode<synchronous>, transform_indices = @transform_9, window_bounds = array<i64: 1, 64>}, {pipeline_mode = #tpu.pipeline_mode<synchronous>, transform_indices = @transform_10, window_bounds = array<i64: 1, 64>}, {pipeline_mode = #tpu.pipeline_mode<synchronous>, transform_indices = @transform_11, window_bounds = array<i64: 1, 64>}, {pipeline_mode = #tpu.pipeline_mode<synchronous>, transform_indices = @transform_12, window_bounds = array<i64: 1, 1>}, {transform_indices = @transform_13, window_bounds = array<i64: 1, 8, 1>}]} {
    %c0 = arith.constant 0 : index
    %c0_0 = arith.constant 0 : index
    %c0_1 = arith.constant 0 : index
    %0 = vector.load %arg1[%c0, %c0_0, %c0_1] : memref<1x8x32xf32, #tpu.memory_space<vmem>>, vector<1x8x32xf32>
    %1 = vector.shape_cast %0 : vector<1x8x32xf32> to vector<8x32xf32>
    %cst = arith.constant 0.000000e+00 : f32
    %2 = vector.broadcast %cst : f32 to vector<1x32xf32>
    %c0_2 = arith.constant 0 : index
    %c0_3 = arith.constant 0 : index
    %3 = vector.load %arg15[%c0_2, %c0_3] : memref<10x32xf32, #tpu.memory_space<vmem>>, vector<1x32xf32>
    tpu.vector_store %arg15[%c0_2, %c0_3], %2 {strides = array<i32>} : memref<10x32xf32, #tpu.memory_space<vmem>>, vector<1x32xf32>,
    %cst_4 = arith.constant 0.000000e+00 : f32
    %4 = vector.broadcast %cst_4 : f32 to vector<1x32xf32>
    %c9 = arith.constant 9 : index
    %c0_5 = arith.constant 0 : index
    %5 = vector.load %arg15[%c9, %c0_5] : memref<10x32xf32, #tpu.memory_space<vmem>>, vector<1x32xf32>
    tpu.vector_store %arg15[%c9, %c0_5], %4 {strides = array<i32>} : memref<10x32xf32, #tpu.memory_space<vmem>>, vector<1x32xf32>,
    %c1 = arith.constant 1 : index
    %c0_6 = arith.constant 0 : index
    %6 = vector.load %arg15[%c1, %c0_6] : memref<10x32xf32, #tpu.memory_space<vmem>>, vector<8x32xf32>
    tpu.vector_store %arg15[%c1, %c0_6], %1 {strides = array<i32>} : memref<10x32xf32, #tpu.memory_space<vmem>>, vector<8x32xf32>,
    %cst_7 = arith.constant 0.000000e+00 : f32
    %7 = vector.broadcast %cst_7 : f32 to vector<8x32xf32>
    %c0_8 = arith.constant 0 : index
    %c0_9 = arith.constant 0 : index
    %8 = vector.load %arg15[%c0_8, %c0_9] : memref<10x32xf32, #tpu.memory_space<vmem>>, vector<8x32xf32>
    %9 = arith.truncf %8 : vector<8x32xf32> to vector<8x32xbf16>
    %c0_10 = arith.constant 0 : index
    %c0_11 = arith.constant 0 : index
    %c0_12 = arith.constant 0 : index
    %c0_13 = arith.constant 0 : index
    %10 = vector.load %arg2[%c0_10, %c0_11, %c0_12, %c0_13] : memref<4x3x32x32xbf16, #tpu.memory_space<vmem>>, vector<1x1x32x32xbf16>
    %11 = vector.shape_cast %10 : vector<1x1x32x32xbf16> to vector<32x32xbf16>
    %cst_14 = arith.constant dense<0.000000e+00> : vector<8x32xf32>
    %12 = tpu.matmul %9, %11, %cst_14 {dimension_numbers = #tpu.dot_dimension_numbers<[1], [0], [0], [1], [0, 0, 1, 1], [], []>} : vector<8x32xbf16>, vector<32x32xbf16>, vector<8x32xf32> -> vector<8x32xf32>
    %13 = arith.addf %7, %12 : vector<8x32xf32>
    %c1_15 = arith.constant 1 : index
    %c0_16 = arith.constant 0 : index
    %14 = vector.load %arg15[%c1_15, %c0_16] : memref<10x32xf32, #tpu.memory_space<vmem>>, vector<8x32xf32>
    %15 = arith.truncf %14 : vector<8x32xf32> to vector<8x32xbf16>
    %c0_17 = arith.constant 0 : index
    %c1_18 = arith.constant 1 : index
    %c0_19 = arith.constant 0 : index
    %c0_20 = arith.constant 0 : index
    %16 = vector.load %arg2[%c0_17, %c1_18, %c0_19, %c0_20] : memref<4x3x32x32xbf16, #tpu.memory_space<vmem>>, vector<1x1x32x32xbf16>
    %17 = vector.shape_cast %16 : vector<1x1x32x32xbf16> to vector<32x32xbf16>
    %cst_21 = arith.constant dense<0.000000e+00> : vector<8x32xf32>
    %18 = tpu.matmul %15, %17, %cst_21 {dimension_numbers = #tpu.dot_dimension_numbers<[1], [0], [0], [1], [0, 0, 1, 1], [], []>} : vector<8x32xbf16>, vector<32x32xbf16>, vector<8x32xf32> -> vector<8x32xf32>
    %19 = arith.addf %13, %18 : vector<8x32xf32>
    %c2 = arith.constant 2 : index
    %c0_22 = arith.constant 0 : index
    %20 = vector.load %arg15[%c2, %c0_22] : memref<10x32xf32, #tpu.memory_space<vmem>>, vector<8x32xf32>
    %21 = arith.truncf %20 : vector<8x32xf32> to vector<8x32xbf16>
    %c0_23 = arith.constant 0 : index
    %c2_24 = arith.constant 2 : index
    %c0_25 = arith.constant 0 : index
    %c0_26 = arith.constant 0 : index
    %22 = vector.load %arg2[%c0_23, %c2_24, %c0_25, %c0_26] : memref<4x3x32x32xbf16, #tpu.memory_space<vmem>>, vector<1x1x32x32xbf16>
    %23 = vector.shape_cast %22 : vector<1x1x32x32xbf16> to vector<32x32xbf16>
    %cst_27 = arith.constant dense<0.000000e+00> : vector<8x32xf32>
    %24 = tpu.matmul %21, %23, %cst_27 {dimension_numbers = #tpu.dot_dimension_numbers<[1], [0], [0], [1], [0, 0, 1, 1], [], []>} : vector<8x32xbf16>, vector<32x32xbf16>, vector<8x32xf32> -> vector<8x32xf32>
    %25 = arith.addf %19, %24 : vector<8x32xf32>
    %c0_28 = arith.constant 0 : index
    %c0_29 = arith.constant 0 : index
    %c0_30 = arith.constant 0 : index
    %26 = vector.load %arg3[%c0_28, %c0_29, %c0_30] : memref<4x1x32xf32, #tpu.memory_space<vmem>>, vector<1x1x32xf32>
    %27 = vector.shape_cast %26 : vector<1x1x32xf32> to vector<1x32xf32>
    %28 = vector.broadcast %27 : vector<1x32xf32> to vector<8x32xf32>
    %29 = arith.addf %25, %28 : vector<8x32xf32>
    %cst_31 = arith.constant 0.000000e+00 : f32
    %30 = vector.broadcast %cst_31 : f32 to vector<8x32xf32>
    %31 = arith.maximumf %29, %30 : vector<8x32xf32>
    %c1_32 = arith.constant 1 : index
    %c0_33 = arith.constant 0 : index
    %32 = vector.load %arg15[%c1_32, %c0_33] : memref<10x32xf32, #tpu.memory_space<vmem>>, vector<8x32xf32>
    tpu.vector_store %arg15[%c1_32, %c0_33], %31 {strides = array<i32>} : memref<10x32xf32, #tpu.memory_space<vmem>>, vector<8x32xf32>,
    %cst_34 = arith.constant 0.000000e+00 : f32
    %33 = vector.broadcast %cst_34 : f32 to vector<8x32xf32>
    %c0_35 = arith.constant 0 : index
    %c0_36 = arith.constant 0 : index
    %34 = vector.load %arg15[%c0_35, %c0_36] : memref<10x32xf32, #tpu.memory_space<vmem>>, vector<8x32xf32>
    %35 = arith.truncf %34 : vector<8x32xf32> to vector<8x32xbf16>
    %c1_37 = arith.constant 1 : index
    %c0_38 = arith.constant 0 : index
    %c0_39 = arith.constant 0 : index
    %c0_40 = arith.constant 0 : index
    %36 = vector.load %arg2[%c1_37, %c0_38, %c0_39, %c0_40] : memref<4x3x32x32xbf16, #tpu.memory_space<vmem>>, vector<1x1x32x32xbf16>
    %37 = vector.shape_cast %36 : vector<1x1x32x32xbf16> to vector<32x32xbf16>
    %cst_41 = arith.constant dense<0.000000e+00> : vector<8x32xf32>
    %38 = tpu.matmul %35, %37, %cst_41 {dimension_numbers = #tpu.dot_dimension_numbers<[1], [0], [0], [1], [0, 0, 1, 1], [], []>} : vector<8x32xbf16>, vector<32x32xbf16>, vector<8x32xf32> -> vector<8x32xf32>
    %39 = arith.addf %33, %38 : vector<8x32xf32>
    %c1_42 = arith.constant 1 : index
    %c0_43 = arith.constant 0 : index
    %40 = vector.load %arg15[%c1_42, %c0_43] : memref<10x32xf32, #tpu.memory_space<vmem>>, vector<8x32xf32>
    %41 = arith.truncf %40 : vector<8x32xf32> to vector<8x32xbf16>
    %c1_44 = arith.constant 1 : index
    %c1_45 = arith.constant 1 : index
    %c0_46 = arith.constant 0 : index
    %c0_47 = arith.constant 0 : index
    %42 = vector.load %arg2[%c1_44, %c1_45, %c0_46, %c0_47] : memref<4x3x32x32xbf16, #tpu.memory_space<vmem>>, vector<1x1x32x32xbf16>
    %43 = vector.shape_cast %42 : vector<1x1x32x32xbf16> to vector<32x32xbf16>
    %cst_48 = arith.constant dense<0.000000e+00> : vector<8x32xf32>
    %44 = tpu.matmul %41, %43, %cst_48 {dimension_numbers = #tpu.dot_dimension_numbers<[1], [0], [0], [1], [0, 0, 1, 1], [], []>} : vector<8x32xbf16>, vector<32x32xbf16>, vector<8x32xf32> -> vector<8x32xf32>
    %45 = arith.addf %39, %44 : vector<8x32xf32>
    %c2_49 = arith.constant 2 : index
    %c0_50 = arith.constant 0 : index
    %46 = vector.load %arg15[%c2_49, %c0_50] : memref<10x32xf32, #tpu.memory_space<vmem>>, vector<8x32xf32>
    %47 = arith.truncf %46 : vector<8x32xf32> to vector<8x32xbf16>
    %c1_51 = arith.constant 1 : index
    %c2_52 = arith.constant 2 : index
    %c0_53 = arith.constant 0 : index
    %c0_54 = arith.constant 0 : index
    %48 = vector.load %arg2[%c1_51, %c2_52, %c0_53, %c0_54] : memref<4x3x32x32xbf16, #tpu.memory_space<vmem>>, vector<1x1x32x32xbf16>
    %49 = vector.shape_cast %48 : vector<1x1x32x32xbf16> to vector<32x32xbf16>
    %cst_55 = arith.constant dense<0.000000e+00> : vector<8x32xf32>
    %50 = tpu.matmul %47, %49, %cst_55 {dimension_numbers = #tpu.dot_dimension_numbers<[1], [0], [0], [1], [0, 0, 1, 1], [], []>} : vector<8x32xbf16>, vector<32x32xbf16>, vector<8x32xf32> -> vector<8x32xf32>
    %51 = arith.addf %45, %50 : vector<8x32xf32>
    %c1_56 = arith.constant 1 : index
    %c0_57 = arith.constant 0 : index
    %c0_58 = arith.constant 0 : index
    %52 = vector.load %arg3[%c1_56, %c0_57, %c0_58] : memref<4x1x32xf32, #tpu.memory_space<vmem>>, vector<1x1x32xf32>
    %53 = vector.shape_cast %52 : vector<1x1x32xf32> to vector<1x32xf32>
    %54 = vector.broadcast %53 : vector<1x32xf32> to vector<8x32xf32>
    %55 = arith.addf %51, %54 : vector<8x32xf32>
    %cst_59 = arith.constant 0.000000e+00 : f32
    %56 = vector.broadcast %cst_59 : f32 to vector<8x32xf32>
    %57 = arith.maximumf %55, %56 : vector<8x32xf32>
    %c1_60 = arith.constant 1 : index
    %c0_61 = arith.constant 0 : index
    %58 = vector.load %arg15[%c1_60, %c0_61] : memref<10x32xf32, #tpu.memory_space<vmem>>, vector<8x32xf32>
    tpu.vector_store %arg15[%c1_60, %c0_61], %57 {strides = array<i32>} : memref<10x32xf32, #tpu.memory_space<vmem>>, vector<8x32xf32>,
    %cst_62 = arith.constant 0.000000e+00 : f32
    %59 = vector.broadcast %cst_62 : f32 to vector<8x32xf32>
    %c0_63 = arith.constant 0 : index
    %c0_64 = arith.constant 0 : index
    %60 = vector.load %arg15[%c0_63, %c0_64] : memref<10x32xf32, #tpu.memory_space<vmem>>, vector<8x32xf32>
    %61 = arith.truncf %60 : vector<8x32xf32> to vector<8x32xbf16>
    %c2_65 = arith.constant 2 : index
    %c0_66 = arith.constant 0 : index
    %c0_67 = arith.constant 0 : index
    %c0_68 = arith.constant 0 : index
    %62 = vector.load %arg2[%c2_65, %c0_66, %c0_67, %c0_68] : memref<4x3x32x32xbf16, #tpu.memory_space<vmem>>, vector<1x1x32x32xbf16>
    %63 = vector.shape_cast %62 : vector<1x1x32x32xbf16> to vector<32x32xbf16>
    %cst_69 = arith.constant dense<0.000000e+00> : vector<8x32xf32>
    %64 = tpu.matmul %61, %63, %cst_69 {dimension_numbers = #tpu.dot_dimension_numbers<[1], [0], [0], [1], [0, 0, 1, 1], [], []>} : vector<8x32xbf16>, vector<32x32xbf16>, vector<8x32xf32> -> vector<8x32xf32>
    %65 = arith.addf %59, %64 : vector<8x32xf32>
    %c1_70 = arith.constant 1 : index
    %c0_71 = arith.constant 0 : index
    %66 = vector.load %arg15[%c1_70, %c0_71] : memref<10x32xf32, #tpu.memory_space<vmem>>, vector<8x32xf32>
    %67 = arith.truncf %66 : vector<8x32xf32> to vector<8x32xbf16>
    %c2_72 = arith.constant 2 : index
    %c1_73 = arith.constant 1 : index
    %c0_74 = arith.constant 0 : index
    %c0_75 = arith.constant 0 : index
    %68 = vector.load %arg2[%c2_72, %c1_73, %c0_74, %c0_75] : memref<4x3x32x32xbf16, #tpu.memory_space<vmem>>, vector<1x1x32x32xbf16>
    %69 = vector.shape_cast %68 : vector<1x1x32x32xbf16> to vector<32x32xbf16>
    %cst_76 = arith.constant dense<0.000000e+00> : vector<8x32xf32>
    %70 = tpu.matmul %67, %69, %cst_76 {dimension_numbers = #tpu.dot_dimension_numbers<[1], [0], [0], [1], [0, 0, 1, 1], [], []>} : vector<8x32xbf16>, vector<32x32xbf16>, vector<8x32xf32> -> vector<8x32xf32>
    %71 = arith.addf %65, %70 : vector<8x32xf32>
    %c2_77 = arith.constant 2 : index
    %c0_78 = arith.constant 0 : index
    %72 = vector.load %arg15[%c2_77, %c0_78] : memref<10x32xf32, #tpu.memory_space<vmem>>, vector<8x32xf32>
    %73 = arith.truncf %72 : vector<8x32xf32> to vector<8x32xbf16>
    %c2_79 = arith.constant 2 : index
    %c2_80 = arith.constant 2 : index
    %c0_81 = arith.constant 0 : index
    %c0_82 = arith.constant 0 : index
    %74 = vector.load %arg2[%c2_79, %c2_80, %c0_81, %c0_82] : memref<4x3x32x32xbf16, #tpu.memory_space<vmem>>, vector<1x1x32x32xbf16>
    %75 = vector.shape_cast %74 : vector<1x1x32x32xbf16> to vector<32x32xbf16>
    %cst_83 = arith.constant dense<0.000000e+00> : vector<8x32xf32>
    %76 = tpu.matmul %73, %75, %cst_83 {dimension_numbers = #tpu.dot_dimension_numbers<[1], [0], [0], [1], [0, 0, 1, 1], [], []>} : vector<8x32xbf16>, vector<32x32xbf16>, vector<8x32xf32> -> vector<8x32xf32>
    %77 = arith.addf %71, %76 : vector<8x32xf32>
    %c2_84 = arith.constant 2 : index
    %c0_85 = arith.constant 0 : index
    %c0_86 = arith.constant 0 : index
    %78 = vector.load %arg3[%c2_84, %c0_85, %c0_86] : memref<4x1x32xf32, #tpu.memory_space<vmem>>, vector<1x1x32xf32>
    %79 = vector.shape_cast %78 : vector<1x1x32xf32> to vector<1x32xf32>
    %80 = vector.broadcast %79 : vector<1x32xf32> to vector<8x32xf32>
    %81 = arith.addf %77, %80 : vector<8x32xf32>
    %cst_87 = arith.constant 0.000000e+00 : f32
    %82 = vector.broadcast %cst_87 : f32 to vector<8x32xf32>
    %83 = arith.maximumf %81, %82 : vector<8x32xf32>
    %c1_88 = arith.constant 1 : index
    %c0_89 = arith.constant 0 : index
    %84 = vector.load %arg15[%c1_88, %c0_89] : memref<10x32xf32, #tpu.memory_space<vmem>>, vector<8x32xf32>
    tpu.vector_store %arg15[%c1_88, %c0_89], %83 {strides = array<i32>} : memref<10x32xf32, #tpu.memory_space<vmem>>, vector<8x32xf32>,
    %cst_90 = arith.constant 0.000000e+00 : f32
    %85 = vector.broadcast %cst_90 : f32 to vector<8x32xf32>
    %c0_91 = arith.constant 0 : index
    %c0_92 = arith.constant 0 : index
    %86 = vector.load %arg15[%c0_91, %c0_92] : memref<10x32xf32, #tpu.memory_space<vmem>>, vector<8x32xf32>
    %87 = arith.truncf %86 : vector<8x32xf32> to vector<8x32xbf16>
    %c3 = arith.constant 3 : index
    %c0_93 = arith.constant 0 : index
    %c0_94 = arith.constant 0 : index
    %c0_95 = arith.constant 0 : index
    %88 = vector.load %arg2[%c3, %c0_93, %c0_94, %c0_95] : memref<4x3x32x32xbf16, #tpu.memory_space<vmem>>, vector<1x1x32x32xbf16>
    %89 = vector.shape_cast %88 : vector<1x1x32x32xbf16> to vector<32x32xbf16>
    %cst_96 = arith.constant dense<0.000000e+00> : vector<8x32xf32>
    %90 = tpu.matmul %87, %89, %cst_96 {dimension_numbers = #tpu.dot_dimension_numbers<[1], [0], [0], [1], [0, 0, 1, 1], [], []>} : vector<8x32xbf16>, vector<32x32xbf16>, vector<8x32xf32> -> vector<8x32xf32>
    %91 = arith.addf %85, %90 : vector<8x32xf32>
    %c1_97 = arith.constant 1 : index
    %c0_98 = arith.constant 0 : index
    %92 = vector.load %arg15[%c1_97, %c0_98] : memref<10x32xf32, #tpu.memory_space<vmem>>, vector<8x32xf32>
    %93 = arith.truncf %92 : vector<8x32xf32> to vector<8x32xbf16>
    %c3_99 = arith.constant 3 : index
    %c1_100 = arith.constant 1 : index
    %c0_101 = arith.constant 0 : index
    %c0_102 = arith.constant 0 : index
    %94 = vector.load %arg2[%c3_99, %c1_100, %c0_101, %c0_102] : memref<4x3x32x32xbf16, #tpu.memory_space<vmem>>, vector<1x1x32x32xbf16>
    %95 = vector.shape_cast %94 : vector<1x1x32x32xbf16> to vector<32x32xbf16>
    %cst_103 = arith.constant dense<0.000000e+00> : vector<8x32xf32>
    %96 = tpu.matmul %93, %95, %cst_103 {dimension_numbers = #tpu.dot_dimension_numbers<[1], [0], [0], [1], [0, 0, 1, 1], [], []>} : vector<8x32xbf16>, vector<32x32xbf16>, vector<8x32xf32> -> vector<8x32xf32>
    %97 = arith.addf %91, %96 : vector<8x32xf32>
    %c2_104 = arith.constant 2 : index
    %c0_105 = arith.constant 0 : index
    %98 = vector.load %arg15[%c2_104, %c0_105] : memref<10x32xf32, #tpu.memory_space<vmem>>, vector<8x32xf32>
    %99 = arith.truncf %98 : vector<8x32xf32> to vector<8x32xbf16>
    %c3_106 = arith.constant 3 : index
    %c2_107 = arith.constant 2 : index
    %c0_108 = arith.constant 0 : index
    %c0_109 = arith.constant 0 : index
    %100 = vector.load %arg2[%c3_106, %c2_107, %c0_108, %c0_109] : memref<4x3x32x32xbf16, #tpu.memory_space<vmem>>, vector<1x1x32x32xbf16>
    %101 = vector.shape_cast %100 : vector<1x1x32x32xbf16> to vector<32x32xbf16>
    %cst_110 = arith.constant dense<0.000000e+00> : vector<8x32xf32>
    %102 = tpu.matmul %99, %101, %cst_110 {dimension_numbers = #tpu.dot_dimension_numbers<[1], [0], [0], [1], [0, 0, 1, 1], [], []>} : vector<8x32xbf16>, vector<32x32xbf16>, vector<8x32xf32> -> vector<8x32xf32>
    %103 = arith.addf %97, %102 : vector<8x32xf32>
    %c3_111 = arith.constant 3 : index
    %c0_112 = arith.constant 0 : index
    %c0_113 = arith.constant 0 : index
    %104 = vector.load %arg3[%c3_111, %c0_112, %c0_113] : memref<4x1x32xf32, #tpu.memory_space<vmem>>, vector<1x1x32xf32>
    %105 = vector.shape_cast %104 : vector<1x1x32xf32> to vector<1x32xf32>
    %106 = vector.broadcast %105 : vector<1x32xf32> to vector<8x32xf32>
    %107 = arith.addf %103, %106 : vector<8x32xf32>
    %cst_114 = arith.constant 0.000000e+00 : f32
    %108 = vector.broadcast %cst_114 : f32 to vector<8x32xf32>
    %109 = arith.maximumf %107, %108 : vector<8x32xf32>
    %110 = vector.extract_strided_slice %109 {offsets = [0, 0], sizes = [1, 32], strides = [1, 1]} : vector<8x32xf32> to vector<1x32xf32>
    %111 = vector.shape_cast %110 : vector<1x32xf32> to vector<1x32xf32>
    %112 = vector.broadcast %111 : vector<1x32xf32> to vector<8x32xf32>
    %c0_115 = arith.constant 0 : index
    %c0_116 = arith.constant 0 : index
    %113 = vector.load %arg16[%c0_115, %c0_116] : memref<15x32xf32, #tpu.memory_space<vmem>>, vector<8x32xf32>
    tpu.vector_store %arg16[%c0_115, %c0_116], %112 {strides = array<i32>} : memref<15x32xf32, #tpu.memory_space<vmem>>, vector<8x32xf32>,
    %114 = vector.extract_strided_slice %109 {offsets = [0, 0], sizes = [7, 32], strides = [1, 1]} : vector<8x32xf32> to vector<7x32xf32>
    %c8 = arith.constant 8 : index
    %c0_117 = arith.constant 0 : index
    %115 = vector.load %arg16[%c8, %c0_117] : memref<15x32xf32, #tpu.memory_space<vmem>>, vector<7x32xf32>
    tpu.vector_store %arg16[%c8, %c0_117], %114 {strides = array<i32>} : memref<15x32xf32, #tpu.memory_space<vmem>>, vector<7x32xf32>,
    %116 = vector.extract_strided_slice %109 {offsets = [1, 0], sizes = [7, 32], strides = [1, 1]} : vector<8x32xf32> to vector<7x32xf32>
    %c0_118 = arith.constant 0 : index
    %c0_119 = arith.constant 0 : index
    %117 = vector.load %arg17[%c0_118, %c0_119] : memref<15x32xf32, #tpu.memory_space<vmem>>, vector<7x32xf32>
    tpu.vector_store %arg17[%c0_118, %c0_119], %116 {strides = array<i32>} : memref<15x32xf32, #tpu.memory_space<vmem>>, vector<7x32xf32>,
    %118 = vector.extract_strided_slice %109 {offsets = [7, 0], sizes = [1, 32], strides = [1, 1]} : vector<8x32xf32> to vector<1x32xf32>
    %119 = vector.shape_cast %118 : vector<1x32xf32> to vector<1x32xf32>
    %120 = vector.broadcast %119 : vector<1x32xf32> to vector<8x32xf32>
    %c7 = arith.constant 7 : index
    %c0_120 = arith.constant 0 : index
    %121 = vector.load %arg17[%c7, %c0_120] : memref<15x32xf32, #tpu.memory_space<vmem>>, vector<8x32xf32>
    tpu.vector_store %arg17[%c7, %c0_120], %120 {strides = array<i32>} : memref<15x32xf32, #tpu.memory_space<vmem>>, vector<8x32xf32>,
    %cst_121 = arith.constant 0.000000e+00 : f32
    %122 = vector.broadcast %cst_121 : f32 to vector<8x32xf32>
    %cst_122 = arith.constant 0.000000e+00 : f32
    %123 = vector.broadcast %cst_122 : f32 to vector<8x32xf32>
    %c0_123 = arith.constant 0 : index
    %c0_124 = arith.constant 0 : index
    %124 = vector.load %arg16[%c0_123, %c0_124] : memref<15x32xf32, #tpu.memory_space<vmem>>, vector<8x32xf32>
    %125 = arith.truncf %124 : vector<8x32xf32> to vector<8x32xbf16>
    %c0_125 = arith.constant 0 : index
    %c0_126 = arith.constant 0 : index
    %c0_127 = arith.constant 0 : index
    %126 = vector.load %arg4[%c0_125, %c0_126, %c0_127] : memref<8x32x32xbf16, #tpu.memory_space<vmem>>, vector<1x32x32xbf16>
    %127 = vector.shape_cast %126 : vector<1x32x32xbf16> to vector<32x32xbf16>
    %cst_128 = arith.constant dense<0.000000e+00> : vector<8x32xf32>
    %128 = tpu.matmul %125, %127, %cst_128 {dimension_numbers = #tpu.dot_dimension_numbers<[1], [0], [0], [1], [0, 0, 1, 1], [], []>} : vector<8x32xbf16>, vector<32x32xbf16>, vector<8x32xf32> -> vector<8x32xf32>
    %129 = arith.addf %122, %128 : vector<8x32xf32>
    %c0_129 = arith.constant 0 : index
    %c0_130 = arith.constant 0 : index
    %130 = vector.load %arg17[%c0_129, %c0_130] : memref<15x32xf32, #tpu.memory_space<vmem>>, vector<8x32xf32>
    %131 = arith.truncf %130 : vector<8x32xf32> to vector<8x32xbf16>
    %c0_131 = arith.constant 0 : index
    %c0_132 = arith.constant 0 : index
    %c0_133 = arith.constant 0 : index
    %132 = vector.load %arg5[%c0_131, %c0_132, %c0_133] : memref<8x32x32xbf16, #tpu.memory_space<vmem>>, vector<1x32x32xbf16>
    %133 = vector.shape_cast %132 : vector<1x32x32xbf16> to vector<32x32xbf16>
    %cst_134 = arith.constant dense<0.000000e+00> : vector<8x32xf32>
    %134 = tpu.matmul %131, %133, %cst_134 {dimension_numbers = #tpu.dot_dimension_numbers<[1], [0], [0], [1], [0, 0, 1, 1], [], []>} : vector<8x32xbf16>, vector<32x32xbf16>, vector<8x32xf32> -> vector<8x32xf32>
    %135 = arith.addf %123, %134 : vector<8x32xf32>
    %c1_135 = arith.constant 1 : index
    %c0_136 = arith.constant 0 : index
    %136 = vector.load %arg16[%c1_135, %c0_136] : memref<15x32xf32, #tpu.memory_space<vmem>>, vector<8x32xf32>
    %137 = arith.truncf %136 : vector<8x32xf32> to vector<8x32xbf16>
    %c1_137 = arith.constant 1 : index
    %c0_138 = arith.constant 0 : index
    %c0_139 = arith.constant 0 : index
    %138 = vector.load %arg4[%c1_137, %c0_138, %c0_139] : memref<8x32x32xbf16, #tpu.memory_space<vmem>>, vector<1x32x32xbf16>
    %139 = vector.shape_cast %138 : vector<1x32x32xbf16> to vector<32x32xbf16>
    %cst_140 = arith.constant dense<0.000000e+00> : vector<8x32xf32>
    %140 = tpu.matmul %137, %139, %cst_140 {dimension_numbers = #tpu.dot_dimension_numbers<[1], [0], [0], [1], [0, 0, 1, 1], [], []>} : vector<8x32xbf16>, vector<32x32xbf16>, vector<8x32xf32> -> vector<8x32xf32>
    %141 = arith.addf %129, %140 : vector<8x32xf32>
    %c1_141 = arith.constant 1 : index
    %c0_142 = arith.constant 0 : index
    %142 = vector.load %arg17[%c1_141, %c0_142] : memref<15x32xf32, #tpu.memory_space<vmem>>, vector<8x32xf32>
    %143 = arith.truncf %142 : vector<8x32xf32> to vector<8x32xbf16>
    %c1_143 = arith.constant 1 : index
    %c0_144 = arith.constant 0 : index
    %c0_145 = arith.constant 0 : index
    %144 = vector.load %arg5[%c1_143, %c0_144, %c0_145] : memref<8x32x32xbf16, #tpu.memory_space<vmem>>, vector<1x32x32xbf16>
    %145 = vector.shape_cast %144 : vector<1x32x32xbf16> to vector<32x32xbf16>
    %cst_146 = arith.constant dense<0.000000e+00> : vector<8x32xf32>
    %146 = tpu.matmul %143, %145, %cst_146 {dimension_numbers = #tpu.dot_dimension_numbers<[1], [0], [0], [1], [0, 0, 1, 1], [], []>} : vector<8x32xbf16>, vector<32x32xbf16>, vector<8x32xf32> -> vector<8x32xf32>
    %147 = arith.addf %135, %146 : vector<8x32xf32>
    %c2_147 = arith.constant 2 : index
    %c0_148 = arith.constant 0 : index
    %148 = vector.load %arg16[%c2_147, %c0_148] : memref<15x32xf32, #tpu.memory_space<vmem>>, vector<8x32xf32>
    %149 = arith.truncf %148 : vector<8x32xf32> to vector<8x32xbf16>
    %c2_149 = arith.constant 2 : index
    %c0_150 = arith.constant 0 : index
    %c0_151 = arith.constant 0 : index
    %150 = vector.load %arg4[%c2_149, %c0_150, %c0_151] : memref<8x32x32xbf16, #tpu.memory_space<vmem>>, vector<1x32x32xbf16>
    %151 = vector.shape_cast %150 : vector<1x32x32xbf16> to vector<32x32xbf16>
    %cst_152 = arith.constant dense<0.000000e+00> : vector<8x32xf32>
    %152 = tpu.matmul %149, %151, %cst_152 {dimension_numbers = #tpu.dot_dimension_numbers<[1], [0], [0], [1], [0, 0, 1, 1], [], []>} : vector<8x32xbf16>, vector<32x32xbf16>, vector<8x32xf32> -> vector<8x32xf32>
    %153 = arith.addf %141, %152 : vector<8x32xf32>
    %c2_153 = arith.constant 2 : index
    %c0_154 = arith.constant 0 : index
    %154 = vector.load %arg17[%c2_153, %c0_154] : memref<15x32xf32, #tpu.memory_space<vmem>>, vector<8x32xf32>
    %155 = arith.truncf %154 : vector<8x32xf32> to vector<8x32xbf16>
    %c2_155 = arith.constant 2 : index
    %c0_156 = arith.constant 0 : index
    %c0_157 = arith.constant 0 : index
    %156 = vector.load %arg5[%c2_155, %c0_156, %c0_157] : memref<8x32x32xbf16, #tpu.memory_space<vmem>>, vector<1x32x32xbf16>
    %157 = vector.shape_cast %156 : vector<1x32x32xbf16> to vector<32x32xbf16>
    %cst_158 = arith.constant dense<0.000000e+00> : vector<8x32xf32>
    %158 = tpu.matmul %155, %157, %cst_158 {dimension_numbers = #tpu.dot_dimension_numbers<[1], [0], [0], [1], [0, 0, 1, 1], [], []>} : vector<8x32xbf16>, vector<32x32xbf16>, vector<8x32xf32> -> vector<8x32xf32>
    %159 = arith.addf %147, %158 : vector<8x32xf32>
    %c3_159 = arith.constant 3 : index
    %c0_160 = arith.constant 0 : index
    %160 = vector.load %arg16[%c3_159, %c0_160] : memref<15x32xf32, #tpu.memory_space<vmem>>, vector<8x32xf32>
    %161 = arith.truncf %160 : vector<8x32xf32> to vector<8x32xbf16>
    %c3_161 = arith.constant 3 : index
    %c0_162 = arith.constant 0 : index
    %c0_163 = arith.constant 0 : index
    %162 = vector.load %arg4[%c3_161, %c0_162, %c0_163] : memref<8x32x32xbf16, #tpu.memory_space<vmem>>, vector<1x32x32xbf16>
    %163 = vector.shape_cast %162 : vector<1x32x32xbf16> to vector<32x32xbf16>
    %cst_164 = arith.constant dense<0.000000e+00> : vector<8x32xf32>
    %164 = tpu.matmul %161, %163, %cst_164 {dimension_numbers = #tpu.dot_dimension_numbers<[1], [0], [0], [1], [0, 0, 1, 1], [], []>} : vector<8x32xbf16>, vector<32x32xbf16>, vector<8x32xf32> -> vector<8x32xf32>
    %165 = arith.addf %153, %164 : vector<8x32xf32>
    %c3_165 = arith.constant 3 : index
    %c0_166 = arith.constant 0 : index
    %166 = vector.load %arg17[%c3_165, %c0_166] : memref<15x32xf32, #tpu.memory_space<vmem>>, vector<8x32xf32>
    %167 = arith.truncf %166 : vector<8x32xf32> to vector<8x32xbf16>
    %c3_167 = arith.constant 3 : index
    %c0_168 = arith.constant 0 : index
    %c0_169 = arith.constant 0 : index
    %168 = vector.load %arg5[%c3_167, %c0_168, %c0_169] : memref<8x32x32xbf16, #tpu.memory_space<vmem>>, vector<1x32x32xbf16>
    %169 = vector.shape_cast %168 : vector<1x32x32xbf16> to vector<32x32xbf16>
    %cst_170 = arith.constant dense<0.000000e+00> : vector<8x32xf32>
    %170 = tpu.matmul %167, %169, %cst_170 {dimension_numbers = #tpu.dot_dimension_numbers<[1], [0], [0], [1], [0, 0, 1, 1], [], []>} : vector<8x32xbf16>, vector<32x32xbf16>, vector<8x32xf32> -> vector<8x32xf32>
    %171 = arith.addf %159, %170 : vector<8x32xf32>
    %c4 = arith.constant 4 : index
    %c0_171 = arith.constant 0 : index
    %172 = vector.load %arg16[%c4, %c0_171] : memref<15x32xf32, #tpu.memory_space<vmem>>, vector<8x32xf32>
    %173 = arith.truncf %172 : vector<8x32xf32> to vector<8x32xbf16>
    %c4_172 = arith.constant 4 : index
    %c0_173 = arith.constant 0 : index
    %c0_174 = arith.constant 0 : index
    %174 = vector.load %arg4[%c4_172, %c0_173, %c0_174] : memref<8x32x32xbf16, #tpu.memory_space<vmem>>, vector<1x32x32xbf16>
    %175 = vector.shape_cast %174 : vector<1x32x32xbf16> to vector<32x32xbf16>
    %cst_175 = arith.constant dense<0.000000e+00> : vector<8x32xf32>
    %176 = tpu.matmul %173, %175, %cst_175 {dimension_numbers = #tpu.dot_dimension_numbers<[1], [0], [0], [1], [0, 0, 1, 1], [], []>} : vector<8x32xbf16>, vector<32x32xbf16>, vector<8x32xf32> -> vector<8x32xf32>
    %177 = arith.addf %165, %176 : vector<8x32xf32>
    %c4_176 = arith.constant 4 : index
    %c0_177 = arith.constant 0 : index
    %178 = vector.load %arg17[%c4_176, %c0_177] : memref<15x32xf32, #tpu.memory_space<vmem>>, vector<8x32xf32>
    %179 = arith.truncf %178 : vector<8x32xf32> to vector<8x32xbf16>
    %c4_178 = arith.constant 4 : index
    %c0_179 = arith.constant 0 : index
    %c0_180 = arith.constant 0 : index
    %180 = vector.load %arg5[%c4_178, %c0_179, %c0_180] : memref<8x32x32xbf16, #tpu.memory_space<vmem>>, vector<1x32x32xbf16>
    %181 = vector.shape_cast %180 : vector<1x32x32xbf16> to vector<32x32xbf16>
    %cst_181 = arith.constant dense<0.000000e+00> : vector<8x32xf32>
    %182 = tpu.matmul %179, %181, %cst_181 {dimension_numbers = #tpu.dot_dimension_numbers<[1], [0], [0], [1], [0, 0, 1, 1], [], []>} : vector<8x32xbf16>, vector<32x32xbf16>, vector<8x32xf32> -> vector<8x32xf32>
    %183 = arith.addf %171, %182 : vector<8x32xf32>
    %c5 = arith.constant 5 : index
    %c0_182 = arith.constant 0 : index
    %184 = vector.load %arg16[%c5, %c0_182] : memref<15x32xf32, #tpu.memory_space<vmem>>, vector<8x32xf32>
    %185 = arith.truncf %184 : vector<8x32xf32> to vector<8x32xbf16>
    %c5_183 = arith.constant 5 : index
    %c0_184 = arith.constant 0 : index
    %c0_185 = arith.constant 0 : index
    %186 = vector.load %arg4[%c5_183, %c0_184, %c0_185] : memref<8x32x32xbf16, #tpu.memory_space<vmem>>, vector<1x32x32xbf16>
    %187 = vector.shape_cast %186 : vector<1x32x32xbf16> to vector<32x32xbf16>
    %cst_186 = arith.constant dense<0.000000e+00> : vector<8x32xf32>
    %188 = tpu.matmul %185, %187, %cst_186 {dimension_numbers = #tpu.dot_dimension_numbers<[1], [0], [0], [1], [0, 0, 1, 1], [], []>} : vector<8x32xbf16>, vector<32x32xbf16>, vector<8x32xf32> -> vector<8x32xf32>
    %189 = arith.addf %177, %188 : vector<8x32xf32>
    %c5_187 = arith.constant 5 : index
    %c0_188 = arith.constant 0 : index
    %190 = vector.load %arg17[%c5_187, %c0_188] : memref<15x32xf32, #tpu.memory_space<vmem>>, vector<8x32xf32>
    %191 = arith.truncf %190 : vector<8x32xf32> to vector<8x32xbf16>
    %c5_189 = arith.constant 5 : index
    %c0_190 = arith.constant 0 : index
    %c0_191 = arith.constant 0 : index
    %192 = vector.load %arg5[%c5_189, %c0_190, %c0_191] : memref<8x32x32xbf16, #tpu.memory_space<vmem>>, vector<1x32x32xbf16>
    %193 = vector.shape_cast %192 : vector<1x32x32xbf16> to vector<32x32xbf16>
    %cst_192 = arith.constant dense<0.000000e+00> : vector<8x32xf32>
    %194 = tpu.matmul %191, %193, %cst_192 {dimension_numbers = #tpu.dot_dimension_numbers<[1], [0], [0], [1], [0, 0, 1, 1], [], []>} : vector<8x32xbf16>, vector<32x32xbf16>, vector<8x32xf32> -> vector<8x32xf32>
    %195 = arith.addf %183, %194 : vector<8x32xf32>
    %c6 = arith.constant 6 : index
    %c0_193 = arith.constant 0 : index
    %196 = vector.load %arg16[%c6, %c0_193] : memref<15x32xf32, #tpu.memory_space<vmem>>, vector<8x32xf32>
    %197 = arith.truncf %196 : vector<8x32xf32> to vector<8x32xbf16>
    %c6_194 = arith.constant 6 : index
    %c0_195 = arith.constant 0 : index
    %c0_196 = arith.constant 0 : index
    %198 = vector.load %arg4[%c6_194, %c0_195, %c0_196] : memref<8x32x32xbf16, #tpu.memory_space<vmem>>, vector<1x32x32xbf16>
    %199 = vector.shape_cast %198 : vector<1x32x32xbf16> to vector<32x32xbf16>
    %cst_197 = arith.constant dense<0.000000e+00> : vector<8x32xf32>
    %200 = tpu.matmul %197, %199, %cst_197 {dimension_numbers = #tpu.dot_dimension_numbers<[1], [0], [0], [1], [0, 0, 1, 1], [], []>} : vector<8x32xbf16>, vector<32x32xbf16>, vector<8x32xf32> -> vector<8x32xf32>
    %201 = arith.addf %189, %200 : vector<8x32xf32>
    %c6_198 = arith.constant 6 : index
    %c0_199 = arith.constant 0 : index
    %202 = vector.load %arg17[%c6_198, %c0_199] : memref<15x32xf32, #tpu.memory_space<vmem>>, vector<8x32xf32>
    %203 = arith.truncf %202 : vector<8x32xf32> to vector<8x32xbf16>
    %c6_200 = arith.constant 6 : index
    %c0_201 = arith.constant 0 : index
    %c0_202 = arith.constant 0 : index
    %204 = vector.load %arg5[%c6_200, %c0_201, %c0_202] : memref<8x32x32xbf16, #tpu.memory_space<vmem>>, vector<1x32x32xbf16>
    %205 = vector.shape_cast %204 : vector<1x32x32xbf16> to vector<32x32xbf16>
    %cst_203 = arith.constant dense<0.000000e+00> : vector<8x32xf32>
    %206 = tpu.matmul %203, %205, %cst_203 {dimension_numbers = #tpu.dot_dimension_numbers<[1], [0], [0], [1], [0, 0, 1, 1], [], []>} : vector<8x32xbf16>, vector<32x32xbf16>, vector<8x32xf32> -> vector<8x32xf32>
    %207 = arith.addf %195, %206 : vector<8x32xf32>
    %c7_204 = arith.constant 7 : index
    %c0_205 = arith.constant 0 : index
    %208 = vector.load %arg16[%c7_204, %c0_205] : memref<15x32xf32, #tpu.memory_space<vmem>>, vector<8x32xf32>
    %209 = arith.truncf %208 : vector<8x32xf32> to vector<8x32xbf16>
    %c7_206 = arith.constant 7 : index
    %c0_207 = arith.constant 0 : index
    %c0_208 = arith.constant 0 : index
    %210 = vector.load %arg4[%c7_206, %c0_207, %c0_208] : memref<8x32x32xbf16, #tpu.memory_space<vmem>>, vector<1x32x32xbf16>
    %211 = vector.shape_cast %210 : vector<1x32x32xbf16> to vector<32x32xbf16>
    %cst_209 = arith.constant dense<0.000000e+00> : vector<8x32xf32>
    %212 = tpu.matmul %209, %211, %cst_209 {dimension_numbers = #tpu.dot_dimension_numbers<[1], [0], [0], [1], [0, 0, 1, 1], [], []>} : vector<8x32xbf16>, vector<32x32xbf16>, vector<8x32xf32> -> vector<8x32xf32>
    %213 = arith.addf %201, %212 : vector<8x32xf32>
    %c7_210 = arith.constant 7 : index
    %c0_211 = arith.constant 0 : index
    %214 = vector.load %arg17[%c7_210, %c0_211] : memref<15x32xf32, #tpu.memory_space<vmem>>, vector<8x32xf32>
    %215 = arith.truncf %214 : vector<8x32xf32> to vector<8x32xbf16>
    %c7_212 = arith.constant 7 : index
    %c0_213 = arith.constant 0 : index
    %c0_214 = arith.constant 0 : index
    %216 = vector.load %arg5[%c7_212, %c0_213, %c0_214] : memref<8x32x32xbf16, #tpu.memory_space<vmem>>, vector<1x32x32xbf16>
    %217 = vector.shape_cast %216 : vector<1x32x32xbf16> to vector<32x32xbf16>
    %cst_215 = arith.constant dense<0.000000e+00> : vector<8x32xf32>
    %218 = tpu.matmul %215, %217, %cst_215 {dimension_numbers = #tpu.dot_dimension_numbers<[1], [0], [0], [1], [0, 0, 1, 1], [], []>} : vector<8x32xbf16>, vector<32x32xbf16>, vector<8x32xf32> -> vector<8x32xf32>
    %219 = arith.addf %207, %218 : vector<8x32xf32>
    %220 = arith.truncf %213 : vector<8x32xf32> to vector<8x32xbf16>
    %c0_216 = arith.constant 0 : index
    %c0_217 = arith.constant 0 : index
    %221 = vector.load %arg6[%c0_216, %c0_217] : memref<64x32xbf16, #tpu.memory_space<vmem>>, vector<32x32xbf16>
    %cst_218 = arith.constant dense<0.000000e+00> : vector<8x32xf32>
    %222 = tpu.matmul %220, %221, %cst_218 {dimension_numbers = #tpu.dot_dimension_numbers<[1], [0], [0], [1], [0, 0, 1, 1], [], []>} : vector<8x32xbf16>, vector<32x32xbf16>, vector<8x32xf32> -> vector<8x32xf32>
    %223 = arith.truncf %219 : vector<8x32xf32> to vector<8x32xbf16>
    %c32 = arith.constant 32 : index
    %c0_219 = arith.constant 0 : index
    %224 = vector.load %arg6[%c32, %c0_219] : memref<64x32xbf16, #tpu.memory_space<vmem>>, vector<32x32xbf16>
    %cst_220 = arith.constant dense<0.000000e+00> : vector<8x32xf32>
    %225 = tpu.matmul %223, %224, %cst_220 {dimension_numbers = #tpu.dot_dimension_numbers<[1], [0], [0], [1], [0, 0, 1, 1], [], []>} : vector<8x32xbf16>, vector<32x32xbf16>, vector<8x32xf32> -> vector<8x32xf32>
    %226 = arith.addf %222, %225 : vector<8x32xf32>
    %c0_221 = arith.constant 0 : index
    %c0_222 = arith.constant 0 : index
    %227 = vector.load %arg7[%c0_221, %c0_222] : memref<1x32xf32, #tpu.memory_space<vmem>>, vector<1x32xf32>
    %228 = vector.broadcast %227 : vector<1x32xf32> to vector<8x32xf32>
    %229 = arith.addf %226, %228 : vector<8x32xf32>
    %cst_223 = arith.constant 0.000000e+00 : f32
    %230 = vector.broadcast %cst_223 : f32 to vector<8x32xf32>
    %231 = arith.maximumf %229, %230 : vector<8x32xf32>
    %232 = arith.truncf %231 : vector<8x32xf32> to vector<8x32xbf16>
    %c0_224 = arith.constant 0 : index
    %c0_225 = arith.constant 0 : index
    %233 = vector.load %arg8[%c0_224, %c0_225] : memref<32x64xbf16, #tpu.memory_space<vmem>>, vector<32x64xbf16>
    %cst_226 = arith.constant dense<0.000000e+00> : vector<8x64xf32>
    %234 = tpu.matmul %232, %233, %cst_226 {dimension_numbers = #tpu.dot_dimension_numbers<[1], [0], [0], [1], [0, 0, 1, 1], [], []>} : vector<8x32xbf16>, vector<32x64xbf16>, vector<8x64xf32> -> vector<8x64xf32>
    %c0_227 = arith.constant 0 : index
    %c0_228 = arith.constant 0 : index
    %235 = vector.load %arg9[%c0_227, %c0_228] : memref<1x64xf32, #tpu.memory_space<vmem>>, vector<1x64xf32>
    %236 = vector.broadcast %235 : vector<1x64xf32> to vector<8x64xf32>
    %237 = arith.addf %234, %236 : vector<8x64xf32>
    %cst_229 = arith.constant dense<0.000000e+00> : vector<8xf32>
    %238 = vector.multi_reduction <add>, %237, %cst_229 [1] : vector<8x64xf32> to vector<8xf32>
    %239 = vector.shape_cast %238 : vector<8xf32> to vector<8x1xf32>
    %cst_230 = arith.constant 6.400000e+01 : f32
    %240 = vector.broadcast %cst_230 : f32 to vector<8x1xf32>
    %241 = arith.divf %239, %240 : vector<8x1xf32>
    %242 = vector.broadcast %241 : vector<8x1xf32> to vector<8x64xf32>
    %243 = arith.subf %237, %242 : vector<8x64xf32>
    %244 = arith.mulf %243, %243 : vector<8x64xf32>
    %cst_231 = arith.constant dense<0.000000e+00> : vector<8xf32>
    %245 = vector.multi_reduction <add>, %244, %cst_231 [1] : vector<8x64xf32> to vector<8xf32>
    %246 = vector.shape_cast %245 : vector<8xf32> to vector<8x1xf32>
    %cst_232 = arith.constant 6.400000e+01 : f32
    %247 = vector.broadcast %cst_232 : f32 to vector<8x1xf32>
    %248 = arith.divf %246, %247 : vector<8x1xf32>
    %249 = vector.broadcast %241 : vector<8x1xf32> to vector<8x64xf32>
    %250 = arith.subf %237, %249 : vector<8x64xf32>
    %cst_233 = arith.constant 9.99999974E-6 : f32
    %251 = vector.broadcast %cst_233 : f32 to vector<8x1xf32>
    %252 = arith.addf %248, %251 : vector<8x1xf32>
    %253 = math.rsqrt %252 : vector<8x1xf32>
    %254 = vector.broadcast %253 : vector<8x1xf32> to vector<8x64xf32>
    %255 = arith.mulf %250, %254 : vector<8x64xf32>
    %c0_234 = arith.constant 0 : index
    %c0_235 = arith.constant 0 : index
    %256 = vector.load %arg10[%c0_234, %c0_235] : memref<1x64xf32, #tpu.memory_space<vmem>>, vector<1x64xf32>
    %257 = vector.broadcast %256 : vector<1x64xf32> to vector<8x64xf32>
    %258 = arith.mulf %255, %257 : vector<8x64xf32>
    %c0_236 = arith.constant 0 : index
    %c0_237 = arith.constant 0 : index
    %259 = vector.load %arg11[%c0_236, %c0_237] : memref<1x64xf32, #tpu.memory_space<vmem>>, vector<1x64xf32>
    %260 = vector.broadcast %259 : vector<1x64xf32> to vector<8x64xf32>
    %261 = arith.addf %258, %260 : vector<8x64xf32>
    %c0_238 = arith.constant 0 : index
    %c0_239 = arith.constant 0 : index
    %262 = vector.load %arg12[%c0_238, %c0_239] : memref<1x64xf32, #tpu.memory_space<vmem>>, vector<1x64xf32>
    %263 = vector.broadcast %262 : vector<1x64xf32> to vector<8x64xf32>
    %264 = arith.mulf %261, %263 : vector<8x64xf32>
    %cst_240 = arith.constant dense<0.000000e+00> : vector<8xf32>
    %265 = vector.multi_reduction <add>, %264, %cst_240 [1] : vector<8x64xf32> to vector<8xf32>
    %266 = vector.shape_cast %265 : vector<8xf32> to vector<8x1xf32>
    %c0_241 = arith.constant 0 : index
    %c0_242 = arith.constant 0 : index
    %267 = vector.load %arg13[%c0_241, %c0_242] : memref<1x1xf32, #tpu.memory_space<vmem>>, vector<1x1xf32>
    %268 = vector.broadcast %267 : vector<1x1xf32> to vector<8x1xf32>
    %269 = arith.addf %266, %268 : vector<8x1xf32>
    %270 = arith.negf %269 : vector<8x1xf32>
    %271 = math.exp %270 : vector<8x1xf32>
    %cst_243 = arith.constant 1.000000e+00 : f32
    %272 = vector.broadcast %cst_243 : f32 to vector<8x1xf32>
    %273 = arith.addf %272, %271 : vector<8x1xf32>
    %274 = arith.divf %272, %273 : vector<8x1xf32>
    %c0_244 = arith.constant 0 : index
    %c0_245 = arith.constant 0 : index
    %c0_246 = arith.constant 0 : index
    %275 = vector.load %arg14[%c0_244, %c0_245, %c0_246] : memref<1x8x1xf32, #tpu.memory_space<vmem>>, vector<1x8x1xf32>
    %276 = vector.shape_cast %275 : vector<1x8x1xf32> to vector<8x1xf32>
    %277 = vector.shape_cast %274 : vector<8x1xf32> to vector<1x8x1xf32>
    tpu.vector_store %arg14[%c0_244, %c0_245, %c0_246], %277 {strides = array<i32>} : memref<1x8x1xf32, #tpu.memory_space<vmem>>, vector<1x8x1xf32>,
    return
  }
  func.func @transform_0(%arg0: i32) -> (i32, i32, i32) {
    %c0_i32 = arith.constant 0 : i32
    %c0_i32_0 = arith.constant 0 : i32
    %c0_i32_1 = arith.constant 0 : i32
    return %arg0, %c0_i32, %c0_i32_0 : i32, i32, i32
  }
  func.func @transform_1(%arg0: i32) -> (i32, i32, i32, i32) {
    %c0_i32 = arith.constant 0 : i32
    %c0_i32_0 = arith.constant 0 : i32
    %c0_i32_1 = arith.constant 0 : i32
    %c0_i32_2 = arith.constant 0 : i32
    %c0_i32_3 = arith.constant 0 : i32
    return %c0_i32, %c0_i32_0, %c0_i32_1, %c0_i32_2 : i32, i32, i32, i32
  }
  func.func @transform_2(%arg0: i32) -> (i32, i32, i32) {
    %c0_i32 = arith.constant 0 : i32
    %c0_i32_0 = arith.constant 0 : i32
    %c0_i32_1 = arith.constant 0 : i32
    %c0_i32_2 = arith.constant 0 : i32
    return %c0_i32, %c0_i32_0, %c0_i32_1 : i32, i32, i32
  }
  func.func @transform_3(%arg0: i32) -> (i32, i32, i32) {
    %c0_i32 = arith.constant 0 : i32
    %c0_i32_0 = arith.constant 0 : i32
    %c0_i32_1 = arith.constant 0 : i32
    %c0_i32_2 = arith.constant 0 : i32
    return %c0_i32, %c0_i32_0, %c0_i32_1 : i32, i32, i32
  }
  func.func @transform_4(%arg0: i32) -> (i32, i32, i32) {
    %c0_i32 = arith.constant 0 : i32
    %c0_i32_0 = arith.constant 0 : i32
    %c0_i32_1 = arith.constant 0 : i32
    %c0_i32_2 = arith.constant 0 : i32
    return %c0_i32, %c0_i32_0, %c0_i32_1 : i32, i32, i32
  }
  func.func @transform_5(%arg0: i32) -> (i32, i32) {
    %c0_i32 = arith.constant 0 : i32
    %c0_i32_0 = arith.constant 0 : i32
    %c0_i32_1 = arith.constant 0 : i32
    return %c0_i32, %c0_i32_0 : i32, i32
  }
  func.func @transform_6(%arg0: i32) -> (i32, i32) {
    %c0_i32 = arith.constant 0 : i32
    %c0_i32_0 = arith.constant 0 : i32
    %c0_i32_1 = arith.constant 0 : i32
    return %c0_i32, %c0_i32_0 : i32, i32
  }
  func.func @transform_7(%arg0: i32) -> (i32, i32) {
    %c0_i32 = arith.constant 0 : i32
    %c0_i32_0 = arith.constant 0 : i32
    %c0_i32_1 = arith.constant 0 : i32
    return %c0_i32, %c0_i32_0 : i32, i32
  }
  func.func @transform_8(%arg0: i32) -> (i32, i32) {
    %c0_i32 = arith.constant 0 : i32
    %c0_i32_0 = arith.constant 0 : i32
    %c0_i32_1 = arith.constant 0 : i32
    return %c0_i32, %c0_i32_0 : i32, i32
  }
  func.func @transform_9(%arg0: i32) -> (i32, i32) {
    %c0_i32 = arith.constant 0 : i32
    %c0_i32_0 = arith.constant 0 : i32
    %c0_i32_1 = arith.constant 0 : i32
    return %c0_i32, %c0_i32_0 : i32, i32
  }
  func.func @transform_10(%arg0: i32) -> (i32, i32) {
    %c0_i32 = arith.constant 0 : i32
    %c0_i32_0 = arith.constant 0 : i32
    %c0_i32_1 = arith.constant 0 : i32
    return %c0_i32, %c0_i32_0 : i32, i32
  }
  func.func @transform_11(%arg0: i32) -> (i32, i32) {
    %c0_i32 = arith.constant 0 : i32
    %c0_i32_0 = arith.constant 0 : i32
    %c0_i32_1 = arith.constant 0 : i32
    return %c0_i32, %c0_i32_0 : i32, i32
  }
  func.func @transform_12(%arg0: i32) -> (i32, i32) {
    %c0_i32 = arith.constant 0 : i32
    %c0_i32_0 = arith.constant 0 : i32
    %c0_i32_1 = arith.constant 0 : i32
    return %c0_i32, %c0_i32_0 : i32, i32
  }
  func.func @transform_13(%arg0: i32) -> (i32, i32, i32) {
    %c0_i32 = arith.constant 0 : i32
    %c0_i32_0 = arith.constant 0 : i32
    %c0_i32_1 = arith.constant 0 : i32
    return %arg0, %c0_i32, %c0_i32_0 : i32, i32, i32
  }
}

module attributes {stable_mosaic.version = 11 : i64} {
  func.func @_gop_kernel(%arg0: i32, %arg1: memref<1x16x192xbf16, #tpu.memory_space<vmem>>, %arg2: memref<1x3x16xbf16, #tpu.memory_space<vmem>>, %arg3: memref<192x64xbf16, #tpu.memory_space<vmem>>, %arg4: memref<64x32xbf16, #tpu.memory_space<vmem>>, %arg5: memref<1x32xf32, #tpu.memory_space<vmem>>, %arg6: memref<32x32xbf16, #tpu.memory_space<vmem>>, %arg7: memref<1x32xf32, #tpu.memory_space<vmem>>, %arg8: memref<1x4x32xf32, #tpu.memory_space<vmem>>) attributes {dimension_semantics = [#tpu.dimension_semantics<parallel>], iteration_bounds = array<i64: 4>, scalar_prefetch = 0 : i64, scratch_operands = 0 : i64, tpu.core_type = #tpu.core_type<tc>, window_params = [{transform_indices = @transform_0, window_bounds = array<i64: 1, 16, 192>}, {transform_indices = @transform_1, window_bounds = array<i64: 1, 3, 16>}, {pipeline_mode = #tpu.pipeline_mode<synchronous>, transform_indices = @transform_2, window_bounds = array<i64: 192, 64>}, {pipeline_mode = #tpu.pipeline_mode<synchronous>, transform_indices = @transform_3, window_bounds = array<i64: 64, 32>}, {pipeline_mode = #tpu.pipeline_mode<synchronous>, transform_indices = @transform_4, window_bounds = array<i64: 1, 32>}, {pipeline_mode = #tpu.pipeline_mode<synchronous>, transform_indices = @transform_5, window_bounds = array<i64: 32, 32>}, {pipeline_mode = #tpu.pipeline_mode<synchronous>, transform_indices = @transform_6, window_bounds = array<i64: 1, 32>}, {transform_indices = @transform_7, window_bounds = array<i64: 1, 4, 32>}]} {
    %c0 = arith.constant 0 : index
    %c0_0 = arith.constant 0 : index
    %c0_1 = arith.constant 0 : index
    %0 = vector.load %arg1[%c0, %c0_0, %c0_1] : memref<1x16x192xbf16, #tpu.memory_space<vmem>>, vector<1x16x192xbf16>
    %1 = vector.shape_cast %0 : vector<1x16x192xbf16> to vector<16x192xbf16>
    %c0_2 = arith.constant 0 : index
    %c0_3 = arith.constant 0 : index
    %2 = vector.load %arg3[%c0_2, %c0_3] : memref<192x64xbf16, #tpu.memory_space<vmem>>, vector<192x64xbf16>
    %cst = arith.constant dense<0.000000e+00> : vector<16x64xf32>
    %3 = tpu.matmul %1, %2, %cst {dimension_numbers = #tpu.dot_dimension_numbers<[1], [0], [0], [1], [0, 0, 1, 1], [], []>} : vector<16x192xbf16>, vector<192x64xbf16>, vector<16x64xf32> -> vector<16x64xf32>
    %cst_4 = arith.constant 0.000000e+00 : f32
    %4 = vector.broadcast %cst_4 : f32 to vector<16x64xf32>
    %5 = arith.maximumf %3, %4 : vector<16x64xf32>
    %6 = arith.truncf %5 : vector<16x64xf32> to vector<16x64xbf16>
    %c0_5 = arith.constant 0 : index
    %c0_6 = arith.constant 0 : index
    %7 = vector.load %arg4[%c0_5, %c0_6] : memref<64x32xbf16, #tpu.memory_space<vmem>>, vector<64x32xbf16>
    %cst_7 = arith.constant dense<0.000000e+00> : vector<16x32xf32>
    %8 = tpu.matmul %6, %7, %cst_7 {dimension_numbers = #tpu.dot_dimension_numbers<[1], [0], [0], [1], [0, 0, 1, 1], [], []>} : vector<16x64xbf16>, vector<64x32xbf16>, vector<16x32xf32> -> vector<16x32xf32>
    %c0_8 = arith.constant 0 : index
    %c0_9 = arith.constant 0 : index
    %9 = vector.load %arg5[%c0_8, %c0_9] : memref<1x32xf32, #tpu.memory_space<vmem>>, vector<1x32xf32>
    %10 = vector.broadcast %9 : vector<1x32xf32> to vector<16x32xf32>
    %11 = arith.addf %8, %10 : vector<16x32xf32>
    %cst_10 = arith.constant dense<0.000000e+00> : vector<32xf32>
    %12 = vector.multi_reduction <add>, %11, %cst_10 [0] : vector<16x32xf32> to vector<32xf32>
    %13 = vector.shape_cast %12 : vector<32xf32> to vector<1x32xf32>
    %cst_11 = arith.constant 1.600000e+01 : f32
    %14 = vector.broadcast %cst_11 : f32 to vector<1x32xf32>
    %15 = arith.divf %13, %14 : vector<1x32xf32>
    %c0_12 = arith.constant 0 : index
    %c0_13 = arith.constant 0 : index
    %c0_14 = arith.constant 0 : index
    %16 = vector.load %arg2[%c0_12, %c0_13, %c0_14] : memref<1x3x16xbf16, #tpu.memory_space<vmem>>, vector<1x3x16xbf16>
    %17 = vector.shape_cast %16 : vector<1x3x16xbf16> to vector<3x16xbf16>
    %18 = arith.truncf %11 : vector<16x32xf32> to vector<16x32xbf16>
    %cst_15 = arith.constant dense<0.000000e+00> : vector<3x32xf32>
    %19 = tpu.matmul %17, %18, %cst_15 {dimension_numbers = #tpu.dot_dimension_numbers<[1], [0], [0], [1], [0, 0, 1, 1], [], []>} : vector<3x16xbf16>, vector<16x32xbf16>, vector<3x32xf32> -> vector<3x32xf32>
    %20 = arith.truncf %19 : vector<3x32xf32> to vector<3x32xbf16>
    %c0_16 = arith.constant 0 : index
    %c0_17 = arith.constant 0 : index
    %21 = vector.load %arg6[%c0_16, %c0_17] : memref<32x32xbf16, #tpu.memory_space<vmem>>, vector<32x32xbf16>
    %cst_18 = arith.constant dense<0.000000e+00> : vector<3x32xf32>
    %22 = tpu.matmul %20, %21, %cst_18 {dimension_numbers = #tpu.dot_dimension_numbers<[1], [0], [0], [1], [0, 0, 1, 1], [], []>} : vector<3x32xbf16>, vector<32x32xbf16>, vector<3x32xf32> -> vector<3x32xf32>
    %c0_19 = arith.constant 0 : index
    %c0_20 = arith.constant 0 : index
    %23 = vector.load %arg7[%c0_19, %c0_20] : memref<1x32xf32, #tpu.memory_space<vmem>>, vector<1x32xf32>
    %24 = vector.broadcast %23 : vector<1x32xf32> to vector<3x32xf32>
    %25 = arith.addf %22, %24 : vector<3x32xf32>
    %c0_21 = arith.constant 0 : index
    %c0_22 = arith.constant 0 : index
    %c0_23 = arith.constant 0 : index
    %26 = vector.load %arg8[%c0_21, %c0_22, %c0_23] : memref<1x4x32xf32, #tpu.memory_space<vmem>>, vector<1x1x32xf32>
    %27 = vector.shape_cast %26 : vector<1x1x32xf32> to vector<1x32xf32>
    %28 = vector.shape_cast %15 : vector<1x32xf32> to vector<1x1x32xf32>
    tpu.vector_store %arg8[%c0_21, %c0_22, %c0_23], %28 {strides = array<i32>} : memref<1x4x32xf32, #tpu.memory_space<vmem>>, vector<1x1x32xf32>,
    %c0_24 = arith.constant 0 : index
    %c1 = arith.constant 1 : index
    %c0_25 = arith.constant 0 : index
    %29 = vector.load %arg8[%c0_24, %c1, %c0_25] : memref<1x4x32xf32, #tpu.memory_space<vmem>>, vector<1x3x32xf32>
    %30 = vector.shape_cast %29 : vector<1x3x32xf32> to vector<3x32xf32>
    %31 = vector.shape_cast %25 : vector<3x32xf32> to vector<1x3x32xf32>
    tpu.vector_store %arg8[%c0_24, %c1, %c0_25], %31 {strides = array<i32>} : memref<1x4x32xf32, #tpu.memory_space<vmem>>, vector<1x3x32xf32>,
    return
  }
  func.func @transform_0(%arg0: i32) -> (i32, i32, i32) {
    %c0_i32 = arith.constant 0 : i32
    %c0_i32_0 = arith.constant 0 : i32
    %c0_i32_1 = arith.constant 0 : i32
    return %arg0, %c0_i32, %c0_i32_0 : i32, i32, i32
  }
  func.func @transform_1(%arg0: i32) -> (i32, i32, i32) {
    %c0_i32 = arith.constant 0 : i32
    %c0_i32_0 = arith.constant 0 : i32
    %c0_i32_1 = arith.constant 0 : i32
    return %arg0, %c0_i32, %c0_i32_0 : i32, i32, i32
  }
  func.func @transform_2(%arg0: i32) -> (i32, i32) {
    %c0_i32 = arith.constant 0 : i32
    %c0_i32_0 = arith.constant 0 : i32
    %c0_i32_1 = arith.constant 0 : i32
    return %c0_i32, %c0_i32_0 : i32, i32
  }
  func.func @transform_3(%arg0: i32) -> (i32, i32) {
    %c0_i32 = arith.constant 0 : i32
    %c0_i32_0 = arith.constant 0 : i32
    %c0_i32_1 = arith.constant 0 : i32
    return %c0_i32, %c0_i32_0 : i32, i32
  }
  func.func @transform_4(%arg0: i32) -> (i32, i32) {
    %c0_i32 = arith.constant 0 : i32
    %c0_i32_0 = arith.constant 0 : i32
    %c0_i32_1 = arith.constant 0 : i32
    return %c0_i32, %c0_i32_0 : i32, i32
  }
  func.func @transform_5(%arg0: i32) -> (i32, i32) {
    %c0_i32 = arith.constant 0 : i32
    %c0_i32_0 = arith.constant 0 : i32
    %c0_i32_1 = arith.constant 0 : i32
    return %c0_i32, %c0_i32_0 : i32, i32
  }
  func.func @transform_6(%arg0: i32) -> (i32, i32) {
    %c0_i32 = arith.constant 0 : i32
    %c0_i32_0 = arith.constant 0 : i32
    %c0_i32_1 = arith.constant 0 : i32
    return %c0_i32, %c0_i32_0 : i32, i32
  }
  func.func @transform_7(%arg0: i32) -> (i32, i32, i32) {
    %c0_i32 = arith.constant 0 : i32
    %c0_i32_0 = arith.constant 0 : i32
    %c0_i32_1 = arith.constant 0 : i32
    return %arg0, %c0_i32, %c0_i32_0 : i32, i32, i32
  }
}

</mosaic_0001>

<llo_original>
// kernel: forward.2
$region0: #{forward.2}
  #allocation0 [shape = 'u32[]', space=smem, size = 0x4, offset = 0x4, fixed_abs, tag = 'smem constant byte address 0x4 - core index']
  #allocation1 [shape = 'u32[144,128]{1,0:T(1,128)}', space=vmem, size = 0x12000, scoped, tag = 'internal scratch']
  %s0 = inlined_call_operand.vmem [shape: bf16[4,16,192], index: 0, kind: input, shape index: {}]
  %s1 = inlined_call_operand.vmem [shape: bf16[4,3,16], index: 1, kind: input, shape index: {}]
  %s2 = inlined_call_operand.vmem [shape: bf16[192,64], index: 2, kind: input, shape index: {}]
  %s3 = inlined_call_operand.vmem [shape: bf16[64,32], index: 3, kind: input, shape index: {}]
  %s4 = inlined_call_operand.vmem [shape: f32[1,32], index: 4, kind: input, shape index: {}]
  %s5 = inlined_call_operand.vmem [shape: bf16[32,32], index: 5, kind: input, shape index: {}]
  %s6 = inlined_call_operand.vmem [shape: f32[1,32], index: 6, kind: input, shape index: {}]
  %s7 = inlined_call_operand.vmem [shape: f32[4,4,32], index: 7, kind: output, shape index: {}]
  %s8 = sld [smem:[#allocation0]]
  $region61: #{forward.2} parent=0
    _
  %s10 = ssub.s32 1, %s8
  %s11 = scalar_select 0, %s10, %s8
  loop: start=0, step=1, limit=6
  $region2: #{forward.2} parent=0 // loop_pre_header
    _
  $region3: #{forward.2} parent=0 // loop_header
    %s13 = sphi 0, %s17
    %p14 = scmp.ge.s32.totalorder %s13, 6
    %s23 = sphi 0, %s25
    %s26 = sphi 0, %s23
    %s27 = sphi 0, %s26
    %s43 = sphi 0, %s27
    %s49 = sphi 0, %s51
    %s52 = sphi 0, %s49
    %s53 = sphi 0, %s52
    %s69 = sphi 0, %s53
    %s73 = sphi 0, %s73
    %s75 = sphi 0, %s73
    %s76 = sphi 0, %s75
    %s90 = sphi 0, %s76
    %s94 = sphi 0, %s94
    %s96 = sphi 0, %s94
    %s97 = sphi 0, %s96
    %s111 = sphi 0, %s97
    %s115 = sphi 0, %s115
    %s117 = sphi 0, %s115
    %s118 = sphi 0, %s117
    %s132 = sphi 0, %s118
    %s136 = sphi 0, %s136
    %s138 = sphi 0, %s136
    %s139 = sphi 0, %s138
    %s153 = sphi 0, %s139
    %s157 = sphi 0, %s157
    %s159 = sphi 0, %s157
    %s160 = sphi 0, %s159
    %s174 = sphi 0, %s160
    %s180 = sphi 0, %s182
    %s183 = sphi 0, %s180
    %s184 = sphi 0, %s183
    %s200 = sphi 0, %s184
  $region4: #{forward.2} parent=0 // loop_header_branch
    %16 = sbr.rel (%p14) target = $region8
  $region5: #{forward.2} parent=0 // loop_body
    %s18 = ssub.s32 %s13, 1
    %s19 = ssub.s32 %s13, 2
    %s20 = sadd.s32 %s13, 1
    %s21 = ssub.s32 %s13, %s20
    %p22 = scmp.eq.s32.totalorder %s21, 0
    %s24 = sadd.s32 %s23, 1
    %s25 = scalar_select %p22, %s23, %s24
    %p28 = pneg %p22
    %p29 = scmp.eq.s32.totalorder %s13, 3
    %p30 = por %p28, %p29
    %p31 = scmp.ne.s32.totalorder %s23, %s26
    %p32 = scmp.eq.s32.totalorder %s13, 0
    %p33 = por %p31, %p32
    %p34 = scmp.ne.s32.totalorder %s23, %s26
    %p35 = scmp.eq.s32.totalorder %s18, 3
    %p36 = por %p34, %p35
    %p37 = scmp.ne.s32.totalorder %s26, %s27
    %p38 = scmp.eq.s32.totalorder %s18, 0
    %p39 = por %p37, %p38
    %p40 = scmp.ne.s32.totalorder %s26, %s27
    %p41 = scmp.eq.s32.totalorder %s19, 3
    %p42 = por %p40, %p41
    %p44 = scmp.ne.s32.totalorder %s27, %s43
    %p45 = scmp.eq.s32.totalorder %s19, 0
    %p46 = por %p44, %p45
    %s47 = ssub.s32 %s13, %s20
    %p48 = scmp.eq.s32.totalorder %s47, 0
    %s50 = sadd.s32 %s49, 1
    %s51 = scalar_select %p48, %s49, %s50
    %p54 = pneg %p48
    %p55 = scmp.eq.s32.totalorder %s13, 3
    %p56 = por %p54, %p55
    %p57 = scmp.ne.s32.totalorder %s49, %s52
    %p58 = scmp.eq.s32.totalorder %s13, 0
    %p59 = por %p57, %p58
    %p60 = scmp.ne.s32.totalorder %s49, %s52
    %p61 = scmp.eq.s32.totalorder %s18, 3
    %p62 = por %p60, %p61
    %p63 = scmp.ne.s32.totalorder %s52, %s53
    %p64 = scmp.eq.s32.totalorder %s18, 0
    %p65 = por %p63, %p64
    %p66 = scmp.ne.s32.totalorder %s52, %s53
    %p67 = scmp.eq.s32.totalorder %s19, 3
    %p68 = por %p66, %p67
    %p70 = scmp.ne.s32.totalorder %s53, %s69
    %p71 = scmp.eq.s32.totalorder %s19, 0
    %p72 = por %p70, %p71
    %s74 = sadd.s32 %s73, 1
    %p77 = scmp.eq.s32.totalorder %s13, 3
    %p78 = scmp.ne.s32.totalorder %s73, %s75
    %p79 = scmp.eq.s32.totalorder %s13, 0
    %p80 = por %p78, %p79
    %p81 = scmp.ne.s32.totalorder %s73, %s75
    %p82 = scmp.eq.s32.totalorder %s18, 3
    %p83 = por %p81, %p82
    %p84 = scmp.ne.s32.totalorder %s75, %s76
    %p85 = scmp.eq.s32.totalorder %s18, 0
    %p86 = por %p84, %p85
    %p87 = scmp.ne.s32.totalorder %s75, %s76
    %p88 = scmp.eq.s32.totalorder %s19, 3
    %p89 = por %p87, %p88
    %p91 = scmp.ne.s32.totalorder %s76, %s90
    %p92 = scmp.eq.s32.totalorder %s19, 0
    %p93 = por %p91, %p92
    %s95 = sadd.s32 %s94, 1
    %p98 = scmp.eq.s32.totalorder %s13, 3
    %p99 = scmp.ne.s32.totalorder %s94, %s96
    %p100 = scmp.eq.s32.totalorder %s13, 0
    %p101 = por %p99, %p100
    %p102 = scmp.ne.s32.totalorder %s94, %s96
    %p103 = scmp.eq.s32.totalorder %s18, 3
    %p104 = por %p102, %p103
    %p105 = scmp.ne.s32.totalorder %s96, %s97
    %p106 = scmp.eq.s32.totalorder %s18, 0
    %p107 = por %p105, %p106
    %p108 = scmp.ne.s32.totalorder %s96, %s97
    %p109 = scmp.eq.s32.totalorder %s19, 3
    %p110 = por %p108, %p109
    %p112 = scmp.ne.s32.totalorder %s97, %s111
    %p113 = scmp.eq.s32.totalorder %s19, 0
    %p114 = por %p112, %p113
    %s116 = sadd.s32 %s115, 1
    %p119 = scmp.eq.s32.totalorder %s13, 3
    %p120 = scmp.ne.s32.totalorder %s115, %s117
    %p121 = scmp.eq.s32.totalorder %s13, 0
    %p122 = por %p120, %p121
    %p123 = scmp.ne.s32.totalorder %s115, %s117
    %p124 = scmp.eq.s32.totalorder %s18, 3
    %p125 = por %p123, %p124
    %p126 = scmp.ne.s32.totalorder %s117, %s118
    %p127 = scmp.eq.s32.totalorder %s18, 0
    %p128 = por %p126, %p127
    %p129 = scmp.ne.s32.totalorder %s117, %s118
    %p130 = scmp.eq.s32.totalorder %s19, 3
    %p131 = por %p129, %p130
    %p133 = scmp.ne.s32.totalorder %s118, %s132
    %p134 = scmp.eq.s32.totalorder %s19, 0
    %p135 = por %p133, %p134
    %s137 = sadd.s32 %s136, 1
    %p140 = scmp.eq.s32.totalorder %s13, 3
    %p141 = scmp.ne.s32.totalorder %s136, %s138
    %p142 = scmp.eq.s32.totalorder %s13, 0
    %p143 = por %p141, %p142
    %p144 = scmp.ne.s32.totalorder %s136, %s138
    %p145 = scmp.eq.s32.totalorder %s18, 3
    %p146 = por %p144, %p145
    %p147 = scmp.ne.s32.totalorder %s138, %s139
    %p148 = scmp.eq.s32.totalorder %s18, 0
    %p149 = por %p147, %p148
    %p150 = scmp.ne.s32.totalorder %s138, %s139
    %p151 = scmp.eq.s32.totalorder %s19, 3
    %p152 = por %p150, %p151
    %p154 = scmp.ne.s32.totalorder %s139, %s153
    %p155 = scmp.eq.s32.totalorder %s19, 0
    %p156 = por %p154, %p155
    %s158 = sadd.s32 %s157, 1
    %p161 = scmp.eq.s32.totalorder %s13, 3
    %p162 = scmp.ne.s32.totalorder %s157, %s159
    %p163 = scmp.eq.s32.totalorder %s13, 0
    %p164 = por %p162, %p163
    %p165 = scmp.ne.s32.totalorder %s157, %s159
    %p166 = scmp.eq.s32.totalorder %s18, 3
    %p167 = por %p165, %p166
    %p168 = scmp.ne.s32.totalorder %s159, %s160
    %p169 = scmp.eq.s32.totalorder %s18, 0
    %p170 = por %p168, %p169
    %p171 = scmp.ne.s32.totalorder %s159, %s160
    %p172 = scmp.eq.s32.totalorder %s19, 3
    %p173 = por %p171, %p172
    %p175 = scmp.ne.s32.totalorder %s160, %s174
    %p176 = scmp.eq.s32.totalorder %s19, 0
    %p177 = por %p175, %p176
    %s178 = ssub.s32 %s13, %s20
    %p179 = scmp.eq.s32.totalorder %s178, 0
    %s181 = sadd.s32 %s180, 1
    %s182 = scalar_select %p179, %s180, %s181
    %p185 = pneg %p179
    %p186 = scmp.eq.s32.totalorder %s13, 3
    %p187 = por %p185, %p186
    %p188 = scmp.ne.s32.totalorder %s180, %s183
    %p189 = scmp.eq.s32.totalorder %s13, 0
    %p190 = por %p188, %p189
    %p191 = scmp.ne.s32.totalorder %s180, %s183
    %p192 = scmp.eq.s32.totalorder %s18, 3
    %p193 = por %p191, %p192
    %p194 = scmp.ne.s32.totalorder %s183, %s184
    %p195 = scmp.eq.s32.totalorder %s18, 0
    %p196 = por %p194, %p195
    %p197 = scmp.ne.s32.totalorder %s183, %s184
    %p198 = scmp.eq.s32.totalorder %s19, 3
    %p199 = por %p197, %p198
    %p201 = scmp.ne.s32.totalorder %s184, %s200
    %p202 = scmp.eq.s32.totalorder %s19, 0
    %p203 = por %p201, %p202
    %p204 = scmp.le.s32.totalorder 1, %s13
    %p205 = scmp.lt.s32.totalorder %s13, 5
    %p206 = pnand %p204, %p205
    %p207 = pneg %p206
    // Predicated region
    $region9: #{forward.2} parent=5 // pred_check
      _
    $region10: #{forward.2} parent=5 // pred_check_branch
      %209 = sbr.rel (%p206) target = $region12
    $region11: #{forward.2} parent=5 // pred_region
      %s210 = ssub.s32 %s13, 1
      // Predicated region
      $region13: #{forward.2} parent=11 // pred_check
        %p211 = pneg %p86
      $region14: #{forward.2} parent=11 // pred_check_branch
        %213 = sbr.rel (%p211) target = $region16
      $region15: #{forward.2} parent=11 // pred_region
        _
      $region16: #{forward.2} parent=11 // pred_fallthru
        _
      // Predicated region
      $region17: #{forward.2} parent=11 // pred_check
        %p214 = pneg %p107
      $region18: #{forward.2} parent=11 // pred_check_branch
        %216 = sbr.rel (%p214) target = $region20
      $region19: #{forward.2} parent=11 // pred_region
        _
      $region20: #{forward.2} parent=11 // pred_fallthru
        _
      // Predicated region
      $region21: #{forward.2} parent=11 // pred_check
        %p217 = pneg %p128
      $region22: #{forward.2} parent=11 // pred_check_branch
        %219 = sbr.rel (%p217) target = $region24
      $region23: #{forward.2} parent=11 // pred_region
        _
      $region24: #{forward.2} parent=11 // pred_fallthru
        _
      // Predicated region
      $region25: #{forward.2} parent=11 // pred_check
        %p220 = pneg %p149
      $region26: #{forward.2} parent=11 // pred_check_branch
        %222 = sbr.rel (%p220) target = $region28
      $region27: #{forward.2} parent=11 // pred_region
        _
      $region28: #{forward.2} parent=11 // pred_fallthru
        _
      // Predicated region
      $region29: #{forward.2} parent=11 // pred_check
        %p223 = pneg %p170
      $region30: #{forward.2} parent=11 // pred_check_branch
        %225 = sbr.rel (%p223) target = $region32
      $region31: #{forward.2} parent=11 // pred_region
        _
      $region32: #{forward.2} parent=11 // pred_fallthru
        _
    $region12: #{forward.2} parent=5 // pred_fallthru
      _
    %p226 = scmp.lt.s32.totalorder %s13, 4
    // Predicated region
    $region33: #{forward.2} parent=5 // pred_check
      %p227 = pneg %p226
    $region34: #{forward.2} parent=5 // pred_check_branch
      %229 = sbr.rel (%p227) target = $region36
    $region35: #{forward.2} parent=5 // pred_region
      // Predicated region
      $region37: #{forward.2} parent=35 // pred_check
        %p230 = pneg %p33
      $region38: #{forward.2} parent=35 // pred_check_branch
        %232 = sbr.rel (%p230) target = $region40
      $region39: #{forward.2} parent=35 // pred_region
        %p233 = scmp.lt.s32.totalorder %s13, 3
        %s234 = scalar_select %p233, %s13, 3
        %s235 = smul.addr %s234, 4
        %s236 = smul.addr %s235, 4
        %s237 = scalar_lea.vmem %s0, %s236
      $region40: #{forward.2} parent=35 // pred_fallthru
        _
      // Predicated region
      $region41: #{forward.2} parent=35 // pred_check
        %p238 = pneg %p59
      $region42: #{forward.2} parent=35 // pred_check_branch
        %240 = sbr.rel (%p238) target = $region44
      $region43: #{forward.2} parent=35 // pred_region
        %p241 = scmp.lt.s32.totalorder %s13, 3
        %s242 = scalar_select %p241, %s13, 3
        %s243 = smul.addr %s242, 2
        %s244 = scalar_lea.vmem %s1, %s243
      $region44: #{forward.2} parent=35 // pred_fallthru
        _
    $region36: #{forward.2} parent=5 // pred_fallthru
      _
    %p245 = scmp.le.s32.totalorder 1, %s13
    %p246 = scmp.lt.s32.totalorder %s13, 5
    %p247 = pnand %p245, %p246
    %p248 = pneg %p247
    // Predicated region
    $region45: #{forward.2} parent=5 // pred_check
      _
    $region46: #{forward.2} parent=5 // pred_check_branch
      %250 = sbr.rel (%p247) target = $region48
    $region47: #{forward.2} parent=5 // pred_region
      %s251 = ssub.s32 %s13, 1
      %p252 = scmp.lt.s32.totalorder %s18, 3
      %s253 = scalar_select %p252, %s18, 3
      %s254 = smul.addr %s253, 4
      %s255 = smul.addr %s254, 4
      %s256 = scalar_lea.vmem %s0, %s255
      %p257 = pneg %p39
      %p258 = pneg %p36
      %p259 = scmp.lt.s32.totalorder %s18, 3
      %s260 = scalar_select %p259, %s18, 3
      %s261 = smul.addr %s260, 2
      %s262 = scalar_lea.vmem %s1, %s261
      %p263 = pneg %p65
      %p264 = pneg %p62
      %p265 = pneg %p86
      %p266 = pneg %p83
      %p267 = pneg %p107
      %p268 = pneg %p104
      %p269 = pneg %p128
      %p270 = pneg %p125
      %p271 = pneg %p149
      %p272 = pneg %p146
      %p273 = pneg %p170
      %p274 = pneg %p167
      %p275 = pneg %p196
      %p276 = pneg %p193
      %p277 = scmp.lt.s32.totalorder %s18, 3
      %s278 = scalar_select %p277, %s18, 3
      %s279 = smul.addr %s278, 4
      %s280 = scalar_lea.vmem %s7, %s279
      %p281 = scmp.lt.s32.totalorder %s18, 3
      %s282 = scalar_select %p281, %s18, 3
      %s283 = smul.addr %s282, 4
      %s284 = smul.addr %s283, 4
      %s285 = scalar_lea.vmem %s0, %s284
      %p286 = scmp.lt.s32.totalorder %s18, 3
      %s287 = scalar_select %p286, %s18, 3
      %s288 = smul.addr %s287, 2
      %s289 = scalar_lea.vmem %s1, %s288
      %p290 = scmp.lt.s32.totalorder %s18, 3
      %s291 = scalar_select %p290, %s18, 3
      %s292 = smul.addr %s291, 4
      %s293 = scalar_lea.vmem %s7, %s292
      %v295 = vld [vmem:[%s285] sm:$0xff]
      %v296 = vld [vmem:[%s285 + $0x8] sm:$0xff]
      %v297 = vld [vmem:[%s2] sm:$0xf]
      %v298 = vld [vmem:[%s2 + $0x4] sm:$0xf]
      %v299 = vld [vmem:[%s2 + $0x8] sm:$0xf]
      %v300 = vld [vmem:[%s2 + $0xc] sm:$0xf]
      %v301 = vld [vmem:[%s2 + $0x10] sm:$0xf]
      %v302 = vld [vmem:[%s2 + $0x14] sm:$0xf]
      %v303 = vld [vmem:[%s2 + $0x18] sm:$0xf]
      %v304 = vld [vmem:[%s2 + $0x1c] sm:$0xf]
      %v305 = vld [vmem:[%s2 + $0x20] sm:$0xf]
      %v306 = vld [vmem:[%s2 + $0x24] sm:$0xf]
      %v307 = vld [vmem:[%s2 + $0x28] sm:$0xf]
      %v308 = vld [vmem:[%s2 + $0x2c] sm:$0xf]
      %v309 = vld [vmem:[%s2 + $0x30] sm:$0xf]
      %v310 = vld [vmem:[%s2 + $0x34] sm:$0xf]
      %v311 = vld [vmem:[%s2 + $0x38] sm:$0xf]
      %v312 = vld [vmem:[%s2 + $0x3c] sm:$0xf]
      %v313 = vld [vmem:[%s2 + $0x40] sm:$0xf]
      %v314 = vld [vmem:[%s2 + $0x44] sm:$0xf]
      %v315 = vld [vmem:[%s2 + $0x48] sm:$0xf]
      %v316 = vld [vmem:[%s2 + $0x4c] sm:$0xf]
      %v317 = vld [vmem:[%s2 + $0x50] sm:$0xf]
      %v318 = vld [vmem:[%s2 + $0x54] sm:$0xf]
      %v319 = vld [vmem:[%s2 + $0x58] sm:$0xf]
      %v320 = vld [vmem:[%s2 + $0x5c] sm:$0xf]
      %v323 = vunpack.c.l.b16 %v295
      %v324 = vunpack.c.h.b16 %v295
      %v325 = vunpack.c.l.b16 %v296
      %v326 = vunpack.c.h.b16 %v296
      %v327 = vpack.c.b16 %v325, %v323
      %v328 = vpack.c.b16 %v326, %v324
      %v354 = vunpack.c.l.b16 %v297
      %v355 = vunpack.c.l.b16 %v298
      %v356 = vunpack.c.l.b16 %v299
      %v357 = vunpack.c.l.b16 %v300
      %v358 = vunpack.c.l.b16 %v301
      %v359 = vunpack.c.l.b16 %v302
      %v360 = vunpack.c.l.b16 %v303
      %v361 = vunpack.c.l.b16 %v304
      %v362 = vunpack.c.l.b16 %v305
      %v363 = vunpack.c.l.b16 %v306
      %v364 = vunpack.c.l.b16 %v307
      %v365 = vunpack.c.l.b16 %v308
      %v366 = vunpack.c.l.b16 %v309
      %v367 = vunpack.c.l.b16 %v310
      %v368 = vunpack.c.l.b16 %v311
      %v369 = vunpack.c.l.b16 %v312
      %v370 = vunpack.c.l.b16 %v313
      %v371 = vunpack.c.l.b16 %v314
      %v372 = vunpack.c.l.b16 %v315
      %v373 = vunpack.c.l.b16 %v316
      %v374 = vunpack.c.l.b16 %v317
      %v375 = vunpack.c.l.b16 %v318
      %v376 = vunpack.c.l.b16 %v319
      %v377 = vunpack.c.l.b16 %v320
      %v378 = vpack.c.b16 %v355, %v354
      %v379 = vpack.c.b16 %v357, %v356
      %v380 = vpack.c.b16 %v359, %v358
      %v381 = vpack.c.b16 %v361, %v360
      %v382 = vpack.c.b16 %v363, %v362
      %v383 = vpack.c.b16 %v365, %v364
      %v384 = vpack.c.b16 %v367, %v366
      %v385 = vpack.c.b16 %v369, %v368
      %v386 = vpack.c.b16 %v371, %v370
      %v387 = vpack.c.b16 %v373, %v372
      %v388 = vpack.c.b16 %v375, %v374
      %v389 = vpack.c.b16 %v377, %v376
      %vm402 = vcmask 523264
      %v404 = vsel %vm402, %v328, 0
      %406 = vmatprep.subr.bf16.mxu0 0
      %407 = vmatpush1.bf16.msra.mxu0 %v385
      %408 = vmatprep.subr.bf16.mxu0 0
      %409 = vmatpush1.bf16.msra.mxu0 %v384
      %410 = vmatprep.subr.bf16.mxu0 0
      %411 = vmatpush1.bf16.msra.mxu0 %v383
      %412 = vmatprep.subr.bf16.mxu0 0
      %413 = vmatpush1.bf16.msra.mxu0 %v382
      %414 = vmatprep.subr.bf16.mxu0 0
      %415 = vmatpush1.bf16.msra.mxu0 %v381
      %416 = vmatprep.subr.bf16.mxu0 0
      %417 = vmatpush1.bf16.msra.mxu0 %v380
      %418 = vmatprep.subr.bf16.mxu0 0
      %419 = vmatpush1.bf16.msra.mxu0 %v379
      %420 = vmatprep.subr.bf16.mxu0 0
      %421 = vmatpush1.bf16.msra.mxu0 %v378
      %422 = vmatprep.subr.bf16.mxu0 0
      %423 = vmatpush2.bf16.msra.mxu0 0
      %424 = vmatprep.subr.bf16.mxu0 0
      %425 = vmatpush2.bf16.msra.mxu0 0
      %426 = vmatprep.subr.bf16.mxu0 0
      %427 = vmatpush2.bf16.msra.mxu0 0
      %428 = vmatprep.subr.bf16.mxu0 0
      %429 = vmatpush2.bf16.msra.mxu0 0
      %430 = vmatprep.subr.bf16.mxu0 0
      %431 = vmatpush2.bf16.msra.mxu0 %v389
      %432 = vmatprep.subr.bf16.mxu0 0
      %433 = vmatpush2.bf16.msra.mxu0 %v388
      %434 = vmatprep.subr.bf16.mxu0 0
      %435 = vmatpush2.bf16.msra.mxu0 %v387
      %436 = vmatprep.subr.bf16.mxu0 0
      %437 = vmatpush2.bf16.msra.mxu0 %v386
      %438 = vmatprep.mubr.bf16.mxu0 %v404
      %439 = vmatmul.mubr.bf16.gmra.mxu0 %v327
      %v440 = vpop.f32.mrf.mxu0
      %v441 = vadd.f32 0.0, %v440
      %v442 = vpop.f32.mrf.mxu0
      %v443 = vpop.f32.mrf.mxu0
      %v444 = vadd.f32 0.0, %v443
      %v445 = vpop.f32.mrf.mxu0
      %446 = vdwg.mxu0
      %v447 = vmax.f32 %v441, 0.0
      %v448 = vmax.f32 %v444, 0.0
      %v449 = vpack.c.bf16 %v448, %v447
      %v450 = vld [vmem:[%s3] sm:$0xf]
      %v451 = vld [vmem:[%s3 + $0x4] sm:$0xf]
      %v452 = vld [vmem:[%s3 + $0x8] sm:$0xf]
      %v453 = vld [vmem:[%s3 + $0xc] sm:$0xf]
      %v454 = vld [vmem:[%s3 + $0x10] sm:$0xf]
      %v455 = vld [vmem:[%s3 + $0x14] sm:$0xf]
      %v456 = vld [vmem:[%s3 + $0x18] sm:$0xf]
      %v457 = vld [vmem:[%s3 + $0x1c] sm:$0xf]
      %v458 = vld [vmem:[%s4] sm:$0x1]
      %v460 = vlaneseq
      %v461 = vshrl.u32 %v460, 7
      %v462 = vsub.s32 0, %v461
      %v463 = vrot.slane %v458, %v462
      %v473 = vunpack.c.l.b16 %v450
      %v474 = vunpack.c.l.b16 %v451
      %v475 = vunpack.c.l.b16 %v452
      %v476 = vunpack.c.l.b16 %v453
      %v477 = vunpack.c.l.b16 %v454
      %v478 = vunpack.c.l.b16 %v455
      %v479 = vunpack.c.l.b16 %v456
      %v480 = vunpack.c.l.b16 %v457
      %v481 = vpack.c.b16 %v474, %v473
      %v482 = vpack.c.b16 %v476, %v475
      %v483 = vpack.c.b16 %v478, %v477
      %v484 = vpack.c.b16 %v480, %v479
      %v490 = vsel %vm402, %v449, 0
      %492 = vmatprep.subr.bf16.mxu0 0
      %493 = vmatpush1.bf16.msra.mxu0 0
      %494 = vmatprep.subr.bf16.mxu0 0
      %495 = vmatpush1.bf16.msra.mxu0 0
      %496 = vmatprep.subr.bf16.mxu0 0
      %497 = vmatpush1.bf16.msra.mxu0 0
      %498 = vmatprep.subr.bf16.mxu0 0
      %499 = vmatpush1.bf16.msra.mxu0 0
      %500 = vmatprep.subr.bf16.mxu0 0
      %501 = vmatpush1.bf16.msra.mxu0 %v484
      %502 = vmatprep.subr.bf16.mxu0 0
      %503 = vmatpush1.bf16.msra.mxu0 %v483
      %504 = vmatprep.subr.bf16.mxu0 0
      %505 = vmatpush1.bf16.msra.mxu0 %v482
      %506 = vmatprep.subr.bf16.mxu0 0
      %507 = vmatpush1.bf16.msra.mxu0 %v481
      %508 = vmatprep.subr.bf16.mxu0 0
      %509 = vmatpush2.bf16.msra.mxu0 0
      %510 = vmatprep.subr.bf16.mxu0 0
      %511 = vmatpush2.bf16.msra.mxu0 0
      %512 = vmatprep.subr.bf16.mxu0 0
      %513 = vmatpush2.bf16.msra.mxu0 0
      %514 = vmatprep.subr.bf16.mxu0 0
      %515 = vmatpush2.bf16.msra.mxu0 0
      %516 = vmatprep.subr.bf16.mxu0 0
      %517 = vmatpush2.bf16.msra.mxu0 0
      %518 = vmatprep.subr.bf16.mxu0 0
      %519 = vmatpush2.bf16.msra.mxu0 0
      %520 = vmatprep.subr.bf16.mxu0 0
      %521 = vmatpush2.bf16.msra.mxu0 0
      %522 = vmatprep.subr.bf16.mxu0 0
      %523 = vmatpush2.bf16.msra.mxu0 0
      %524 = vmatprep.mubr.bf16.mxu0 0
      %525 = vmatmul.mubr.bf16.gmra.mxu0 %v490
      %v526 = vpop.f32.mrf.mxu0
      %v527 = vadd.f32 %v463, %v526
      %v528 = vpop.f32.mrf.mxu0
      %v529 = vpop.f32.mrf.mxu0
      %v530 = vadd.f32 %v463, %v529
      %v531 = vpop.f32.mrf.mxu0
      %532 = vdwg.mxu0
      %vm533 = vcmask 261120
      %v534 = vsel %vm533, %v527, 0.0
      %v535 = vsel %vm533, %v530, 0.0
      %v536 = vadd.f32 %v534, %v535
      %v537 = vrot.slane %v536, 4
      %v538 = vadd.f32 %v536, %v537
      %v539 = vrot.slane %v538, 2
      %v540 = vadd.f32 %v538, %v539
      %v541 = vrot.slane %v540, 1
      %v542 = vadd.f32 %v540, %v541
      %v543 = vrcp.pop 16.0
      %v544 = vmul.f32 %v542, %v543
      %v545 = vld [vmem:[%s289] sm:$0x3]
      %v546 = vpack.c.bf16 %v530, %v527
      %vm547 = vcmask 130048
      %v549 = vsel %vm547, %v545, 0
      %551 = vmatprep.subr.bf16.mxu0 0
      %552 = vmatpush1.bf16.msra.mxu0 0
      %553 = vmatprep.subr.bf16.mxu0 0
      %554 = vmatpush1.bf16.msra.mxu0 0
      %555 = vmatprep.subr.bf16.mxu0 0
      %556 = vmatpush1.bf16.msra.mxu0 0
      %557 = vmatprep.subr.bf16.mxu0 0
      %558 = vmatpush1.bf16.msra.mxu0 0
      %559 = vmatprep.subr.bf16.mxu0 0
      %560 = vmatpush1.bf16.msra.mxu0 0
      %561 = vmatprep.subr.bf16.mxu0 0
      %562 = vmatpush1.bf16.msra.mxu0 0
      %563 = vmatprep.subr.bf16.mxu0 0
      %564 = vmatpush1.bf16.msra.mxu0 0
      %565 = vmatprep.subr.bf16.mxu0 0
      %566 = vmatpush1.bf16.msra.mxu0 %v546
      %567 = vmatprep.subr.bf16.mxu0 0
      %568 = vmatpush2.bf16.msra.mxu0 0
      %569 = vmatprep.subr.bf16.mxu0 0
      %570 = vmatpush2.bf16.msra.mxu0 0
      %571 = vmatprep.subr.bf16.mxu0 0
      %572 = vmatpush2.bf16.msra.mxu0 0
      %573 = vmatprep.subr.bf16.mxu0 0
      %574 = vmatpush2.bf16.msra.mxu0 0
      %575 = vmatprep.subr.bf16.mxu0 0
      %576 = vmatpush2.bf16.msra.mxu0 0
      %577 = vmatprep.subr.bf16.mxu0 0
      %578 = vmatpush2.bf16.msra.mxu0 0
      %579 = vmatprep.subr.bf16.mxu0 0
      %580 = vmatpush2.bf16.msra.mxu0 0
      %581 = vmatprep.subr.bf16.mxu0 0
      %582 = vmatpush2.bf16.msra.mxu0 0
      %583 = vmatprep.mubr.bf16.mxu0 0
      %584 = vmatmul.mubr.bf16.gmra.mxu0 %v549
      %v585 = vpop.f32.mrf.mxu0
      %v586 = vadd.f32 0.0, %v585
      %v587 = vpop.f32.mrf.mxu0
      %v588 = vpop.f32.mrf.mxu0
      %v589 = vpop.f32.mrf.mxu0
      %590 = vdwg.mxu0
      %v591 = vpack.c.bf16 %v586, %v586
      %v592 = vld [vmem:[%s5] sm:$0xf]
      %v593 = vld [vmem:[%s5 + $0x4] sm:$0xf]
      %v594 = vld [vmem:[%s5 + $0x8] sm:$0xf]
      %v595 = vld [vmem:[%s5 + $0xc] sm:$0xf]
      %v596 = vld [vmem:[%s6] sm:$0x1]
      %v598 = vlaneseq
      %v599 = vshrl.u32 %v598, 7
      %v600 = vsub.s32 0, %v599
      %v601 = vrot.slane %v596, %v600
      %v607 = vunpack.c.l.b16 %v592
      %v608 = vunpack.c.l.b16 %v593
      %v609 = vunpack.c.l.b16 %v594
      %v610 = vunpack.c.l.b16 %v595
      %v611 = vpack.c.b16 %v608, %v607
      %v612 = vpack.c.b16 %v610, %v609
      %v616 = vsel %vm533, %v591, 0
      %618 = vmatprep.subr.bf16.mxu0 0
      %619 = vmatpush1.bf16.msra.mxu0 0
      %620 = vmatprep.subr.bf16.mxu0 0
      %621 = vmatpush1.bf16.msra.mxu0 0
      %622 = vmatprep.subr.bf16.mxu0 0
      %623 = vmatpush1.bf16.msra.mxu0 0
      %624 = vmatprep.subr.bf16.mxu0 0
      %625 = vmatpush1.bf16.msra.mxu0 0
      %626 = vmatprep.subr.bf16.mxu0 0
      %627 = vmatpush1.bf16.msra.mxu0 0
      %628 = vmatprep.subr.bf16.mxu0 0
      %629 = vmatpush1.bf16.msra.mxu0 0
      %630 = vmatprep.subr.bf16.mxu0 0
      %631 = vmatpush1.bf16.msra.mxu0 %v612
      %632 = vmatprep.subr.bf16.mxu0 0
      %633 = vmatpush1.bf16.msra.mxu0 %v611
      %634 = vmatprep.subr.bf16.mxu0 0
      %635 = vmatpush2.bf16.msra.mxu0 0
      %636 = vmatprep.subr.bf16.mxu0 0
      %637 = vmatpush2.bf16.msra.mxu0 0
      %638 = vmatprep.subr.bf16.mxu0 0
      %639 = vmatpush2.bf16.msra.mxu0 0
      %640 = vmatprep.subr.bf16.mxu0 0
      %641 = vmatpush2.bf16.msra.mxu0 0
      %642 = vmatprep.subr.bf16.mxu0 0
      %643 = vmatpush2.bf16.msra.mxu0 0
      %644 = vmatprep.subr.bf16.mxu0 0
      %645 = vmatpush2.bf16.msra.mxu0 0
      %646 = vmatprep.subr.bf16.mxu0 0
      %647 = vmatpush2.bf16.msra.mxu0 0
      %648 = vmatprep.subr.bf16.mxu0 0
      %649 = vmatpush2.bf16.msra.mxu0 0
      %650 = vmatprep.mubr.bf16.mxu0 0
      %651 = vmatmul.mubr.bf16.gmra.mxu0 %v616
      %v652 = vpop.f32.mrf.mxu0
      %v653 = vadd.f32 %v601, %v652
      %v654 = vpop.f32.mrf.mxu0
      %v655 = vpop.f32.mrf.mxu0
      %v656 = vpop.f32.mrf.mxu0
      %657 = vdwg.mxu0
      %vm658 = vcmask 253952
      %659 = vst.msk [vmem:[%s293] sm:$0x1] %vm658, %v544
      %vm660 = vcmask 256000
      %661 = vst.msk [vmem:[%s293 + $0x1] sm:$0x7] %vm660, %v653
      %p662 = scmp.lt.s32.totalorder %s18, 3
      %s663 = scalar_select %p662, %s18, 3
      %s664 = smul.addr %s663, 4
      %s665 = scalar_lea.vmem %s7, %s664
      // Predicated region
      $region49: #{forward.2} parent=47 // pred_check
        %p666 = pneg %p193
      $region50: #{forward.2} parent=47 // pred_check_branch
        %668 = sbr.rel (%p666) target = $region52
      $region51: #{forward.2} parent=47 // pred_region
        _
      $region52: #{forward.2} parent=47 // pred_fallthru
        _
    $region48: #{forward.2} parent=5 // pred_fallthru
      _
    %p669 = scmp.le.s32.totalorder 2, %s13
    // Predicated region
    $region53: #{forward.2} parent=5 // pred_check
      %p670 = pneg %p669
    $region54: #{forward.2} parent=5 // pred_check_branch
      %672 = sbr.rel (%p670) target = $region56
    $region55: #{forward.2} parent=5 // pred_region
      %s673 = ssub.s32 %s13, 2
      // Predicated region
      $region57: #{forward.2} parent=55 // pred_check
        %p674 = pneg %p199
      $region58: #{forward.2} parent=55 // pred_check_branch
        %676 = sbr.rel (%p674) target = $region60
      $region59: #{forward.2} parent=55 // pred_region
        %p677 = scmp.lt.s32.totalorder %s19, 3
        %s678 = scalar_select %p677, %s19, 3
        %s679 = smul.addr %s678, 4
        %s680 = scalar_lea.vmem %s7, %s679
      $region60: #{forward.2} parent=55 // pred_fallthru
        _
    $region56: #{forward.2} parent=5 // pred_fallthru
      _
  $region6: #{forward.2} parent=0 // loop_footer
    %s17 = sadd.s32 1, %s13
  $region7: #{forward.2} parent=0 // loop_footer_branch
    %12 = sbr.rel target = $region3
  $region8: #{forward.2} parent=0 // loop_exit
    _

// kernel: forward.3
$region0: #{forward.3}
  #allocation0 [shape = 'u32[]', space=smem, size = 0x4, offset = 0x4, fixed_abs, tag = 'smem constant byte address 0x4 - core index']
  #allocation1 [shape = 'u32[144,128]{1,0:T(1,128)}', space=vmem, size = 0x12000, scoped, tag = 'internal scratch']
  #allocation2 [shape = 'f32[10,32]{1,0:T(8,128)}', space=vmem, size = 0x2000, scoped, tag = 'scratch operand']
  #allocation3 [shape = 'f32[15,32]{1,0:T(8,128)}', space=vmem, size = 0x2000, scoped, tag = 'scratch operand']
  #allocation4 [shape = 'f32[15,32]{1,0:T(8,128)}', space=vmem, size = 0x2000, scoped, tag = 'scratch operand']
  #allocation5 [shape = 'f32[1,1]{1,0:T(1,128)S(1)}', space=vmem, size = 0x200, scoped, tag = 'scoped memory for forward.3']
  %s0 = inlined_call_operand.vmem [shape: f32[2,8,32], index: 0, kind: input, shape index: {}]
  %s1 = inlined_call_operand.vmem [shape: bf16[4,3,32,32], index: 1, kind: input, shape index: {}]
  %s2 = inlined_call_operand.vmem [shape: f32[4,1,32], index: 2, kind: input, shape index: {}]
  %s3 = inlined_call_operand.vmem [shape: bf16[8,32,32], index: 3, kind: input, shape index: {}]
  %s4 = inlined_call_operand.vmem [shape: bf16[8,32,32], index: 4, kind: input, shape index: {}]
  %s5 = inlined_call_operand.vmem [shape: bf16[64,32], index: 5, kind: input, shape index: {}]
  %s6 = inlined_call_operand.vmem [shape: f32[1,32], index: 6, kind: input, shape index: {}]
  %s7 = inlined_call_operand.vmem [shape: bf16[32,64], index: 7, kind: input, shape index: {}]
  %s8 = inlined_call_operand.vmem [shape: f32[1,64], index: 8, kind: input, shape index: {}]
  %s9 = inlined_call_operand.vmem [shape: f32[1,64], index: 9, kind: input, shape index: {}]
  %s10 = inlined_call_operand.vmem [shape: f32[1,64], index: 10, kind: input, shape index: {}]
  %s11 = inlined_call_operand.vmem [shape: f32[1,64], index: 11, kind: input, shape index: {}]
  %s12 = inlined_call_operand.<no memory space> [shape: f32[1,1], index: 12, kind: input, shape index: {}]
  %s13 = inlined_call_operand.vmem [shape: f32[2,8,1], index: 13, kind: output, shape index: {}]
  %s14 = sld [smem:[#allocation0]]
  $region85: #{forward.3} parent=0
    _
  %s16 = ssub.s32 1, %s14
  %s17 = scalar_select 0, %s16, %s14
  %v18 = vstv %s12
  %19 = vst [vmem:[#allocation5] sm:$0x1] %v18
  loop: start=0, step=1, limit=4
  $region2: #{forward.3} parent=0 // loop_pre_header
    _
  $region3: #{forward.3} parent=0 // loop_header
    %s21 = sphi 0, %s25
    %p22 = scmp.ge.s32.totalorder %s21, 4
    %s31 = sphi 0, %s33
    %s34 = sphi 0, %s31
    %s35 = sphi 0, %s34
    %s51 = sphi 0, %s35
    %s55 = sphi 0, %s55
    %s57 = sphi 0, %s55
    %s58 = sphi 0, %s57
    %s72 = sphi 0, %s58
    %s76 = sphi 0, %s76
    %s78 = sphi 0, %s76
    %s79 = sphi 0, %s78
    %s93 = sphi 0, %s79
    %s97 = sphi 0, %s97
    %s99 = sphi 0, %s97
    %s100 = sphi 0, %s99
    %s114 = sphi 0, %s100
    %s118 = sphi 0, %s118
    %s120 = sphi 0, %s118
    %s121 = sphi 0, %s120
    %s135 = sphi 0, %s121
    %s139 = sphi 0, %s139
    %s141 = sphi 0, %s139
    %s142 = sphi 0, %s141
    %s156 = sphi 0, %s142
    %s160 = sphi 0, %s160
    %s162 = sphi 0, %s160
    %s163 = sphi 0, %s162
    %s177 = sphi 0, %s163
    %s181 = sphi 0, %s181
    %s183 = sphi 0, %s181
    %s184 = sphi 0, %s183
    %s198 = sphi 0, %s184
    %s202 = sphi 0, %s202
    %s204 = sphi 0, %s202
    %s205 = sphi 0, %s204
    %s219 = sphi 0, %s205
    %s223 = sphi 0, %s223
    %s225 = sphi 0, %s223
    %s226 = sphi 0, %s225
    %s240 = sphi 0, %s226
    %s244 = sphi 0, %s244
    %s246 = sphi 0, %s244
    %s247 = sphi 0, %s246
    %s261 = sphi 0, %s247
    %s265 = sphi 0, %s265
    %s267 = sphi 0, %s265
    %s268 = sphi 0, %s267
    %s282 = sphi 0, %s268
    %s286 = sphi 0, %s286
    %s288 = sphi 0, %s286
    %s289 = sphi 0, %s288
    %s303 = sphi 0, %s289
    %s309 = sphi 0, %s311
    %s312 = sphi 0, %s309
    %s313 = sphi 0, %s312
    %s329 = sphi 0, %s313
  $region4: #{forward.3} parent=0 // loop_header_branch
    %24 = sbr.rel (%p22) target = $region8
  $region5: #{forward.3} parent=0 // loop_body
    %s26 = ssub.s32 %s21, 1
    %s27 = ssub.s32 %s21, 2
    %s28 = sadd.s32 %s21, 1
    %s29 = ssub.s32 %s21, %s28
    %p30 = scmp.eq.s32.totalorder %s29, 0
    %s32 = sadd.s32 %s31, 1
    %s33 = scalar_select %p30, %s31, %s32
    %p36 = pneg %p30
    %p37 = scmp.eq.s32.totalorder %s21, 1
    %p38 = por %p36, %p37
    %p39 = scmp.ne.s32.totalorder %s31, %s34
    %p40 = scmp.eq.s32.totalorder %s21, 0
    %p41 = por %p39, %p40
    %p42 = scmp.ne.s32.totalorder %s31, %s34
    %p43 = scmp.eq.s32.totalorder %s26, 1
    %p44 = por %p42, %p43
    %p45 = scmp.ne.s32.totalorder %s34, %s35
    %p46 = scmp.eq.s32.totalorder %s26, 0
    %p47 = por %p45, %p46
    %p48 = scmp.ne.s32.totalorder %s34, %s35
    %p49 = scmp.eq.s32.totalorder %s27, 1
    %p50 = por %p48, %p49
    %p52 = scmp.ne.s32.totalorder %s35, %s51
    %p53 = scmp.eq.s32.totalorder %s27, 0
    %p54 = por %p52, %p53
    %s56 = sadd.s32 %s55, 1
    %p59 = scmp.eq.s32.totalorder %s21, 1
    %p60 = scmp.ne.s32.totalorder %s55, %s57
    %p61 = scmp.eq.s32.totalorder %s21, 0
    %p62 = por %p60, %p61
    %p63 = scmp.ne.s32.totalorder %s55, %s57
    %p64 = scmp.eq.s32.totalorder %s26, 1
    %p65 = por %p63, %p64
    %p66 = scmp.ne.s32.totalorder %s57, %s58
    %p67 = scmp.eq.s32.totalorder %s26, 0
    %p68 = por %p66, %p67
    %p69 = scmp.ne.s32.totalorder %s57, %s58
    %p70 = scmp.eq.s32.totalorder %s27, 1
    %p71 = por %p69, %p70
    %p73 = scmp.ne.s32.totalorder %s58, %s72
    %p74 = scmp.eq.s32.totalorder %s27, 0
    %p75 = por %p73, %p74
    %s77 = sadd.s32 %s76, 1
    %p80 = scmp.eq.s32.totalorder %s21, 1
    %p81 = scmp.ne.s32.totalorder %s76, %s78
    %p82 = scmp.eq.s32.totalorder %s21, 0
    %p83 = por %p81, %p82
    %p84 = scmp.ne.s32.totalorder %s76, %s78
    %p85 = scmp.eq.s32.totalorder %s26, 1
    %p86 = por %p84, %p85
    %p87 = scmp.ne.s32.totalorder %s78, %s79
    %p88 = scmp.eq.s32.totalorder %s26, 0
    %p89 = por %p87, %p88
    %p90 = scmp.ne.s32.totalorder %s78, %s79
    %p91 = scmp.eq.s32.totalorder %s27, 1
    %p92 = por %p90, %p91
    %p94 = scmp.ne.s32.totalorder %s79, %s93
    %p95 = scmp.eq.s32.totalorder %s27, 0
    %p96 = por %p94, %p95
    %s98 = sadd.s32 %s97, 1
    %p101 = scmp.eq.s32.totalorder %s21, 1
    %p102 = scmp.ne.s32.totalorder %s97, %s99
    %p103 = scmp.eq.s32.totalorder %s21, 0
    %p104 = por %p102, %p103
    %p105 = scmp.ne.s32.totalorder %s97, %s99
    %p106 = scmp.eq.s32.totalorder %s26, 1
    %p107 = por %p105, %p106
    %p108 = scmp.ne.s32.totalorder %s99, %s100
    %p109 = scmp.eq.s32.totalorder %s26, 0
    %p110 = por %p108, %p109
    %p111 = scmp.ne.s32.totalorder %s99, %s100
    %p112 = scmp.eq.s32.totalorder %s27, 1
    %p113 = por %p111, %p112
    %p115 = scmp.ne.s32.totalorder %s100, %s114
    %p116 = scmp.eq.s32.totalorder %s27, 0
    %p117 = por %p115, %p116
    %s119 = sadd.s32 %s118, 1
    %p122 = scmp.eq.s32.totalorder %s21, 1
    %p123 = scmp.ne.s32.totalorder %s118, %s120
    %p124 = scmp.eq.s32.totalorder %s21, 0
    %p125 = por %p123, %p124
    %p126 = scmp.ne.s32.totalorder %s118, %s120
    %p127 = scmp.eq.s32.totalorder %s26, 1
    %p128 = por %p126, %p127
    %p129 = scmp.ne.s32.totalorder %s120, %s121
    %p130 = scmp.eq.s32.totalorder %s26, 0
    %p131 = por %p129, %p130
    %p132 = scmp.ne.s32.totalorder %s120, %s121
    %p133 = scmp.eq.s32.totalorder %s27, 1
    %p134 = por %p132, %p133
    %p136 = scmp.ne.s32.totalorder %s121, %s135
    %p137 = scmp.eq.s32.totalorder %s27, 0
    %p138 = por %p136, %p137
    %s140 = sadd.s32 %s139, 1
    %p143 = scmp.eq.s32.totalorder %s21, 1
    %p144 = scmp.ne.s32.totalorder %s139, %s141
    %p145 = scmp.eq.s32.totalorder %s21, 0
    %p146 = por %p144, %p145
    %p147 = scmp.ne.s32.totalorder %s139, %s141
    %p148 = scmp.eq.s32.totalorder %s26, 1
    %p149 = por %p147, %p148
    %p150 = scmp.ne.s32.totalorder %s141, %s142
    %p151 = scmp.eq.s32.totalorder %s26, 0
    %p152 = por %p150, %p151
    %p153 = scmp.ne.s32.totalorder %s141, %s142
    %p154 = scmp.eq.s32.totalorder %s27, 1
    %p155 = por %p153, %p154
    %p157 = scmp.ne.s32.totalorder %s142, %s156
    %p158 = scmp.eq.s32.totalorder %s27, 0
    %p159 = por %p157, %p158
    %s161 = sadd.s32 %s160, 1
    %p164 = scmp.eq.s32.totalorder %s21, 1
    %p165 = scmp.ne.s32.totalorder %s160, %s162
    %p166 = scmp.eq.s32.totalorder %s21, 0
    %p167 = por %p165, %p166
    %p168 = scmp.ne.s32.totalorder %s160, %s162
    %p169 = scmp.eq.s32.totalorder %s26, 1
    %p170 = por %p168, %p169
    %p171 = scmp.ne.s32.totalorder %s162, %s163
    %p172 = scmp.eq.s32.totalorder %s26, 0
    %p173 = por %p171, %p172
    %p174 = scmp.ne.s32.totalorder %s162, %s163
    %p175 = scmp.eq.s32.totalorder %s27, 1
    %p176 = por %p174, %p175
    %p178 = scmp.ne.s32.totalorder %s163, %s177
    %p179 = scmp.eq.s32.totalorder %s27, 0
    %p180 = por %p178, %p179
    %s182 = sadd.s32 %s181, 1
    %p185 = scmp.eq.s32.totalorder %s21, 1
    %p186 = scmp.ne.s32.totalorder %s181, %s183
    %p187 = scmp.eq.s32.totalorder %s21, 0
    %p188 = por %p186, %p187
    %p189 = scmp.ne.s32.totalorder %s181, %s183
    %p190 = scmp.eq.s32.totalorder %s26, 1
    %p191 = por %p189, %p190
    %p192 = scmp.ne.s32.totalorder %s183, %s184
    %p193 = scmp.eq.s32.totalorder %s26, 0
    %p194 = por %p192, %p193
    %p195 = scmp.ne.s32.totalorder %s183, %s184
    %p196 = scmp.eq.s32.totalorder %s27, 1
    %p197 = por %p195, %p196
    %p199 = scmp.ne.s32.totalorder %s184, %s198
    %p200 = scmp.eq.s32.totalorder %s27, 0
    %p201 = por %p199, %p200
    %s203 = sadd.s32 %s202, 1
    %p206 = scmp.eq.s32.totalorder %s21, 1
    %p207 = scmp.ne.s32.totalorder %s202, %s204
    %p208 = scmp.eq.s32.totalorder %s21, 0
    %p209 = por %p207, %p208
    %p210 = scmp.ne.s32.totalorder %s202, %s204
    %p211 = scmp.eq.s32.totalorder %s26, 1
    %p212 = por %p210, %p211
    %p213 = scmp.ne.s32.totalorder %s204, %s205
    %p214 = scmp.eq.s32.totalorder %s26, 0
    %p215 = por %p213, %p214
    %p216 = scmp.ne.s32.totalorder %s204, %s205
    %p217 = scmp.eq.s32.totalorder %s27, 1
    %p218 = por %p216, %p217
    %p220 = scmp.ne.s32.totalorder %s205, %s219
    %p221 = scmp.eq.s32.totalorder %s27, 0
    %p222 = por %p220, %p221
    %s224 = sadd.s32 %s223, 1
    %p227 = scmp.eq.s32.totalorder %s21, 1
    %p228 = scmp.ne.s32.totalorder %s223, %s225
    %p229 = scmp.eq.s32.totalorder %s21, 0
    %p230 = por %p228, %p229
    %p231 = scmp.ne.s32.totalorder %s223, %s225
    %p232 = scmp.eq.s32.totalorder %s26, 1
    %p233 = por %p231, %p232
    %p234 = scmp.ne.s32.totalorder %s225, %s226
    %p235 = scmp.eq.s32.totalorder %s26, 0
    %p236 = por %p234, %p235
    %p237 = scmp.ne.s32.totalorder %s225, %s226
    %p238 = scmp.eq.s32.totalorder %s27, 1
    %p239 = por %p237, %p238
    %p241 = scmp.ne.s32.totalorder %s226, %s240
    %p242 = scmp.eq.s32.totalorder %s27, 0
    %p243 = por %p241, %p242
    %s245 = sadd.s32 %s244, 1
    %p248 = scmp.eq.s32.totalorder %s21, 1
    %p249 = scmp.ne.s32.totalorder %s244, %s246
    %p250 = scmp.eq.s32.totalorder %s21, 0
    %p251 = por %p249, %p250
    %p252 = scmp.ne.s32.totalorder %s244, %s246
    %p253 = scmp.eq.s32.totalorder %s26, 1
    %p254 = por %p252, %p253
    %p255 = scmp.ne.s32.totalorder %s246, %s247
    %p256 = scmp.eq.s32.totalorder %s26, 0
    %p257 = por %p255, %p256
    %p258 = scmp.ne.s32.totalorder %s246, %s247
    %p259 = scmp.eq.s32.totalorder %s27, 1
    %p260 = por %p258, %p259
    %p262 = scmp.ne.s32.totalorder %s247, %s261
    %p263 = scmp.eq.s32.totalorder %s27, 0
    %p264 = por %p262, %p263
    %s266 = sadd.s32 %s265, 1
    %p269 = scmp.eq.s32.totalorder %s21, 1
    %p270 = scmp.ne.s32.totalorder %s265, %s267
    %p271 = scmp.eq.s32.totalorder %s21, 0
    %p272 = por %p270, %p271
    %p273 = scmp.ne.s32.totalorder %s265, %s267
    %p274 = scmp.eq.s32.totalorder %s26, 1
    %p275 = por %p273, %p274
    %p276 = scmp.ne.s32.totalorder %s267, %s268
    %p277 = scmp.eq.s32.totalorder %s26, 0
    %p278 = por %p276, %p277
    %p279 = scmp.ne.s32.totalorder %s267, %s268
    %p280 = scmp.eq.s32.totalorder %s27, 1
    %p281 = por %p279, %p280
    %p283 = scmp.ne.s32.totalorder %s268, %s282
    %p284 = scmp.eq.s32.totalorder %s27, 0
    %p285 = por %p283, %p284
    %s287 = sadd.s32 %s286, 1
    %p290 = scmp.eq.s32.totalorder %s21, 1
    %p291 = scmp.ne.s32.totalorder %s286, %s288
    %p292 = scmp.eq.s32.totalorder %s21, 0
    %p293 = por %p291, %p292
    %p294 = scmp.ne.s32.totalorder %s286, %s288
    %p295 = scmp.eq.s32.totalorder %s26, 1
    %p296 = por %p294, %p295
    %p297 = scmp.ne.s32.totalorder %s288, %s289
    %p298 = scmp.eq.s32.totalorder %s26, 0
    %p299 = por %p297, %p298
    %p300 = scmp.ne.s32.totalorder %s288, %s289
    %p301 = scmp.eq.s32.totalorder %s27, 1
    %p302 = por %p300, %p301
    %p304 = scmp.ne.s32.totalorder %s289, %s303
    %p305 = scmp.eq.s32.totalorder %s27, 0
    %p306 = por %p304, %p305
    %s307 = ssub.s32 %s21, %s28
    %p308 = scmp.eq.s32.totalorder %s307, 0
    %s310 = sadd.s32 %s309, 1
    %s311 = scalar_select %p308, %s309, %s310
    %p314 = pneg %p308
    %p315 = scmp.eq.s32.totalorder %s21, 1
    %p316 = por %p314, %p315
    %p317 = scmp.ne.s32.totalorder %s309, %s312
    %p318 = scmp.eq.s32.totalorder %s21, 0
    %p319 = por %p317, %p318
    %p320 = scmp.ne.s32.totalorder %s309, %s312
    %p321 = scmp.eq.s32.totalorder %s26, 1
    %p322 = por %p320, %p321
    %p323 = scmp.ne.s32.totalorder %s312, %s313
    %p324 = scmp.eq.s32.totalorder %s26, 0
    %p325 = por %p323, %p324
    %p326 = scmp.ne.s32.totalorder %s312, %s313
    %p327 = scmp.eq.s32.totalorder %s27, 1
    %p328 = por %p326, %p327
    %p330 = scmp.ne.s32.totalorder %s313, %s329
    %p331 = scmp.eq.s32.totalorder %s27, 0
    %p332 = por %p330, %p331
    %p333 = scmp.le.s32.totalorder 1, %s21
    %p334 = scmp.lt.s32.totalorder %s21, 3
    %p335 = pnand %p333, %p334
    %p336 = pneg %p335
    // Predicated region
    $region9: #{forward.3} parent=5 // pred_check
      _
    $region10: #{forward.3} parent=5 // pred_check_branch
      %338 = sbr.rel (%p335) target = $region12
    $region11: #{forward.3} parent=5 // pred_region
      %s339 = ssub.s32 %s21, 1
      // Predicated region
      $region13: #{forward.3} parent=11 // pred_check
        %p340 = pneg %p68
      $region14: #{forward.3} parent=11 // pred_check_branch
        %342 = sbr.rel (%p340) target = $region16
      $region15: #{forward.3} parent=11 // pred_region
        _
      $region16: #{forward.3} parent=11 // pred_fallthru
        _
      // Predicated region
      $region17: #{forward.3} parent=11 // pred_check
        %p343 = pneg %p89
      $region18: #{forward.3} parent=11 // pred_check_branch
        %345 = sbr.rel (%p343) target = $region20
      $region19: #{forward.3} parent=11 // pred_region
        _
      $region20: #{forward.3} parent=11 // pred_fallthru
        _
      // Predicated region
      $region21: #{forward.3} parent=11 // pred_check
        %p346 = pneg %p110
      $region22: #{forward.3} parent=11 // pred_check_branch
        %348 = sbr.rel (%p346) target = $region24
      $region23: #{forward.3} parent=11 // pred_region
        _
      $region24: #{forward.3} parent=11 // pred_fallthru
        _
      // Predicated region
      $region25: #{forward.3} parent=11 // pred_check
        %p349 = pneg %p131
      $region26: #{forward.3} parent=11 // pred_check_branch
        %351 = sbr.rel (%p349) target = $region28
      $region27: #{forward.3} parent=11 // pred_region
        _
      $region28: #{forward.3} parent=11 // pred_fallthru
        _
      // Predicated region
      $region29: #{forward.3} parent=11 // pred_check
        %p352 = pneg %p152
      $region30: #{forward.3} parent=11 // pred_check_branch
        %354 = sbr.rel (%p352) target = $region32
      $region31: #{forward.3} parent=11 // pred_region
        _
      $region32: #{forward.3} parent=11 // pred_fallthru
        _
      // Predicated region
      $region33: #{forward.3} parent=11 // pred_check
        %p355 = pneg %p173
      $region34: #{forward.3} parent=11 // pred_check_branch
        %357 = sbr.rel (%p355) target = $region36
      $region35: #{forward.3} parent=11 // pred_region
        _
      $region36: #{forward.3} parent=11 // pred_fallthru
        _
      // Predicated region
      $region37: #{forward.3} parent=11 // pred_check
        %p358 = pneg %p194
      $region38: #{forward.3} parent=11 // pred_check_branch
        %360 = sbr.rel (%p358) target = $region40
      $region39: #{forward.3} parent=11 // pred_region
        _
      $region40: #{forward.3} parent=11 // pred_fallthru
        _
      // Predicated region
      $region41: #{forward.3} parent=11 // pred_check
        %p361 = pneg %p215
      $region42: #{forward.3} parent=11 // pred_check_branch
        %363 = sbr.rel (%p361) target = $region44
      $region43: #{forward.3} parent=11 // pred_region
        _
      $region44: #{forward.3} parent=11 // pred_fallthru
        _
      // Predicated region
      $region45: #{forward.3} parent=11 // pred_check
        %p364 = pneg %p236
      $region46: #{forward.3} parent=11 // pred_check_branch
        %366 = sbr.rel (%p364) target = $region48
      $region47: #{forward.3} parent=11 // pred_region
        _
      $region48: #{forward.3} parent=11 // pred_fallthru
        _
      // Predicated region
      $region49: #{forward.3} parent=11 // pred_check
        %p367 = pneg %p257
      $region50: #{forward.3} parent=11 // pred_check_branch
        %369 = sbr.rel (%p367) target = $region52
      $region51: #{forward.3} parent=11 // pred_region
        _
      $region52: #{forward.3} parent=11 // pred_fallthru
        _
      // Predicated region
      $region53: #{forward.3} parent=11 // pred_check
        %p370 = pneg %p278
      $region54: #{forward.3} parent=11 // pred_check_branch
        %372 = sbr.rel (%p370) target = $region56
      $region55: #{forward.3} parent=11 // pred_region
        _
      $region56: #{forward.3} parent=11 // pred_fallthru
        _
      // Predicated region
      $region57: #{forward.3} parent=11 // pred_check
        %p373 = pneg %p299
      $region58: #{forward.3} parent=11 // pred_check_branch
        %375 = sbr.rel (%p373) target = $region60
      $region59: #{forward.3} parent=11 // pred_region
        _
      $region60: #{forward.3} parent=11 // pred_fallthru
        _
    $region12: #{forward.3} parent=5 // pred_fallthru
      _
    %p376 = scmp.lt.s32.totalorder %s21, 2
    // Predicated region
    $region61: #{forward.3} parent=5 // pred_check
      %p377 = pneg %p376
    $region62: #{forward.3} parent=5 // pred_check_branch
      %379 = sbr.rel (%p377) target = $region64
    $region63: #{forward.3} parent=5 // pred_region
      // Predicated region
      $region65: #{forward.3} parent=63 // pred_check
        %p380 = pneg %p41
      $region66: #{forward.3} parent=63 // pred_check_branch
        %382 = sbr.rel (%p380) target = $region68
      $region67: #{forward.3} parent=63 // pred_region
        %p383 = scmp.lt.s32.totalorder %s21, 1
        %s384 = scalar_select %p383, %s21, 1
        %s385 = smul.addr %s384, 8
        %s386 = scalar_lea.vmem %s0, %s385
      $region68: #{forward.3} parent=63 // pred_fallthru
        _
    $region64: #{forward.3} parent=5 // pred_fallthru
      _
    %p387 = scmp.le.s32.totalorder 1, %s21
    %p388 = scmp.lt.s32.totalorder %s21, 3
    %p389 = pnand %p387, %p388
    %p390 = pneg %p389
    // Predicated region
    $region69: #{forward.3} parent=5 // pred_check
      _
    $region70: #{forward.3} parent=5 // pred_check_branch
      %392 = sbr.rel (%p389) target = $region72
    $region71: #{forward.3} parent=5 // pred_region
      %s393 = ssub.s32 %s21, 1
      %p394 = scmp.lt.s32.totalorder %s26, 1
      %s395 = scalar_select %p394, %s26, 1
      %s396 = smul.addr %s395, 8
      %s397 = scalar_lea.vmem %s0, %s396
      %p398 = pneg %p47
      %p399 = pneg %p44
      %p400 = pneg %p68
      %p401 = pneg %p65
      %p402 = pneg %p89
      %p403 = pneg %p86
      %p404 = pneg %p110
      %p405 = pneg %p107
      %p406 = pneg %p131
      %p407 = pneg %p128
      %p408 = pneg %p152
      %p409 = pneg %p149
      %p410 = pneg %p173
      %p411 = pneg %p170
      %p412 = pneg %p194
      %p413 = pneg %p191
      %p414 = pneg %p215
      %p415 = pneg %p212
      %p416 = pneg %p236
      %p417 = pneg %p233
      %p418 = pneg %p257
      %p419 = pneg %p254
      %p420 = pneg %p278
      %p421 = pneg %p275
      %p422 = pneg %p299
      %p423 = pneg %p296
      %p424 = pneg %p325
      %p425 = pneg %p322
      %p426 = scmp.lt.s32.totalorder %s26, 1
      %s427 = scalar_select %p426, %s26, 1
      %s428 = smul.addr %s427, 8
      %s429 = scalar_lea.vmem %s13, %s428
      %p430 = scmp.lt.s32.totalorder %s26, 1
      %s431 = scalar_select %p430, %s26, 1
      %s432 = smul.addr %s431, 8
      %s433 = scalar_lea.vmem %s0, %s432
      %p434 = scmp.lt.s32.totalorder %s26, 1
      %s435 = scalar_select %p434, %s26, 1
      %s436 = smul.addr %s435, 8
      %s437 = scalar_lea.vmem %s13, %s436
      %v439 = vld [vmem:[%s433] sm:$0xff]
      %vm440 = vcmask 253952
      %441 = vst.msk [vmem:[#allocation2] sm:$0x1] %vm440, 0.0
      %442 = vst.msk [vmem:[#allocation2 + $0x9] sm:$0x1] %vm440, 0.0
      %vm443 = vcmask 261120
      %444 = vst.msk [vmem:[#allocation2 + $0x1] sm:$0xff] %vm443, %v439
      %v445 = vld [vmem:[#allocation2] sm:$0xff]
      %v446 = vpack.c.bf16 %v445, %v445
      %v447 = vld [vmem:[%s1] sm:$0xf]
      %v448 = vld [vmem:[%s1 + $0x4] sm:$0xf]
      %v449 = vld [vmem:[%s1 + $0x8] sm:$0xf]
      %v450 = vld [vmem:[%s1 + $0xc] sm:$0xf]
      %v451 = vld [vmem:[#allocation2 + $0x1] sm:$0xff]
      %v452 = vpack.c.bf16 %v451, %v451
      %s453 = scalar_lea.vmem %s1, 16
      %v454 = vld [vmem:[%s453] sm:$0xf]
      %v455 = vld [vmem:[%s453 + $0x4] sm:$0xf]
      %v456 = vld [vmem:[%s453 + $0x8] sm:$0xf]
      %v457 = vld [vmem:[%s453 + $0xc] sm:$0xf]
      %v462 = vunpack.c.l.b16 %v454
      %v463 = vunpack.c.l.b16 %v455
      %v464 = vunpack.c.l.b16 %v456
      %v465 = vunpack.c.l.b16 %v457
      %v466 = vpack.c.b16 %v463, %v462
      %v467 = vpack.c.b16 %v465, %v464
      %v471 = vsel %vm443, %v452, 0
      %473 = vmatprep.subr.bf16.mxu0 0
      %474 = vmatpush1.bf16.msra.mxu0 0
      %475 = vmatprep.subr.bf16.mxu0 0
      %476 = vmatpush1.bf16.msra.mxu0 0
      %477 = vmatprep.subr.bf16.mxu0 0
      %478 = vmatpush1.bf16.msra.mxu0 0
      %479 = vmatprep.subr.bf16.mxu0 0
      %480 = vmatpush1.bf16.msra.mxu0 0
      %481 = vmatprep.subr.bf16.mxu0 0
      %482 = vmatpush1.bf16.msra.mxu0 0
      %483 = vmatprep.subr.bf16.mxu0 0
      %484 = vmatpush1.bf16.msra.mxu0 0
      %485 = vmatprep.subr.bf16.mxu0 0
      %486 = vmatpush1.bf16.msra.mxu0 %v467
      %487 = vmatprep.subr.bf16.mxu0 0
      %488 = vmatpush1.bf16.msra.mxu0 %v466
      %489 = vmatprep.subr.bf16.mxu0 0
      %490 = vmatpush2.bf16.msra.mxu0 0
      %491 = vmatprep.subr.bf16.mxu0 0
      %492 = vmatpush2.bf16.msra.mxu0 0
      %493 = vmatprep.subr.bf16.mxu0 0
      %494 = vmatpush2.bf16.msra.mxu0 0
      %495 = vmatprep.subr.bf16.mxu0 0
      %496 = vmatpush2.bf16.msra.mxu0 0
      %497 = vmatprep.subr.bf16.mxu0 0
      %498 = vmatpush2.bf16.msra.mxu0 0
      %499 = vmatprep.subr.bf16.mxu0 0
      %500 = vmatpush2.bf16.msra.mxu0 0
      %501 = vmatprep.subr.bf16.mxu0 0
      %502 = vmatpush2.bf16.msra.mxu0 0
      %503 = vmatprep.subr.bf16.mxu0 0
      %504 = vmatpush2.bf16.msra.mxu0 0
      %505 = vmatprep.mubr.bf16.mxu0 0
      %506 = vmatmul.mubr.bf16.gmra.mxu0 %v471
      %v507 = vpop.f32.mrf.mxu0
      %v508 = vadd.f32 0.0, %v507
      %v509 = vpop.f32.mrf.mxu0
      %v510 = vpop.f32.mrf.mxu0
      %v511 = vpop.f32.mrf.mxu0
      %512 = vdwg.mxu0
      %v517 = vunpack.c.l.b16 %v447
      %v518 = vunpack.c.l.b16 %v448
      %v519 = vunpack.c.l.b16 %v449
      %v520 = vunpack.c.l.b16 %v450
      %v521 = vpack.c.b16 %v518, %v517
      %v522 = vpack.c.b16 %v520, %v519
      %v526 = vsel %vm443, %v446, 0
      %528 = vmatprep.subr.bf16.mxu0 0
      %529 = vmatpush1.bf16.msra.mxu0 0
      %530 = vmatprep.subr.bf16.mxu0 0
      %531 = vmatpush1.bf16.msra.mxu0 0
      %532 = vmatprep.subr.bf16.mxu0 0
      %533 = vmatpush1.bf16.msra.mxu0 0
      %534 = vmatprep.subr.bf16.mxu0 0
      %535 = vmatpush1.bf16.msra.mxu0 0
      %536 = vmatprep.subr.bf16.mxu0 0
      %537 = vmatpush1.bf16.msra.mxu0 0
      %538 = vmatprep.subr.bf16.mxu0 0
      %539 = vmatpush1.bf16.msra.mxu0 0
      %540 = vmatprep.subr.bf16.mxu0 0
      %541 = vmatpush1.bf16.msra.mxu0 %v522
      %542 = vmatprep.subr.bf16.mxu0 0
      %543 = vmatpush1.bf16.msra.mxu0 %v521
      %544 = vmatprep.subr.bf16.mxu0 0
      %545 = vmatpush2.bf16.msra.mxu0 0
      %546 = vmatprep.subr.bf16.mxu0 0
      %547 = vmatpush2.bf16.msra.mxu0 0
      %548 = vmatprep.subr.bf16.mxu0 0
      %549 = vmatpush2.bf16.msra.mxu0 0
      %550 = vmatprep.subr.bf16.mxu0 0
      %551 = vmatpush2.bf16.msra.mxu0 0
      %552 = vmatprep.subr.bf16.mxu0 0
      %553 = vmatpush2.bf16.msra.mxu0 0
      %554 = vmatprep.subr.bf16.mxu0 0
      %555 = vmatpush2.bf16.msra.mxu0 0
      %556 = vmatprep.subr.bf16.mxu0 0
      %557 = vmatpush2.bf16.msra.mxu0 0
      %558 = vmatprep.subr.bf16.mxu0 0
      %559 = vmatpush2.bf16.msra.mxu0 0
      %560 = vmatprep.mubr.bf16.mxu0 0
      %561 = vmatmul.mubr.bf16.gmra.mxu0 %v526
      %v562 = vpop.f32.mrf.mxu0
      %v563 = vadd.f32 %v508, %v562
      %v564 = vpop.f32.mrf.mxu0
      %v565 = vpop.f32.mrf.mxu0
      %v566 = vpop.f32.mrf.mxu0
      %567 = vdwg.mxu0
      %v568 = vld [vmem:[#allocation2 + $0x2] sm:$0xff]
      %v569 = vpack.c.bf16 %v568, %v568
      %s570 = scalar_lea.vmem %s1, 32
      %v571 = vld [vmem:[%s570] sm:$0xf]
      %v572 = vld [vmem:[%s570 + $0x4] sm:$0xf]
      %v573 = vld [vmem:[%s570 + $0x8] sm:$0xf]
      %v574 = vld [vmem:[%s570 + $0xc] sm:$0xf]
      %v579 = vunpack.c.l.b16 %v571
      %v580 = vunpack.c.l.b16 %v572
      %v581 = vunpack.c.l.b16 %v573
      %v582 = vunpack.c.l.b16 %v574
      %v583 = vpack.c.b16 %v580, %v579
      %v584 = vpack.c.b16 %v582, %v581
      %v588 = vsel %vm443, %v569, 0
      %590 = vmatprep.subr.bf16.mxu0 0
      %591 = vmatpush1.bf16.msra.mxu0 0
      %592 = vmatprep.subr.bf16.mxu0 0
      %593 = vmatpush1.bf16.msra.mxu0 0
      %594 = vmatprep.subr.bf16.mxu0 0
      %595 = vmatpush1.bf16.msra.mxu0 0
      %596 = vmatprep.subr.bf16.mxu0 0
      %597 = vmatpush1.bf16.msra.mxu0 0
      %598 = vmatprep.subr.bf16.mxu0 0
      %599 = vmatpush1.bf16.msra.mxu0 0
      %600 = vmatprep.subr.bf16.mxu0 0
      %601 = vmatpush1.bf16.msra.mxu0 0
      %602 = vmatprep.subr.bf16.mxu0 0
      %603 = vmatpush1.bf16.msra.mxu0 %v584
      %604 = vmatprep.subr.bf16.mxu0 0
      %605 = vmatpush1.bf16.msra.mxu0 %v583
      %606 = vmatprep.subr.bf16.mxu0 0
      %607 = vmatpush2.bf16.msra.mxu0 0
      %608 = vmatprep.subr.bf16.mxu0 0
      %609 = vmatpush2.bf16.msra.mxu0 0
      %610 = vmatprep.subr.bf16.mxu0 0
      %611 = vmatpush2.bf16.msra.mxu0 0
      %612 = vmatprep.subr.bf16.mxu0 0
      %613 = vmatpush2.bf16.msra.mxu0 0
      %614 = vmatprep.subr.bf16.mxu0 0
      %615 = vmatpush2.bf16.msra.mxu0 0
      %616 = vmatprep.subr.bf16.mxu0 0
      %617 = vmatpush2.bf16.msra.mxu0 0
      %618 = vmatprep.subr.bf16.mxu0 0
      %619 = vmatpush2.bf16.msra.mxu0 0
      %620 = vmatprep.subr.bf16.mxu0 0
      %621 = vmatpush2.bf16.msra.mxu0 0
      %622 = vmatprep.mubr.bf16.mxu0 0
      %623 = vmatmul.mubr.bf16.gmra.mxu0 %v588
      %v624 = vpop.f32.mrf.mxu0
      %v625 = vadd.f32 0.0, %v624
      %v626 = vpop.f32.mrf.mxu0
      %v627 = vpop.f32.mrf.mxu0
      %v628 = vpop.f32.mrf.mxu0
      %629 = vdwg.mxu0
      %v630 = vadd.f32 %v563, %v625
      %v631 = vld [vmem:[%s2] sm:$0x1]
      %v633 = vlaneseq
      %v634 = vshrl.u32 %v633, 7
      %v635 = vsub.s32 0, %v634
      %v636 = vrot.slane %v631, %v635
      %v638 = vadd.f32 %v630, %v636
      %v639 = vmax.f32 %v638, 0.0
      %640 = vst.msk [vmem:[#allocation2 + $0x1] sm:$0xff] %vm443, %v639
      %v641 = vld [vmem:[#allocation2] sm:$0xff]
      %v642 = vpack.c.bf16 %v641, %v641
      %s643 = scalar_lea.vmem %s1, 48
      %v644 = vld [vmem:[%s643] sm:$0xf]
      %v645 = vld [vmem:[%s643 + $0x4] sm:$0xf]
      %v646 = vld [vmem:[%s643 + $0x8] sm:$0xf]
      %v647 = vld [vmem:[%s643 + $0xc] sm:$0xf]
      %v648 = vld [vmem:[#allocation2 + $0x1] sm:$0xff]
      %v649 = vpack.c.bf16 %v648, %v648
      %s650 = scalar_lea.vmem %s1, 64
      %v651 = vld [vmem:[%s650] sm:$0xf]
      %v652 = vld [vmem:[%s650 + $0x4] sm:$0xf]
      %v653 = vld [vmem:[%s650 + $0x8] sm:$0xf]
      %v654 = vld [vmem:[%s650 + $0xc] sm:$0xf]
      %v659 = vunpack.c.l.b16 %v651
      %v660 = vunpack.c.l.b16 %v652
      %v661 = vunpack.c.l.b16 %v653
      %v662 = vunpack.c.l.b16 %v654
      %v663 = vpack.c.b16 %v660, %v659
      %v664 = vpack.c.b16 %v662, %v661
      %v668 = vsel %vm443, %v649, 0
      %670 = vmatprep.subr.bf16.mxu0 0
      %671 = vmatpush1.bf16.msra.mxu0 0
      %672 = vmatprep.subr.bf16.mxu0 0
      %673 = vmatpush1.bf16.msra.mxu0 0
      %674 = vmatprep.subr.bf16.mxu0 0
      %675 = vmatpush1.bf16.msra.mxu0 0
      %676 = vmatprep.subr.bf16.mxu0 0
      %677 = vmatpush1.bf16.msra.mxu0 0
      %678 = vmatprep.subr.bf16.mxu0 0
      %679 = vmatpush1.bf16.msra.mxu0 0
      %680 = vmatprep.subr.bf16.mxu0 0
      %681 = vmatpush1.bf16.msra.mxu0 0
      %682 = vmatprep.subr.bf16.mxu0 0
      %683 = vmatpush1.bf16.msra.mxu0 %v664
      %684 = vmatprep.subr.bf16.mxu0 0
      %685 = vmatpush1.bf16.msra.mxu0 %v663
      %686 = vmatprep.subr.bf16.mxu0 0
      %687 = vmatpush2.bf16.msra.mxu0 0
      %688 = vmatprep.subr.bf16.mxu0 0
      %689 = vmatpush2.bf16.msra.mxu0 0
      %690 = vmatprep.subr.bf16.mxu0 0
      %691 = vmatpush2.bf16.msra.mxu0 0
      %692 = vmatprep.subr.bf16.mxu0 0
      %693 = vmatpush2.bf16.msra.mxu0 0
      %694 = vmatprep.subr.bf16.mxu0 0
      %695 = vmatpush2.bf16.msra.mxu0 0
      %696 = vmatprep.subr.bf16.mxu0 0
      %697 = vmatpush2.bf16.msra.mxu0 0
      %698 = vmatprep.subr.bf16.mxu0 0
      %699 = vmatpush2.bf16.msra.mxu0 0
      %700 = vmatprep.subr.bf16.mxu0 0
      %701 = vmatpush2.bf16.msra.mxu0 0
      %702 = vmatprep.mubr.bf16.mxu0 0
      %703 = vmatmul.mubr.bf16.gmra.mxu0 %v668
      %v704 = vpop.f32.mrf.mxu0
      %v705 = vadd.f32 0.0, %v704
      %v706 = vpop.f32.mrf.mxu0
      %v707 = vpop.f32.mrf.mxu0
      %v708 = vpop.f32.mrf.mxu0
      %709 = vdwg.mxu0
      %v714 = vunpack.c.l.b16 %v644
      %v715 = vunpack.c.l.b16 %v645
      %v716 = vunpack.c.l.b16 %v646
      %v717 = vunpack.c.l.b16 %v647
      %v718 = vpack.c.b16 %v715, %v714
      %v719 = vpack.c.b16 %v717, %v716
      %v723 = vsel %vm443, %v642, 0
      %725 = vmatprep.subr.bf16.mxu0 0
      %726 = vmatpush1.bf16.msra.mxu0 0
      %727 = vmatprep.subr.bf16.mxu0 0
      %728 = vmatpush1.bf16.msra.mxu0 0
      %729 = vmatprep.subr.bf16.mxu0 0
      %730 = vmatpush1.bf16.msra.mxu0 0
      %731 = vmatprep.subr.bf16.mxu0 0
      %732 = vmatpush1.bf16.msra.mxu0 0
      %733 = vmatprep.subr.bf16.mxu0 0
      %734 = vmatpush1.bf16.msra.mxu0 0
      %735 = vmatprep.subr.bf16.mxu0 0
      %736 = vmatpush1.bf16.msra.mxu0 0
      %737 = vmatprep.subr.bf16.mxu0 0
      %738 = vmatpush1.bf16.msra.mxu0 %v719
      %739 = vmatprep.subr.bf16.mxu0 0
      %740 = vmatpush1.bf16.msra.mxu0 %v718
      %741 = vmatprep.subr.bf16.mxu0 0
      %742 = vmatpush2.bf16.msra.mxu0 0
      %743 = vmatprep.subr.bf16.mxu0 0
      %744 = vmatpush2.bf16.msra.mxu0 0
      %745 = vmatprep.subr.bf16.mxu0 0
      %746 = vmatpush2.bf16.msra.mxu0 0
      %747 = vmatprep.subr.bf16.mxu0 0
      %748 = vmatpush2.bf16.msra.mxu0 0
      %749 = vmatprep.subr.bf16.mxu0 0
      %750 = vmatpush2.bf16.msra.mxu0 0
      %751 = vmatprep.subr.bf16.mxu0 0
      %752 = vmatpush2.bf16.msra.mxu0 0
      %753 = vmatprep.subr.bf16.mxu0 0
      %754 = vmatpush2.bf16.msra.mxu0 0
      %755 = vmatprep.subr.bf16.mxu0 0
      %756 = vmatpush2.bf16.msra.mxu0 0
      %757 = vmatprep.mubr.bf16.mxu0 0
      %758 = vmatmul.mubr.bf16.gmra.mxu0 %v723
      %v759 = vpop.f32.mrf.mxu0
      %v760 = vadd.f32 %v705, %v759
      %v761 = vpop.f32.mrf.mxu0
      %v762 = vpop.f32.mrf.mxu0
      %v763 = vpop.f32.mrf.mxu0
      %764 = vdwg.mxu0
      %v765 = vld [vmem:[#allocation2 + $0x2] sm:$0xff]
      %v766 = vpack.c.bf16 %v765, %v765
      %s767 = scalar_lea.vmem %s1, 80
      %v768 = vld [vmem:[%s767] sm:$0xf]
      %v769 = vld [vmem:[%s767 + $0x4] sm:$0xf]
      %v770 = vld [vmem:[%s767 + $0x8] sm:$0xf]
      %v771 = vld [vmem:[%s767 + $0xc] sm:$0xf]
      %v776 = vunpack.c.l.b16 %v768
      %v777 = vunpack.c.l.b16 %v769
      %v778 = vunpack.c.l.b16 %v770
      %v779 = vunpack.c.l.b16 %v771
      %v780 = vpack.c.b16 %v777, %v776
      %v781 = vpack.c.b16 %v779, %v778
      %v785 = vsel %vm443, %v766, 0
      %787 = vmatprep.subr.bf16.mxu0 0
      %788 = vmatpush1.bf16.msra.mxu0 0
      %789 = vmatprep.subr.bf16.mxu0 0
      %790 = vmatpush1.bf16.msra.mxu0 0
      %791 = vmatprep.subr.bf16.mxu0 0
      %792 = vmatpush1.bf16.msra.mxu0 0
      %793 = vmatprep.subr.bf16.mxu0 0
      %794 = vmatpush1.bf16.msra.mxu0 0
      %795 = vmatprep.subr.bf16.mxu0 0
      %796 = vmatpush1.bf16.msra.mxu0 0
      %797 = vmatprep.subr.bf16.mxu0 0
      %798 = vmatpush1.bf16.msra.mxu0 0
      %799 = vmatprep.subr.bf16.mxu0 0
      %800 = vmatpush1.bf16.msra.mxu0 %v781
      %801 = vmatprep.subr.bf16.mxu0 0
      %802 = vmatpush1.bf16.msra.mxu0 %v780
      %803 = vmatprep.subr.bf16.mxu0 0
      %804 = vmatpush2.bf16.msra.mxu0 0
      %805 = vmatprep.subr.bf16.mxu0 0
      %806 = vmatpush2.bf16.msra.mxu0 0
      %807 = vmatprep.subr.bf16.mxu0 0
      %808 = vmatpush2.bf16.msra.mxu0 0
      %809 = vmatprep.subr.bf16.mxu0 0
      %810 = vmatpush2.bf16.msra.mxu0 0
      %811 = vmatprep.subr.bf16.mxu0 0
      %812 = vmatpush2.bf16.msra.mxu0 0
      %813 = vmatprep.subr.bf16.mxu0 0
      %814 = vmatpush2.bf16.msra.mxu0 0
      %815 = vmatprep.subr.bf16.mxu0 0
      %816 = vmatpush2.bf16.msra.mxu0 0
      %817 = vmatprep.subr.bf16.mxu0 0
      %818 = vmatpush2.bf16.msra.mxu0 0
      %819 = vmatprep.mubr.bf16.mxu0 0
      %820 = vmatmul.mubr.bf16.gmra.mxu0 %v785
      %v821 = vpop.f32.mrf.mxu0
      %v822 = vadd.f32 0.0, %v821
      %v823 = vpop.f32.mrf.mxu0
      %v824 = vpop.f32.mrf.mxu0
      %v825 = vpop.f32.mrf.mxu0
      %826 = vdwg.mxu0
      %v827 = vadd.f32 %v760, %v822
      %s828 = scalar_lea.vmem %s2, 1
      %v829 = vld [vmem:[%s828] sm:$0x1]
      %v831 = vlaneseq
      %v832 = vshrl.u32 %v831, 7
      %v833 = vsub.s32 0, %v832
      %v834 = vrot.slane %v829, %v833
      %v836 = vadd.f32 %v827, %v834
      %v837 = vmax.f32 %v836, 0.0
      %838 = vst.msk [vmem:[#allocation2 + $0x1] sm:$0xff] %vm443, %v837
      %v839 = vld [vmem:[#allocation2] sm:$0xff]
      %v840 = vpack.c.bf16 %v839, %v839
      %s841 = scalar_lea.vmem %s1, 96
      %v842 = vld [vmem:[%s841] sm:$0xf]
      %v843 = vld [vmem:[%s841 + $0x4] sm:$0xf]
      %v844 = vld [vmem:[%s841 + $0x8] sm:$0xf]
      %v845 = vld [vmem:[%s841 + $0xc] sm:$0xf]
      %v846 = vld [vmem:[#allocation2 + $0x1] sm:$0xff]
      %v847 = vpack.c.bf16 %v846, %v846
      %s848 = scalar_lea.vmem %s1, 112
      %v849 = vld [vmem:[%s848] sm:$0xf]
      %v850 = vld [vmem:[%s848 + $0x4] sm:$0xf]
      %v851 = vld [vmem:[%s848 + $0x8] sm:$0xf]
      %v852 = vld [vmem:[%s848 + $0xc] sm:$0xf]
      %v857 = vunpack.c.l.b16 %v849
      %v858 = vunpack.c.l.b16 %v850
      %v859 = vunpack.c.l.b16 %v851
      %v860 = vunpack.c.l.b16 %v852
      %v861 = vpack.c.b16 %v858, %v857
      %v862 = vpack.c.b16 %v860, %v859
      %v866 = vsel %vm443, %v847, 0
      %868 = vmatprep.subr.bf16.mxu0 0
      %869 = vmatpush1.bf16.msra.mxu0 0
      %870 = vmatprep.subr.bf16.mxu0 0
      %871 = vmatpush1.bf16.msra.mxu0 0
      %872 = vmatprep.subr.bf16.mxu0 0
      %873 = vmatpush1.bf16.msra.mxu0 0
      %874 = vmatprep.subr.bf16.mxu0 0
      %875 = vmatpush1.bf16.msra.mxu0 0
      %876 = vmatprep.subr.bf16.mxu0 0
      %877 = vmatpush1.bf16.msra.mxu0 0
      %878 = vmatprep.subr.bf16.mxu0 0
      %879 = vmatpush1.bf16.msra.mxu0 0
      %880 = vmatprep.subr.bf16.mxu0 0
      %881 = vmatpush1.bf16.msra.mxu0 %v862
      %882 = vmatprep.subr.bf16.mxu0 0
      %883 = vmatpush1.bf16.msra.mxu0 %v861
      %884 = vmatprep.subr.bf16.mxu0 0
      %885 = vmatpush2.bf16.msra.mxu0 0
      %886 = vmatprep.subr.bf16.mxu0 0
      %887 = vmatpush2.bf16.msra.mxu0 0
      %888 = vmatprep.subr.bf16.mxu0 0
      %889 = vmatpush2.bf16.msra.mxu0 0
      %890 = vmatprep.subr.bf16.mxu0 0
      %891 = vmatpush2.bf16.msra.mxu0 0
      %892 = vmatprep.subr.bf16.mxu0 0
      %893 = vmatpush2.bf16.msra.mxu0 0
      %894 = vmatprep.subr.bf16.mxu0 0
      %895 = vmatpush2.bf16.msra.mxu0 0
      %896 = vmatprep.subr.bf16.mxu0 0
      %897 = vmatpush2.bf16.msra.mxu0 0
      %898 = vmatprep.subr.bf16.mxu0 0
      %899 = vmatpush2.bf16.msra.mxu0 0
      %900 = vmatprep.mubr.bf16.mxu0 0
      %901 = vmatmul.mubr.bf16.gmra.mxu0 %v866
      %v902 = vpop.f32.mrf.mxu0
      %v903 = vadd.f32 0.0, %v902
      %v904 = vpop.f32.mrf.mxu0
      %v905 = vpop.f32.mrf.mxu0
      %v906 = vpop.f32.mrf.mxu0
      %907 = vdwg.mxu0
      %v912 = vunpack.c.l.b16 %v842
      %v913 = vunpack.c.l.b16 %v843
      %v914 = vunpack.c.l.b16 %v844
      %v915 = vunpack.c.l.b16 %v845
      %v916 = vpack.c.b16 %v913, %v912
      %v917 = vpack.c.b16 %v915, %v914
      %v921 = vsel %vm443, %v840, 0
      %923 = vmatprep.subr.bf16.mxu0 0
      %924 = vmatpush1.bf16.msra.mxu0 0
      %925 = vmatprep.subr.bf16.mxu0 0
      %926 = vmatpush1.bf16.msra.mxu0 0
      %927 = vmatprep.subr.bf16.mxu0 0
      %928 = vmatpush1.bf16.msra.mxu0 0
      %929 = vmatprep.subr.bf16.mxu0 0
      %930 = vmatpush1.bf16.msra.mxu0 0
      %931 = vmatprep.subr.bf16.mxu0 0
      %932 = vmatpush1.bf16.msra.mxu0 0
      %933 = vmatprep.subr.bf16.mxu0 0
      %934 = vmatpush1.bf16.msra.mxu0 0
      %935 = vmatprep.subr.bf16.mxu0 0
      %936 = vmatpush1.bf16.msra.mxu0 %v917
      %937 = vmatprep.subr.bf16.mxu0 0
      %938 = vmatpush1.bf16.msra.mxu0 %v916
      %939 = vmatprep.subr.bf16.mxu0 0
      %940 = vmatpush2.bf16.msra.mxu0 0
      %941 = vmatprep.subr.bf16.mxu0 0
      %942 = vmatpush2.bf16.msra.mxu0 0
      %943 = vmatprep.subr.bf16.mxu0 0
      %944 = vmatpush2.bf16.msra.mxu0 0
      %945 = vmatprep.subr.bf16.mxu0 0
      %946 = vmatpush2.bf16.msra.mxu0 0
      %947 = vmatprep.subr.bf16.mxu0 0
      %948 = vmatpush2.bf16.msra.mxu0 0
      %949 = vmatprep.subr.bf16.mxu0 0
      %950 = vmatpush2.bf16.msra.mxu0 0
      %951 = vmatprep.subr.bf16.mxu0 0
      %952 = vmatpush2.bf16.msra.mxu0 0
      %953 = vmatprep.subr.bf16.mxu0 0
      %954 = vmatpush2.bf16.msra.mxu0 0
      %955 = vmatprep.mubr.bf16.mxu0 0
      %956 = vmatmul.mubr.bf16.gmra.mxu0 %v921
      %v957 = vpop.f32.mrf.mxu0
      %v958 = vadd.f32 %v903, %v957
      %v959 = vpop.f32.mrf.mxu0
      %v960 = vpop.f32.mrf.mxu0
      %v961 = vpop.f32.mrf.mxu0
      %962 = vdwg.mxu0
      %v963 = vld [vmem:[#allocation2 + $0x2] sm:$0xff]
      %v964 = vpack.c.bf16 %v963, %v963
      %s965 = scalar_lea.vmem %s1, 128
      %v966 = vld [vmem:[%s965] sm:$0xf]
      %v967 = vld [vmem:[%s965 + $0x4] sm:$0xf]
      %v968 = vld [vmem:[%s965 + $0x8] sm:$0xf]
      %v969 = vld [vmem:[%s965 + $0xc] sm:$0xf]
      %v974 = vunpack.c.l.b16 %v966
      %v975 = vunpack.c.l.b16 %v967
      %v976 = vunpack.c.l.b16 %v968
      %v977 = vunpack.c.l.b16 %v969
      %v978 = vpack.c.b16 %v975, %v974
      %v979 = vpack.c.b16 %v977, %v976
      %v983 = vsel %vm443, %v964, 0
      %985 = vmatprep.subr.bf16.mxu0 0
      %986 = vmatpush1.bf16.msra.mxu0 0
      %987 = vmatprep.subr.bf16.mxu0 0
      %988 = vmatpush1.bf16.msra.mxu0 0
      %989 = vmatprep.subr.bf16.mxu0 0
      %990 = vmatpush1.bf16.msra.mxu0 0
      %991 = vmatprep.subr.bf16.mxu0 0
      %992 = vmatpush1.bf16.msra.mxu0 0
      %993 = vmatprep.subr.bf16.mxu0 0
      %994 = vmatpush1.bf16.msra.mxu0 0
      %995 = vmatprep.subr.bf16.mxu0 0
      %996 = vmatpush1.bf16.msra.mxu0 0
      %997 = vmatprep.subr.bf16.mxu0 0
      %998 = vmatpush1.bf16.msra.mxu0 %v979
      %999 = vmatprep.subr.bf16.mxu0 0
      %1000 = vmatpush1.bf16.msra.mxu0 %v978
      %1001 = vmatprep.subr.bf16.mxu0 0
      %1002 = vmatpush2.bf16.msra.mxu0 0
      %1003 = vmatprep.subr.bf16.mxu0 0
      %1004 = vmatpush2.bf16.msra.mxu0 0
      %1005 = vmatprep.subr.bf16.mxu0 0
      %1006 = vmatpush2.bf16.msra.mxu0 0
      %1007 = vmatprep.subr.bf16.mxu0 0
      %1008 = vmatpush2.bf16.msra.mxu0 0
      %1009 = vmatprep.subr.bf16.mxu0 0
      %1010 = vmatpush2.bf16.msra.mxu0 0
      %1011 = vmatprep.subr.bf16.mxu0 0
      %1012 = vmatpush2.bf16.msra.mxu0 0
      %1013 = vmatprep.subr.bf16.mxu0 0
      %1014 = vmatpush2.bf16.msra.mxu0 0
      %1015 = vmatprep.subr.bf16.mxu0 0
      %1016 = vmatpush2.bf16.msra.mxu0 0
      %1017 = vmatprep.mubr.bf16.mxu0 0
      %1018 = vmatmul.mubr.bf16.gmra.mxu0 %v983
      %v1019 = vpop.f32.mrf.mxu0
      %v1020 = vadd.f32 0.0, %v1019
      %v1021 = vpop.f32.mrf.mxu0
      %v1022 = vpop.f32.mrf.mxu0
      %v1023 = vpop.f32.mrf.mxu0
      %1024 = vdwg.mxu0
      %v1025 = vadd.f32 %v958, %v1020
      %s1026 = scalar_lea.vmem %s2, 2
      %v1027 = vld [vmem:[%s1026] sm:$0x1]
      %v1029 = vlaneseq
      %v1030 = vshrl.u32 %v1029, 7
      %v1031 = vsub.s32 0, %v1030
      %v1032 = vrot.slane %v1027, %v1031
      %v1034 = vadd.f32 %v1025, %v1032
      %v1035 = vmax.f32 %v1034, 0.0
      %1036 = vst.msk [vmem:[#allocation2 + $0x1] sm:$0xff] %vm443, %v1035
      %v1037 = vld [vmem:[#allocation2] sm:$0xff]
      %v1038 = vpack.c.bf16 %v1037, %v1037
      %s1039 = scalar_lea.vmem %s1, 144
      %v1040 = vld [vmem:[%s1039] sm:$0xf]
      %v1041 = vld [vmem:[%s1039 + $0x4] sm:$0xf]
      %v1042 = vld [vmem:[%s1039 + $0x8] sm:$0xf]
      %v1043 = vld [vmem:[%s1039 + $0xc] sm:$0xf]
      %v1044 = vld [vmem:[#allocation2 + $0x1] sm:$0xff]
      %v1045 = vpack.c.bf16 %v1044, %v1044
      %s1046 = scalar_lea.vmem %s1, 160
      %v1047 = vld [vmem:[%s1046] sm:$0xf]
      %v1048 = vld [vmem:[%s1046 + $0x4] sm:$0xf]
      %v1049 = vld [vmem:[%s1046 + $0x8] sm:$0xf]
      %v1050 = vld [vmem:[%s1046 + $0xc] sm:$0xf]
      %v1055 = vunpack.c.l.b16 %v1047
      %v1056 = vunpack.c.l.b16 %v1048
      %v1057 = vunpack.c.l.b16 %v1049
      %v1058 = vunpack.c.l.b16 %v1050
      %v1059 = vpack.c.b16 %v1056, %v1055
      %v1060 = vpack.c.b16 %v1058, %v1057
      %v1064 = vsel %vm443, %v1045, 0
      %1066 = vmatprep.subr.bf16.mxu0 0
      %1067 = vmatpush1.bf16.msra.mxu0 0
      %1068 = vmatprep.subr.bf16.mxu0 0
      %1069 = vmatpush1.bf16.msra.mxu0 0
      %1070 = vmatprep.subr.bf16.mxu0 0
      %1071 = vmatpush1.bf16.msra.mxu0 0
      %1072 = vmatprep.subr.bf16.mxu0 0
      %1073 = vmatpush1.bf16.msra.mxu0 0
      %1074 = vmatprep.subr.bf16.mxu0 0
      %1075 = vmatpush1.bf16.msra.mxu0 0
      %1076 = vmatprep.subr.bf16.mxu0 0
      %1077 = vmatpush1.bf16.msra.mxu0 0
      %1078 = vmatprep.subr.bf16.mxu0 0
      %1079 = vmatpush1.bf16.msra.mxu0 %v1060
      %1080 = vmatprep.subr.bf16.mxu0 0
      %1081 = vmatpush1.bf16.msra.mxu0 %v1059
      %1082 = vmatprep.subr.bf16.mxu0 0
      %1083 = vmatpush2.bf16.msra.mxu0 0
      %1084 = vmatprep.subr.bf16.mxu0 0
      %1085 = vmatpush2.bf16.msra.mxu0 0
      %1086 = vmatprep.subr.bf16.mxu0 0
      %1087 = vmatpush2.bf16.msra.mxu0 0
      %1088 = vmatprep.subr.bf16.mxu0 0
      %1089 = vmatpush2.bf16.msra.mxu0 0
      %1090 = vmatprep.subr.bf16.mxu0 0
      %1091 = vmatpush2.bf16.msra.mxu0 0
      %1092 = vmatprep.subr.bf16.mxu0 0
      %1093 = vmatpush2.bf16.msra.mxu0 0
      %1094 = vmatprep.subr.bf16.mxu0 0
      %1095 = vmatpush2.bf16.msra.mxu0 0
      %1096 = vmatprep.subr.bf16.mxu0 0
      %1097 = vmatpush2.bf16.msra.mxu0 0
      %1098 = vmatprep.mubr.bf16.mxu0 0
      %1099 = vmatmul.mubr.bf16.gmra.mxu0 %v1064
      %v1100 = vpop.f32.mrf.mxu0
      %v1101 = vadd.f32 0.0, %v1100
      %v1102 = vpop.f32.mrf.mxu0
      %v1103 = vpop.f32.mrf.mxu0
      %v1104 = vpop.f32.mrf.mxu0
      %1105 = vdwg.mxu0
      %v1110 = vunpack.c.l.b16 %v1040
      %v1111 = vunpack.c.l.b16 %v1041
      %v1112 = vunpack.c.l.b16 %v1042
      %v1113 = vunpack.c.l.b16 %v1043
      %v1114 = vpack.c.b16 %v1111, %v1110
      %v1115 = vpack.c.b16 %v1113, %v1112
      %v1119 = vsel %vm443, %v1038, 0
      %1121 = vmatprep.subr.bf16.mxu0 0
      %1122 = vmatpush1.bf16.msra.mxu0 0
      %1123 = vmatprep.subr.bf16.mxu0 0
      %1124 = vmatpush1.bf16.msra.mxu0 0
      %1125 = vmatprep.subr.bf16.mxu0 0
      %1126 = vmatpush1.bf16.msra.mxu0 0
      %1127 = vmatprep.subr.bf16.mxu0 0
      %1128 = vmatpush1.bf16.msra.mxu0 0
      %1129 = vmatprep.subr.bf16.mxu0 0
      %1130 = vmatpush1.bf16.msra.mxu0 0
      %1131 = vmatprep.subr.bf16.mxu0 0
      %1132 = vmatpush1.bf16.msra.mxu0 0
      %1133 = vmatprep.subr.bf16.mxu0 0
      %1134 = vmatpush1.bf16.msra.mxu0 %v1115
      %1135 = vmatprep.subr.bf16.mxu0 0
      %1136 = vmatpush1.bf16.msra.mxu0 %v1114
      %1137 = vmatprep.subr.bf16.mxu0 0
      %1138 = vmatpush2.bf16.msra.mxu0 0
      %1139 = vmatprep.subr.bf16.mxu0 0
      %1140 = vmatpush2.bf16.msra.mxu0 0
      %1141 = vmatprep.subr.bf16.mxu0 0
      %1142 = vmatpush2.bf16.msra.mxu0 0
      %1143 = vmatprep.subr.bf16.mxu0 0
      %1144 = vmatpush2.bf16.msra.mxu0 0
      %1145 = vmatprep.subr.bf16.mxu0 0
      %1146 = vmatpush2.bf16.msra.mxu0 0
      %1147 = vmatprep.subr.bf16.mxu0 0
      %1148 = vmatpush2.bf16.msra.mxu0 0
      %1149 = vmatprep.subr.bf16.mxu0 0
      %1150 = vmatpush2.bf16.msra.mxu0 0
      %1151 = vmatprep.subr.bf16.mxu0 0
      %1152 = vmatpush2.bf16.msra.mxu0 0
      %1153 = vmatprep.mubr.bf16.mxu0 0
      %1154 = vmatmul.mubr.bf16.gmra.mxu0 %v1119
      %v1155 = vpop.f32.mrf.mxu0
      %v1156 = vadd.f32 %v1101, %v1155
      %v1157 = vpop.f32.mrf.mxu0
      %v1158 = vpop.f32.mrf.mxu0
      %v1159 = vpop.f32.mrf.mxu0
      %1160 = vdwg.mxu0
      %v1161 = vld [vmem:[#allocation2 + $0x2] sm:$0xff]
      %v1162 = vpack.c.bf16 %v1161, %v1161
      %s1163 = scalar_lea.vmem %s1, 176
      %v1164 = vld [vmem:[%s1163] sm:$0xf]
      %v1165 = vld [vmem:[%s1163 + $0x4] sm:$0xf]
      %v1166 = vld [vmem:[%s1163 + $0x8] sm:$0xf]
      %v1167 = vld [vmem:[%s1163 + $0xc] sm:$0xf]
      %v1172 = vunpack.c.l.b16 %v1164
      %v1173 = vunpack.c.l.b16 %v1165
      %v1174 = vunpack.c.l.b16 %v1166
      %v1175 = vunpack.c.l.b16 %v1167
      %v1176 = vpack.c.b16 %v1173, %v1172
      %v1177 = vpack.c.b16 %v1175, %v1174
      %v1181 = vsel %vm443, %v1162, 0
      %1183 = vmatprep.subr.bf16.mxu0 0
      %1184 = vmatpush1.bf16.msra.mxu0 0
      %1185 = vmatprep.subr.bf16.mxu0 0
      %1186 = vmatpush1.bf16.msra.mxu0 0
      %1187 = vmatprep.subr.bf16.mxu0 0
      %1188 = vmatpush1.bf16.msra.mxu0 0
      %1189 = vmatprep.subr.bf16.mxu0 0
      %1190 = vmatpush1.bf16.msra.mxu0 0
      %1191 = vmatprep.subr.bf16.mxu0 0
      %1192 = vmatpush1.bf16.msra.mxu0 0
      %1193 = vmatprep.subr.bf16.mxu0 0
      %1194 = vmatpush1.bf16.msra.mxu0 0
      %1195 = vmatprep.subr.bf16.mxu0 0
      %1196 = vmatpush1.bf16.msra.mxu0 %v1177
      %1197 = vmatprep.subr.bf16.mxu0 0
      %1198 = vmatpush1.bf16.msra.mxu0 %v1176
      %1199 = vmatprep.subr.bf16.mxu0 0
      %1200 = vmatpush2.bf16.msra.mxu0 0
      %1201 = vmatprep.subr.bf16.mxu0 0
      %1202 = vmatpush2.bf16.msra.mxu0 0
      %1203 = vmatprep.subr.bf16.mxu0 0
      %1204 = vmatpush2.bf16.msra.mxu0 0
      %1205 = vmatprep.subr.bf16.mxu0 0
      %1206 = vmatpush2.bf16.msra.mxu0 0
      %1207 = vmatprep.subr.bf16.mxu0 0
      %1208 = vmatpush2.bf16.msra.mxu0 0
      %1209 = vmatprep.subr.bf16.mxu0 0
      %1210 = vmatpush2.bf16.msra.mxu0 0
      %1211 = vmatprep.subr.bf16.mxu0 0
      %1212 = vmatpush2.bf16.msra.mxu0 0
      %1213 = vmatprep.subr.bf16.mxu0 0
      %1214 = vmatpush2.bf16.msra.mxu0 0
      %1215 = vmatprep.mubr.bf16.mxu0 0
      %1216 = vmatmul.mubr.bf16.gmra.mxu0 %v1181
      %v1217 = vpop.f32.mrf.mxu0
      %v1218 = vadd.f32 0.0, %v1217
      %v1219 = vpop.f32.mrf.mxu0
      %v1220 = vpop.f32.mrf.mxu0
      %v1221 = vpop.f32.mrf.mxu0
      %1222 = vdwg.mxu0
      %v1223 = vadd.f32 %v1156, %v1218
      %s1224 = scalar_lea.vmem %s2, 3
      %v1225 = vld [vmem:[%s1224] sm:$0x1]
      %v1227 = vlaneseq
      %v1228 = vshrl.u32 %v1227, 7
      %v1229 = vsub.s32 0, %v1228
      %v1230 = vrot.slane %v1225, %v1229
      %v1232 = vadd.f32 %v1223, %v1230
      %v1233 = vmax.f32 %v1232, 0.0
      %v1234 = vlaneseq
      %v1235 = vshrl.u32 %v1234, 7
      %v1236 = vsub.s32 0, %v1235
      %v1237 = vrot.slane %v1233, %v1236
      %1238 = vst.msk [vmem:[#allocation3] sm:$0xff] %vm443, %v1237
      %vm1239 = vcmask 260096
      %1240 = vst.msk [vmem:[#allocation3 + $0x8] sm:$0x7f] %vm1239, %v1233
      %vm1241 = vcmask 261121
      %1242 = vst.msk [vmem:[#allocation4 - $0x1] sm:$0xfe] %vm1241, %v1233
      %v1243 = vlaneseq
      %v1244 = vshrl.u32 %v1243, 7
      %v1245 = vsub.s32 7, %v1244
      %v1246 = vrot.slane %v1233, %v1245
      %1247 = vst.msk [vmem:[#allocation4 + $0x7] sm:$0xff] %vm443, %v1246
      %v1248 = vld [vmem:[#allocation3] sm:$0xff]
      %v1249 = vpack.c.bf16 %v1248, %v1248
      %v1250 = vld [vmem:[%s3] sm:$0xf]
      %v1251 = vld [vmem:[%s3 + $0x4] sm:$0xf]
      %v1252 = vld [vmem:[%s3 + $0x8] sm:$0xf]
      %v1253 = vld [vmem:[%s3 + $0xc] sm:$0xf]
      %v1254 = vld [vmem:[#allocation4] sm:$0xff]
      %v1255 = vpack.c.bf16 %v1254, %v1254
      %v1256 = vld [vmem:[%s4] sm:$0xf]
      %v1257 = vld [vmem:[%s4 + $0x4] sm:$0xf]
      %v1258 = vld [vmem:[%s4 + $0x8] sm:$0xf]
      %v1259 = vld [vmem:[%s4 + $0xc] sm:$0xf]
      %v1260 = vld [vmem:[#allocation3 + $0x1] sm:$0xff]
      %v1261 = vpack.c.bf16 %v1260, %v1260
      %s1262 = scalar_lea.vmem %s3, 16
      %v1263 = vld [vmem:[%s1262] sm:$0xf]
      %v1264 = vld [vmem:[%s1262 + $0x4] sm:$0xf]
      %v1265 = vld [vmem:[%s1262 + $0x8] sm:$0xf]
      %v1266 = vld [vmem:[%s1262 + $0xc] sm:$0xf]
      %v1271 = vunpack.c.l.b16 %v1263
      %v1272 = vunpack.c.l.b16 %v1264
      %v1273 = vunpack.c.l.b16 %v1265
      %v1274 = vunpack.c.l.b16 %v1266
      %v1275 = vpack.c.b16 %v1272, %v1271
      %v1276 = vpack.c.b16 %v1274, %v1273
      %v1280 = vsel %vm443, %v1261, 0
      %1282 = vmatprep.subr.bf16.mxu0 0
      %1283 = vmatpush1.bf16.msra.mxu0 0
      %1284 = vmatprep.subr.bf16.mxu0 0
      %1285 = vmatpush1.bf16.msra.mxu0 0
      %1286 = vmatprep.subr.bf16.mxu0 0
      %1287 = vmatpush1.bf16.msra.mxu0 0
      %1288 = vmatprep.subr.bf16.mxu0 0
      %1289 = vmatpush1.bf16.msra.mxu0 0
      %1290 = vmatprep.subr.bf16.mxu0 0
      %1291 = vmatpush1.bf16.msra.mxu0 0
      %1292 = vmatprep.subr.bf16.mxu0 0
      %1293 = vmatpush1.bf16.msra.mxu0 0
      %1294 = vmatprep.subr.bf16.mxu0 0
      %1295 = vmatpush1.bf16.msra.mxu0 %v1276
      %1296 = vmatprep.subr.bf16.mxu0 0
      %1297 = vmatpush1.bf16.msra.mxu0 %v1275
      %1298 = vmatprep.subr.bf16.mxu0 0
      %1299 = vmatpush2.bf16.msra.mxu0 0
      %1300 = vmatprep.subr.bf16.mxu0 0
      %1301 = vmatpush2.bf16.msra.mxu0 0
      %1302 = vmatprep.subr.bf16.mxu0 0
      %1303 = vmatpush2.bf16.msra.mxu0 0
      %1304 = vmatprep.subr.bf16.mxu0 0
      %1305 = vmatpush2.bf16.msra.mxu0 0
      %1306 = vmatprep.subr.bf16.mxu0 0
      %1307 = vmatpush2.bf16.msra.mxu0 0
      %1308 = vmatprep.subr.bf16.mxu0 0
      %1309 = vmatpush2.bf16.msra.mxu0 0
      %1310 = vmatprep.subr.bf16.mxu0 0
      %1311 = vmatpush2.bf16.msra.mxu0 0
      %1312 = vmatprep.subr.bf16.mxu0 0
      %1313 = vmatpush2.bf16.msra.mxu0 0
      %1314 = vmatprep.mubr.bf16.mxu0 0
      %1315 = vmatmul.mubr.bf16.gmra.mxu0 %v1280
      %v1316 = vpop.f32.mrf.mxu0
      %v1317 = vadd.f32 0.0, %v1316
      %v1318 = vpop.f32.mrf.mxu0
      %v1319 = vpop.f32.mrf.mxu0
      %v1320 = vpop.f32.mrf.mxu0
      %1321 = vdwg.mxu0
      %v1326 = vunpack.c.l.b16 %v1250
      %v1327 = vunpack.c.l.b16 %v1251
      %v1328 = vunpack.c.l.b16 %v1252
      %v1329 = vunpack.c.l.b16 %v1253
      %v1330 = vpack.c.b16 %v1327, %v1326
      %v1331 = vpack.c.b16 %v1329, %v1328
      %v1335 = vsel %vm443, %v1249, 0
      %1337 = vmatprep.subr.bf16.mxu0 0
      %1338 = vmatpush1.bf16.msra.mxu0 0
      %1339 = vmatprep.subr.bf16.mxu0 0
      %1340 = vmatpush1.bf16.msra.mxu0 0
      %1341 = vmatprep.subr.bf16.mxu0 0
      %1342 = vmatpush1.bf16.msra.mxu0 0
      %1343 = vmatprep.subr.bf16.mxu0 0
      %1344 = vmatpush1.bf16.msra.mxu0 0
      %1345 = vmatprep.subr.bf16.mxu0 0
      %1346 = vmatpush1.bf16.msra.mxu0 0
      %1347 = vmatprep.subr.bf16.mxu0 0
      %1348 = vmatpush1.bf16.msra.mxu0 0
      %1349 = vmatprep.subr.bf16.mxu0 0
      %1350 = vmatpush1.bf16.msra.mxu0 %v1331
      %1351 = vmatprep.subr.bf16.mxu0 0
      %1352 = vmatpush1.bf16.msra.mxu0 %v1330
      %1353 = vmatprep.subr.bf16.mxu0 0
      %1354 = vmatpush2.bf16.msra.mxu0 0
      %1355 = vmatprep.subr.bf16.mxu0 0
      %1356 = vmatpush2.bf16.msra.mxu0 0
      %1357 = vmatprep.subr.bf16.mxu0 0
      %1358 = vmatpush2.bf16.msra.mxu0 0
      %1359 = vmatprep.subr.bf16.mxu0 0
      %1360 = vmatpush2.bf16.msra.mxu0 0
      %1361 = vmatprep.subr.bf16.mxu0 0
      %1362 = vmatpush2.bf16.msra.mxu0 0
      %1363 = vmatprep.subr.bf16.mxu0 0
      %1364 = vmatpush2.bf16.msra.mxu0 0
      %1365 = vmatprep.subr.bf16.mxu0 0
      %1366 = vmatpush2.bf16.msra.mxu0 0
      %1367 = vmatprep.subr.bf16.mxu0 0
      %1368 = vmatpush2.bf16.msra.mxu0 0
      %1369 = vmatprep.mubr.bf16.mxu0 0
      %1370 = vmatmul.mubr.bf16.gmra.mxu0 %v1335
      %v1371 = vpop.f32.mrf.mxu0
      %v1372 = vadd.f32 %v1317, %v1371
      %v1373 = vpop.f32.mrf.mxu0
      %v1374 = vpop.f32.mrf.mxu0
      %v1375 = vpop.f32.mrf.mxu0
      %1376 = vdwg.mxu0
      %v1377 = vld [vmem:[#allocation4 + $0x1] sm:$0xff]
      %v1378 = vpack.c.bf16 %v1377, %v1377
      %s1379 = scalar_lea.vmem %s4, 16
      %v1380 = vld [vmem:[%s1379] sm:$0xf]
      %v1381 = vld [vmem:[%s1379 + $0x4] sm:$0xf]
      %v1382 = vld [vmem:[%s1379 + $0x8] sm:$0xf]
      %v1383 = vld [vmem:[%s1379 + $0xc] sm:$0xf]
      %v1388 = vunpack.c.l.b16 %v1380
      %v1389 = vunpack.c.l.b16 %v1381
      %v1390 = vunpack.c.l.b16 %v1382
      %v1391 = vunpack.c.l.b16 %v1383
      %v1392 = vpack.c.b16 %v1389, %v1388
      %v1393 = vpack.c.b16 %v1391, %v1390
      %v1397 = vsel %vm443, %v1378, 0
      %1399 = vmatprep.subr.bf16.mxu0 0
      %1400 = vmatpush1.bf16.msra.mxu0 0
      %1401 = vmatprep.subr.bf16.mxu0 0
      %1402 = vmatpush1.bf16.msra.mxu0 0
      %1403 = vmatprep.subr.bf16.mxu0 0
      %1404 = vmatpush1.bf16.msra.mxu0 0
      %1405 = vmatprep.subr.bf16.mxu0 0
      %1406 = vmatpush1.bf16.msra.mxu0 0
      %1407 = vmatprep.subr.bf16.mxu0 0
      %1408 = vmatpush1.bf16.msra.mxu0 0
      %1409 = vmatprep.subr.bf16.mxu0 0
      %1410 = vmatpush1.bf16.msra.mxu0 0
      %1411 = vmatprep.subr.bf16.mxu0 0
      %1412 = vmatpush1.bf16.msra.mxu0 %v1393
      %1413 = vmatprep.subr.bf16.mxu0 0
      %1414 = vmatpush1.bf16.msra.mxu0 %v1392
      %1415 = vmatprep.subr.bf16.mxu0 0
      %1416 = vmatpush2.bf16.msra.mxu0 0
      %1417 = vmatprep.subr.bf16.mxu0 0
      %1418 = vmatpush2.bf16.msra.mxu0 0
      %1419 = vmatprep.subr.bf16.mxu0 0
      %1420 = vmatpush2.bf16.msra.mxu0 0
      %1421 = vmatprep.subr.bf16.mxu0 0
      %1422 = vmatpush2.bf16.msra.mxu0 0
      %1423 = vmatprep.subr.bf16.mxu0 0
      %1424 = vmatpush2.bf16.msra.mxu0 0
      %1425 = vmatprep.subr.bf16.mxu0 0
      %1426 = vmatpush2.bf16.msra.mxu0 0
      %1427 = vmatprep.subr.bf16.mxu0 0
      %1428 = vmatpush2.bf16.msra.mxu0 0
      %1429 = vmatprep.subr.bf16.mxu0 0
      %1430 = vmatpush2.bf16.msra.mxu0 0
      %1431 = vmatprep.mubr.bf16.mxu0 0
      %1432 = vmatmul.mubr.bf16.gmra.mxu0 %v1397
      %v1433 = vpop.f32.mrf.mxu0
      %v1434 = vadd.f32 0.0, %v1433
      %v1435 = vpop.f32.mrf.mxu0
      %v1436 = vpop.f32.mrf.mxu0
      %v1437 = vpop.f32.mrf.mxu0
      %1438 = vdwg.mxu0
      %v1443 = vunpack.c.l.b16 %v1256
      %v1444 = vunpack.c.l.b16 %v1257
      %v1445 = vunpack.c.l.b16 %v1258
      %v1446 = vunpack.c.l.b16 %v1259
      %v1447 = vpack.c.b16 %v1444, %v1443
      %v1448 = vpack.c.b16 %v1446, %v1445
      %v1452 = vsel %vm443, %v1255, 0
      %1454 = vmatprep.subr.bf16.mxu0 0
      %1455 = vmatpush1.bf16.msra.mxu0 0
      %1456 = vmatprep.subr.bf16.mxu0 0
      %1457 = vmatpush1.bf16.msra.mxu0 0
      %1458 = vmatprep.subr.bf16.mxu0 0
      %1459 = vmatpush1.bf16.msra.mxu0 0
      %1460 = vmatprep.subr.bf16.mxu0 0
      %1461 = vmatpush1.bf16.msra.mxu0 0
      %1462 = vmatprep.subr.bf16.mxu0 0
      %1463 = vmatpush1.bf16.msra.mxu0 0
      %1464 = vmatprep.subr.bf16.mxu0 0
      %1465 = vmatpush1.bf16.msra.mxu0 0
      %1466 = vmatprep.subr.bf16.mxu0 0
      %1467 = vmatpush1.bf16.msra.mxu0 %v1448
      %1468 = vmatprep.subr.bf16.mxu0 0
      %1469 = vmatpush1.bf16.msra.mxu0 %v1447
      %1470 = vmatprep.subr.bf16.mxu0 0
      %1471 = vmatpush2.bf16.msra.mxu0 0
      %1472 = vmatprep.subr.bf16.mxu0 0
      %1473 = vmatpush2.bf16.msra.mxu0 0
      %1474 = vmatprep.subr.bf16.mxu0 0
      %1475 = vmatpush2.bf16.msra.mxu0 0
      %1476 = vmatprep.subr.bf16.mxu0 0
      %1477 = vmatpush2.bf16.msra.mxu0 0
      %1478 = vmatprep.subr.bf16.mxu0 0
      %1479 = vmatpush2.bf16.msra.mxu0 0
      %1480 = vmatprep.subr.bf16.mxu0 0
      %1481 = vmatpush2.bf16.msra.mxu0 0
      %1482 = vmatprep.subr.bf16.mxu0 0
      %1483 = vmatpush2.bf16.msra.mxu0 0
      %1484 = vmatprep.subr.bf16.mxu0 0
      %1485 = vmatpush2.bf16.msra.mxu0 0
      %1486 = vmatprep.mubr.bf16.mxu0 0
      %1487 = vmatmul.mubr.bf16.gmra.mxu0 %v1452
      %v1488 = vpop.f32.mrf.mxu0
      %v1489 = vadd.f32 %v1434, %v1488
      %v1490 = vpop.f32.mrf.mxu0
      %v1491 = vpop.f32.mrf.mxu0
      %v1492 = vpop.f32.mrf.mxu0
      %1493 = vdwg.mxu0
      %v1494 = vld [vmem:[#allocation3 + $0x2] sm:$0xff]
      %v1495 = vpack.c.bf16 %v1494, %v1494
      %s1496 = scalar_lea.vmem %s3, 32
      %v1497 = vld [vmem:[%s1496] sm:$0xf]
      %v1498 = vld [vmem:[%s1496 + $0x4] sm:$0xf]
      %v1499 = vld [vmem:[%s1496 + $0x8] sm:$0xf]
      %v1500 = vld [vmem:[%s1496 + $0xc] sm:$0xf]
      %v1505 = vunpack.c.l.b16 %v1497
      %v1506 = vunpack.c.l.b16 %v1498
      %v1507 = vunpack.c.l.b16 %v1499
      %v1508 = vunpack.c.l.b16 %v1500
      %v1509 = vpack.c.b16 %v1506, %v1505
      %v1510 = vpack.c.b16 %v1508, %v1507
      %v1514 = vsel %vm443, %v1495, 0
      %1516 = vmatprep.subr.bf16.mxu0 0
      %1517 = vmatpush1.bf16.msra.mxu0 0
      %1518 = vmatprep.subr.bf16.mxu0 0
      %1519 = vmatpush1.bf16.msra.mxu0 0
      %1520 = vmatprep.subr.bf16.mxu0 0
      %1521 = vmatpush1.bf16.msra.mxu0 0
      %1522 = vmatprep.subr.bf16.mxu0 0
      %1523 = vmatpush1.bf16.msra.mxu0 0
      %1524 = vmatprep.subr.bf16.mxu0 0
      %1525 = vmatpush1.bf16.msra.mxu0 0
      %1526 = vmatprep.subr.bf16.mxu0 0
      %1527 = vmatpush1.bf16.msra.mxu0 0
      %1528 = vmatprep.subr.bf16.mxu0 0
      %1529 = vmatpush1.bf16.msra.mxu0 %v1510
      %1530 = vmatprep.subr.bf16.mxu0 0
      %1531 = vmatpush1.bf16.msra.mxu0 %v1509
      %1532 = vmatprep.subr.bf16.mxu0 0
      %1533 = vmatpush2.bf16.msra.mxu0 0
      %1534 = vmatprep.subr.bf16.mxu0 0
      %1535 = vmatpush2.bf16.msra.mxu0 0
      %1536 = vmatprep.subr.bf16.mxu0 0
      %1537 = vmatpush2.bf16.msra.mxu0 0
      %1538 = vmatprep.subr.bf16.mxu0 0
      %1539 = vmatpush2.bf16.msra.mxu0 0
      %1540 = vmatprep.subr.bf16.mxu0 0
      %1541 = vmatpush2.bf16.msra.mxu0 0
      %1542 = vmatprep.subr.bf16.mxu0 0
      %1543 = vmatpush2.bf16.msra.mxu0 0
      %1544 = vmatprep.subr.bf16.mxu0 0
      %1545 = vmatpush2.bf16.msra.mxu0 0
      %1546 = vmatprep.subr.bf16.mxu0 0
      %1547 = vmatpush2.bf16.msra.mxu0 0
      %1548 = vmatprep.mubr.bf16.mxu0 0
      %1549 = vmatmul.mubr.bf16.gmra.mxu0 %v1514
      %v1550 = vpop.f32.mrf.mxu0
      %v1551 = vadd.f32 0.0, %v1550
      %v1552 = vpop.f32.mrf.mxu0
      %v1553 = vpop.f32.mrf.mxu0
      %v1554 = vpop.f32.mrf.mxu0
      %1555 = vdwg.mxu0
      %v1556 = vadd.f32 %v1372, %v1551
      %v1557 = vld [vmem:[#allocation4 + $0x2] sm:$0xff]
      %v1558 = vpack.c.bf16 %v1557, %v1557
      %s1559 = scalar_lea.vmem %s4, 32
      %v1560 = vld [vmem:[%s1559] sm:$0xf]
      %v1561 = vld [vmem:[%s1559 + $0x4] sm:$0xf]
      %v1562 = vld [vmem:[%s1559 + $0x8] sm:$0xf]
      %v1563 = vld [vmem:[%s1559 + $0xc] sm:$0xf]
      %v1568 = vunpack.c.l.b16 %v1560
      %v1569 = vunpack.c.l.b16 %v1561
      %v1570 = vunpack.c.l.b16 %v1562
      %v1571 = vunpack.c.l.b16 %v1563
      %v1572 = vpack.c.b16 %v1569, %v1568
      %v1573 = vpack.c.b16 %v1571, %v1570
      %v1577 = vsel %vm443, %v1558, 0
      %1579 = vmatprep.subr.bf16.mxu0 0
      %1580 = vmatpush1.bf16.msra.mxu0 0
      %1581 = vmatprep.subr.bf16.mxu0 0
      %1582 = vmatpush1.bf16.msra.mxu0 0
      %1583 = vmatprep.subr.bf16.mxu0 0
      %1584 = vmatpush1.bf16.msra.mxu0 0
      %1585 = vmatprep.subr.bf16.mxu0 0
      %1586 = vmatpush1.bf16.msra.mxu0 0
      %1587 = vmatprep.subr.bf16.mxu0 0
      %1588 = vmatpush1.bf16.msra.mxu0 0
      %1589 = vmatprep.subr.bf16.mxu0 0
      %1590 = vmatpush1.bf16.msra.mxu0 0
      %1591 = vmatprep.subr.bf16.mxu0 0
      %1592 = vmatpush1.bf16.msra.mxu0 %v1573
      %1593 = vmatprep.subr.bf16.mxu0 0
      %1594 = vmatpush1.bf16.msra.mxu0 %v1572
      %1595 = vmatprep.subr.bf16.mxu0 0
      %1596 = vmatpush2.bf16.msra.mxu0 0
      %1597 = vmatprep.subr.bf16.mxu0 0
      %1598 = vmatpush2.bf16.msra.mxu0 0
      %1599 = vmatprep.subr.bf16.mxu0 0
      %1600 = vmatpush2.bf16.msra.mxu0 0
      %1601 = vmatprep.subr.bf16.mxu0 0
      %1602 = vmatpush2.bf16.msra.mxu0 0
      %1603 = vmatprep.subr.bf16.mxu0 0
      %1604 = vmatpush2.bf16.msra.mxu0 0
      %1605 = vmatprep.subr.bf16.mxu0 0
      %1606 = vmatpush2.bf16.msra.mxu0 0
      %1607 = vmatprep.subr.bf16.mxu0 0
      %1608 = vmatpush2.bf16.msra.mxu0 0
      %1609 = vmatprep.subr.bf16.mxu0 0
      %1610 = vmatpush2.bf16.msra.mxu0 0
      %1611 = vmatprep.mubr.bf16.mxu0 0
      %1612 = vmatmul.mubr.bf16.gmra.mxu0 %v1577
      %v1613 = vpop.f32.mrf.mxu0
      %v1614 = vadd.f32 0.0, %v1613
      %v1615 = vpop.f32.mrf.mxu0
      %v1616 = vpop.f32.mrf.mxu0
      %v1617 = vpop.f32.mrf.mxu0
      %1618 = vdwg.mxu0
      %v1619 = vadd.f32 %v1489, %v1614
      %v1620 = vld [vmem:[#allocation3 + $0x3] sm:$0xff]
      %v1621 = vpack.c.bf16 %v1620, %v1620
      %s1622 = scalar_lea.vmem %s3, 48
      %v1623 = vld [vmem:[%s1622] sm:$0xf]
      %v1624 = vld [vmem:[%s1622 + $0x4] sm:$0xf]
      %v1625 = vld [vmem:[%s1622 + $0x8] sm:$0xf]
      %v1626 = vld [vmem:[%s1622 + $0xc] sm:$0xf]
      %v1631 = vunpack.c.l.b16 %v1623
      %v1632 = vunpack.c.l.b16 %v1624
      %v1633 = vunpack.c.l.b16 %v1625
      %v1634 = vunpack.c.l.b16 %v1626
      %v1635 = vpack.c.b16 %v1632, %v1631
      %v1636 = vpack.c.b16 %v1634, %v1633
      %v1640 = vsel %vm443, %v1621, 0
      %1642 = vmatprep.subr.bf16.mxu0 0
      %1643 = vmatpush1.bf16.msra.mxu0 0
      %1644 = vmatprep.subr.bf16.mxu0 0
      %1645 = vmatpush1.bf16.msra.mxu0 0
      %1646 = vmatprep.subr.bf16.mxu0 0
      %1647 = vmatpush1.bf16.msra.mxu0 0
      %1648 = vmatprep.subr.bf16.mxu0 0
      %1649 = vmatpush1.bf16.msra.mxu0 0
      %1650 = vmatprep.subr.bf16.mxu0 0
      %1651 = vmatpush1.bf16.msra.mxu0 0
      %1652 = vmatprep.subr.bf16.mxu0 0
      %1653 = vmatpush1.bf16.msra.mxu0 0
      %1654 = vmatprep.subr.bf16.mxu0 0
      %1655 = vmatpush1.bf16.msra.mxu0 %v1636
      %1656 = vmatprep.subr.bf16.mxu0 0
      %1657 = vmatpush1.bf16.msra.mxu0 %v1635
      %1658 = vmatprep.subr.bf16.mxu0 0
      %1659 = vmatpush2.bf16.msra.mxu0 0
      %1660 = vmatprep.subr.bf16.mxu0 0
      %1661 = vmatpush2.bf16.msra.mxu0 0
      %1662 = vmatprep.subr.bf16.mxu0 0
      %1663 = vmatpush2.bf16.msra.mxu0 0
      %1664 = vmatprep.subr.bf16.mxu0 0
      %1665 = vmatpush2.bf16.msra.mxu0 0
      %1666 = vmatprep.subr.bf16.mxu0 0
      %1667 = vmatpush2.bf16.msra.mxu0 0
      %1668 = vmatprep.subr.bf16.mxu0 0
      %1669 = vmatpush2.bf16.msra.mxu0 0
      %1670 = vmatprep.subr.bf16.mxu0 0
      %1671 = vmatpush2.bf16.msra.mxu0 0
      %1672 = vmatprep.subr.bf16.mxu0 0
      %1673 = vmatpush2.bf16.msra.mxu0 0
      %1674 = vmatprep.mubr.bf16.mxu0 0
      %1675 = vmatmul.mubr.bf16.gmra.mxu0 %v1640
      %v1676 = vpop.f32.mrf.mxu0
      %v1677 = vadd.f32 0.0, %v1676
      %v1678 = vpop.f32.mrf.mxu0
      %v1679 = vpop.f32.mrf.mxu0
      %v1680 = vpop.f32.mrf.mxu0
      %1681 = vdwg.mxu0
      %v1682 = vadd.f32 %v1556, %v1677
      %v1683 = vld [vmem:[#allocation4 + $0x3] sm:$0xff]
      %v1684 = vpack.c.bf16 %v1683, %v1683
      %s1685 = scalar_lea.vmem %s4, 48
      %v1686 = vld [vmem:[%s1685] sm:$0xf]
      %v1687 = vld [vmem:[%s1685 + $0x4] sm:$0xf]
      %v1688 = vld [vmem:[%s1685 + $0x8] sm:$0xf]
      %v1689 = vld [vmem:[%s1685 + $0xc] sm:$0xf]
      %v1694 = vunpack.c.l.b16 %v1686
      %v1695 = vunpack.c.l.b16 %v1687
      %v1696 = vunpack.c.l.b16 %v1688
      %v1697 = vunpack.c.l.b16 %v1689
      %v1698 = vpack.c.b16 %v1695, %v1694
      %v1699 = vpack.c.b16 %v1697, %v1696
      %v1703 = vsel %vm443, %v1684, 0
      %1705 = vmatprep.subr.bf16.mxu0 0
      %1706 = vmatpush1.bf16.msra.mxu0 0
      %1707 = vmatprep.subr.bf16.mxu0 0
      %1708 = vmatpush1.bf16.msra.mxu0 0
      %1709 = vmatprep.subr.bf16.mxu0 0
      %1710 = vmatpush1.bf16.msra.mxu0 0
      %1711 = vmatprep.subr.bf16.mxu0 0
      %1712 = vmatpush1.bf16.msra.mxu0 0
      %1713 = vmatprep.subr.bf16.mxu0 0
      %1714 = vmatpush1.bf16.msra.mxu0 0
      %1715 = vmatprep.subr.bf16.mxu0 0
      %1716 = vmatpush1.bf16.msra.mxu0 0
      %1717 = vmatprep.subr.bf16.mxu0 0
      %1718 = vmatpush1.bf16.msra.mxu0 %v1699
      %1719 = vmatprep.subr.bf16.mxu0 0
      %1720 = vmatpush1.bf16.msra.mxu0 %v1698
      %1721 = vmatprep.subr.bf16.mxu0 0
      %1722 = vmatpush2.bf16.msra.mxu0 0
      %1723 = vmatprep.subr.bf16.mxu0 0
      %1724 = vmatpush2.bf16.msra.mxu0 0
      %1725 = vmatprep.subr.bf16.mxu0 0
      %1726 = vmatpush2.bf16.msra.mxu0 0
      %1727 = vmatprep.subr.bf16.mxu0 0
      %1728 = vmatpush2.bf16.msra.mxu0 0
      %1729 = vmatprep.subr.bf16.mxu0 0
      %1730 = vmatpush2.bf16.msra.mxu0 0
      %1731 = vmatprep.subr.bf16.mxu0 0
      %1732 = vmatpush2.bf16.msra.mxu0 0
      %1733 = vmatprep.subr.bf16.mxu0 0
      %1734 = vmatpush2.bf16.msra.mxu0 0
      %1735 = vmatprep.subr.bf16.mxu0 0
      %1736 = vmatpush2.bf16.msra.mxu0 0
      %1737 = vmatprep.mubr.bf16.mxu0 0
      %1738 = vmatmul.mubr.bf16.gmra.mxu0 %v1703
      %v1739 = vpop.f32.mrf.mxu0
      %v1740 = vadd.f32 0.0, %v1739
      %v1741 = vpop.f32.mrf.mxu0
      %v1742 = vpop.f32.mrf.mxu0
      %v1743 = vpop.f32.mrf.mxu0
      %1744 = vdwg.mxu0
      %v1745 = vadd.f32 %v1619, %v1740
      %v1746 = vld [vmem:[#allocation3 + $0x4] sm:$0xff]
      %v1747 = vpack.c.bf16 %v1746, %v1746
      %s1748 = scalar_lea.vmem %s3, 64
      %v1749 = vld [vmem:[%s1748] sm:$0xf]
      %v1750 = vld [vmem:[%s1748 + $0x4] sm:$0xf]
      %v1751 = vld [vmem:[%s1748 + $0x8] sm:$0xf]
      %v1752 = vld [vmem:[%s1748 + $0xc] sm:$0xf]
      %v1757 = vunpack.c.l.b16 %v1749
      %v1758 = vunpack.c.l.b16 %v1750
      %v1759 = vunpack.c.l.b16 %v1751
      %v1760 = vunpack.c.l.b16 %v1752
      %v1761 = vpack.c.b16 %v1758, %v1757
      %v1762 = vpack.c.b16 %v1760, %v1759
      %v1766 = vsel %vm443, %v1747, 0
      %1768 = vmatprep.subr.bf16.mxu0 0
      %1769 = vmatpush1.bf16.msra.mxu0 0
      %1770 = vmatprep.subr.bf16.mxu0 0
      %1771 = vmatpush1.bf16.msra.mxu0 0
      %1772 = vmatprep.subr.bf16.mxu0 0
      %1773 = vmatpush1.bf16.msra.mxu0 0
      %1774 = vmatprep.subr.bf16.mxu0 0
      %1775 = vmatpush1.bf16.msra.mxu0 0
      %1776 = vmatprep.subr.bf16.mxu0 0
      %1777 = vmatpush1.bf16.msra.mxu0 0
      %1778 = vmatprep.subr.bf16.mxu0 0
      %1779 = vmatpush1.bf16.msra.mxu0 0
      %1780 = vmatprep.subr.bf16.mxu0 0
      %1781 = vmatpush1.bf16.msra.mxu0 %v1762
      %1782 = vmatprep.subr.bf16.mxu0 0
      %1783 = vmatpush1.bf16.msra.mxu0 %v1761
      %1784 = vmatprep.subr.bf16.mxu0 0
      %1785 = vmatpush2.bf16.msra.mxu0 0
      %1786 = vmatprep.subr.bf16.mxu0 0
      %1787 = vmatpush2.bf16.msra.mxu0 0
      %1788 = vmatprep.subr.bf16.mxu0 0
      %1789 = vmatpush2.bf16.msra.mxu0 0
      %1790 = vmatprep.subr.bf16.mxu0 0
      %1791 = vmatpush2.bf16.msra.mxu0 0
      %1792 = vmatprep.subr.bf16.mxu0 0
      %1793 = vmatpush2.bf16.msra.mxu0 0
      %1794 = vmatprep.subr.bf16.mxu0 0
      %1795 = vmatpush2.bf16.msra.mxu0 0
      %1796 = vmatprep.subr.bf16.mxu0 0
      %1797 = vmatpush2.bf16.msra.mxu0 0
      %1798 = vmatprep.subr.bf16.mxu0 0
      %1799 = vmatpush2.bf16.msra.mxu0 0
      %1800 = vmatprep.mubr.bf16.mxu0 0
      %1801 = vmatmul.mubr.bf16.gmra.mxu0 %v1766
      %v1802 = vpop.f32.mrf.mxu0
      %v1803 = vadd.f32 0.0, %v1802
      %v1804 = vpop.f32.mrf.mxu0
      %v1805 = vpop.f32.mrf.mxu0
      %v1806 = vpop.f32.mrf.mxu0
      %1807 = vdwg.mxu0
      %v1808 = vadd.f32 %v1682, %v1803
      %v1809 = vld [vmem:[#allocation4 + $0x4] sm:$0xff]
      %v1810 = vpack.c.bf16 %v1809, %v1809
      %s1811 = scalar_lea.vmem %s4, 64
      %v1812 = vld [vmem:[%s1811] sm:$0xf]
      %v1813 = vld [vmem:[%s1811 + $0x4] sm:$0xf]
      %v1814 = vld [vmem:[%s1811 + $0x8] sm:$0xf]
      %v1815 = vld [vmem:[%s1811 + $0xc] sm:$0xf]
      %v1820 = vunpack.c.l.b16 %v1812
      %v1821 = vunpack.c.l.b16 %v1813
      %v1822 = vunpack.c.l.b16 %v1814
      %v1823 = vunpack.c.l.b16 %v1815
      %v1824 = vpack.c.b16 %v1821, %v1820
      %v1825 = vpack.c.b16 %v1823, %v1822
      %v1829 = vsel %vm443, %v1810, 0
      %1831 = vmatprep.subr.bf16.mxu0 0
      %1832 = vmatpush1.bf16.msra.mxu0 0
      %1833 = vmatprep.subr.bf16.mxu0 0
      %1834 = vmatpush1.bf16.msra.mxu0 0
      %1835 = vmatprep.subr.bf16.mxu0 0
      %1836 = vmatpush1.bf16.msra.mxu0 0
      %1837 = vmatprep.subr.bf16.mxu0 0
      %1838 = vmatpush1.bf16.msra.mxu0 0
      %1839 = vmatprep.subr.bf16.mxu0 0
      %1840 = vmatpush1.bf16.msra.mxu0 0
      %1841 = vmatprep.subr.bf16.mxu0 0
      %1842 = vmatpush1.bf16.msra.mxu0 0
      %1843 = vmatprep.subr.bf16.mxu0 0
      %1844 = vmatpush1.bf16.msra.mxu0 %v1825
      %1845 = vmatprep.subr.bf16.mxu0 0
      %1846 = vmatpush1.bf16.msra.mxu0 %v1824
      %1847 = vmatprep.subr.bf16.mxu0 0
      %1848 = vmatpush2.bf16.msra.mxu0 0
      %1849 = vmatprep.subr.bf16.mxu0 0
      %1850 = vmatpush2.bf16.msra.mxu0 0
      %1851 = vmatprep.subr.bf16.mxu0 0
      %1852 = vmatpush2.bf16.msra.mxu0 0
      %1853 = vmatprep.subr.bf16.mxu0 0
      %1854 = vmatpush2.bf16.msra.mxu0 0
      %1855 = vmatprep.subr.bf16.mxu0 0
      %1856 = vmatpush2.bf16.msra.mxu0 0
      %1857 = vmatprep.subr.bf16.mxu0 0
      %1858 = vmatpush2.bf16.msra.mxu0 0
      %1859 = vmatprep.subr.bf16.mxu0 0
      %1860 = vmatpush2.bf16.msra.mxu0 0
      %1861 = vmatprep.subr.bf16.mxu0 0
      %1862 = vmatpush2.bf16.msra.mxu0 0
      %1863 = vmatprep.mubr.bf16.mxu0 0
      %1864 = vmatmul.mubr.bf16.gmra.mxu0 %v1829
      %v1865 = vpop.f32.mrf.mxu0
      %v1866 = vadd.f32 0.0, %v1865
      %v1867 = vpop.f32.mrf.mxu0
      %v1868 = vpop.f32.mrf.mxu0
      %v1869 = vpop.f32.mrf.mxu0
      %1870 = vdwg.mxu0
      %v1871 = vadd.f32 %v1745, %v1866
      %v1872 = vld [vmem:[#allocation3 + $0x5] sm:$0xff]
      %v1873 = vpack.c.bf16 %v1872, %v1872
      %s1874 = scalar_lea.vmem %s3, 80
      %v1875 = vld [vmem:[%s1874] sm:$0xf]
      %v1876 = vld [vmem:[%s1874 + $0x4] sm:$0xf]
      %v1877 = vld [vmem:[%s1874 + $0x8] sm:$0xf]
      %v1878 = vld [vmem:[%s1874 + $0xc] sm:$0xf]
      %v1883 = vunpack.c.l.b16 %v1875
      %v1884 = vunpack.c.l.b16 %v1876
      %v1885 = vunpack.c.l.b16 %v1877
      %v1886 = vunpack.c.l.b16 %v1878
      %v1887 = vpack.c.b16 %v1884, %v1883
      %v1888 = vpack.c.b16 %v1886, %v1885
      %v1892 = vsel %vm443, %v1873, 0
      %1894 = vmatprep.subr.bf16.mxu0 0
      %1895 = vmatpush1.bf16.msra.mxu0 0
      %1896 = vmatprep.subr.bf16.mxu0 0
      %1897 = vmatpush1.bf16.msra.mxu0 0
      %1898 = vmatprep.subr.bf16.mxu0 0
      %1899 = vmatpush1.bf16.msra.mxu0 0
      %1900 = vmatprep.subr.bf16.mxu0 0
      %1901 = vmatpush1.bf16.msra.mxu0 0
      %1902 = vmatprep.subr.bf16.mxu0 0
      %1903 = vmatpush1.bf16.msra.mxu0 0
      %1904 = vmatprep.subr.bf16.mxu0 0
      %1905 = vmatpush1.bf16.msra.mxu0 0
      %1906 = vmatprep.subr.bf16.mxu0 0
      %1907 = vmatpush1.bf16.msra.mxu0 %v1888
      %1908 = vmatprep.subr.bf16.mxu0 0
      %1909 = vmatpush1.bf16.msra.mxu0 %v1887
      %1910 = vmatprep.subr.bf16.mxu0 0
      %1911 = vmatpush2.bf16.msra.mxu0 0
      %1912 = vmatprep.subr.bf16.mxu0 0
      %1913 = vmatpush2.bf16.msra.mxu0 0
      %1914 = vmatprep.subr.bf16.mxu0 0
      %1915 = vmatpush2.bf16.msra.mxu0 0
      %1916 = vmatprep.subr.bf16.mxu0 0
      %1917 = vmatpush2.bf16.msra.mxu0 0
      %1918 = vmatprep.subr.bf16.mxu0 0
      %1919 = vmatpush2.bf16.msra.mxu0 0
      %1920 = vmatprep.subr.bf16.mxu0 0
      %1921 = vmatpush2.bf16.msra.mxu0 0
      %1922 = vmatprep.subr.bf16.mxu0 0
      %1923 = vmatpush2.bf16.msra.mxu0 0
      %1924 = vmatprep.subr.bf16.mxu0 0
      %1925 = vmatpush2.bf16.msra.mxu0 0
      %1926 = vmatprep.mubr.bf16.mxu0 0
      %1927 = vmatmul.mubr.bf16.gmra.mxu0 %v1892
      %v1928 = vpop.f32.mrf.mxu0
      %v1929 = vadd.f32 0.0, %v1928
      %v1930 = vpop.f32.mrf.mxu0
      %v1931 = vpop.f32.mrf.mxu0
      %v1932 = vpop.f32.mrf.mxu0
      %1933 = vdwg.mxu0
      %v1934 = vadd.f32 %v1808, %v1929
      %v1935 = vld [vmem:[#allocation4 + $0x5] sm:$0xff]
      %v1936 = vpack.c.bf16 %v1935, %v1935
      %s1937 = scalar_lea.vmem %s4, 80
      %v1938 = vld [vmem:[%s1937] sm:$0xf]
      %v1939 = vld [vmem:[%s1937 + $0x4] sm:$0xf]
      %v1940 = vld [vmem:[%s1937 + $0x8] sm:$0xf]
      %v1941 = vld [vmem:[%s1937 + $0xc] sm:$0xf]
      %v1946 = vunpack.c.l.b16 %v1938
      %v1947 = vunpack.c.l.b16 %v1939
      %v1948 = vunpack.c.l.b16 %v1940
      %v1949 = vunpack.c.l.b16 %v1941
      %v1950 = vpack.c.b16 %v1947, %v1946
      %v1951 = vpack.c.b16 %v1949, %v1948
      %v1955 = vsel %vm443, %v1936, 0
      %1957 = vmatprep.subr.bf16.mxu0 0
      %1958 = vmatpush1.bf16.msra.mxu0 0
      %1959 = vmatprep.subr.bf16.mxu0 0
      %1960 = vmatpush1.bf16.msra.mxu0 0
      %1961 = vmatprep.subr.bf16.mxu0 0
      %1962 = vmatpush1.bf16.msra.mxu0 0
      %1963 = vmatprep.subr.bf16.mxu0 0
      %1964 = vmatpush1.bf16.msra.mxu0 0
      %1965 = vmatprep.subr.bf16.mxu0 0
      %1966 = vmatpush1.bf16.msra.mxu0 0
      %1967 = vmatprep.subr.bf16.mxu0 0
      %1968 = vmatpush1.bf16.msra.mxu0 0
      %1969 = vmatprep.subr.bf16.mxu0 0
      %1970 = vmatpush1.bf16.msra.mxu0 %v1951
      %1971 = vmatprep.subr.bf16.mxu0 0
      %1972 = vmatpush1.bf16.msra.mxu0 %v1950
      %1973 = vmatprep.subr.bf16.mxu0 0
      %1974 = vmatpush2.bf16.msra.mxu0 0
      %1975 = vmatprep.subr.bf16.mxu0 0
      %1976 = vmatpush2.bf16.msra.mxu0 0
      %1977 = vmatprep.subr.bf16.mxu0 0
      %1978 = vmatpush2.bf16.msra.mxu0 0
      %1979 = vmatprep.subr.bf16.mxu0 0
      %1980 = vmatpush2.bf16.msra.mxu0 0
      %1981 = vmatprep.subr.bf16.mxu0 0
      %1982 = vmatpush2.bf16.msra.mxu0 0
      %1983 = vmatprep.subr.bf16.mxu0 0
      %1984 = vmatpush2.bf16.msra.mxu0 0
      %1985 = vmatprep.subr.bf16.mxu0 0
      %1986 = vmatpush2.bf16.msra.mxu0 0
      %1987 = vmatprep.subr.bf16.mxu0 0
      %1988 = vmatpush2.bf16.msra.mxu0 0
      %1989 = vmatprep.mubr.bf16.mxu0 0
      %1990 = vmatmul.mubr.bf16.gmra.mxu0 %v1955
      %v1991 = vpop.f32.mrf.mxu0
      %v1992 = vadd.f32 0.0, %v1991
      %v1993 = vpop.f32.mrf.mxu0
      %v1994 = vpop.f32.mrf.mxu0
      %v1995 = vpop.f32.mrf.mxu0
      %1996 = vdwg.mxu0
      %v1997 = vadd.f32 %v1871, %v1992
      %v1998 = vld [vmem:[#allocation3 + $0x6] sm:$0xff]
      %v1999 = vpack.c.bf16 %v1998, %v1998
      %s2000 = scalar_lea.vmem %s3, 96
      %v2001 = vld [vmem:[%s2000] sm:$0xf]
      %v2002 = vld [vmem:[%s2000 + $0x4] sm:$0xf]
      %v2003 = vld [vmem:[%s2000 + $0x8] sm:$0xf]
      %v2004 = vld [vmem:[%s2000 + $0xc] sm:$0xf]
      %v2009 = vunpack.c.l.b16 %v2001
      %v2010 = vunpack.c.l.b16 %v2002
      %v2011 = vunpack.c.l.b16 %v2003
      %v2012 = vunpack.c.l.b16 %v2004
      %v2013 = vpack.c.b16 %v2010, %v2009
      %v2014 = vpack.c.b16 %v2012, %v2011
      %v2018 = vsel %vm443, %v1999, 0
      %2020 = vmatprep.subr.bf16.mxu0 0
      %2021 = vmatpush1.bf16.msra.mxu0 0
      %2022 = vmatprep.subr.bf16.mxu0 0
      %2023 = vmatpush1.bf16.msra.mxu0 0
      %2024 = vmatprep.subr.bf16.mxu0 0
      %2025 = vmatpush1.bf16.msra.mxu0 0
      %2026 = vmatprep.subr.bf16.mxu0 0
      %2027 = vmatpush1.bf16.msra.mxu0 0
      %2028 = vmatprep.subr.bf16.mxu0 0
      %2029 = vmatpush1.bf16.msra.mxu0 0
      %2030 = vmatprep.subr.bf16.mxu0 0
      %2031 = vmatpush1.bf16.msra.mxu0 0
      %2032 = vmatprep.subr.bf16.mxu0 0
      %2033 = vmatpush1.bf16.msra.mxu0 %v2014
      %2034 = vmatprep.subr.bf16.mxu0 0
      %2035 = vmatpush1.bf16.msra.mxu0 %v2013
      %2036 = vmatprep.subr.bf16.mxu0 0
      %2037 = vmatpush2.bf16.msra.mxu0 0
      %2038 = vmatprep.subr.bf16.mxu0 0
      %2039 = vmatpush2.bf16.msra.mxu0 0
      %2040 = vmatprep.subr.bf16.mxu0 0
      %2041 = vmatpush2.bf16.msra.mxu0 0
      %2042 = vmatprep.subr.bf16.mxu0 0
      %2043 = vmatpush2.bf16.msra.mxu0 0
      %2044 = vmatprep.subr.bf16.mxu0 0
      %2045 = vmatpush2.bf16.msra.mxu0 0
      %2046 = vmatprep.subr.bf16.mxu0 0
      %2047 = vmatpush2.bf16.msra.mxu0 0
      %2048 = vmatprep.subr.bf16.mxu0 0
      %2049 = vmatpush2.bf16.msra.mxu0 0
      %2050 = vmatprep.subr.bf16.mxu0 0
      %2051 = vmatpush2.bf16.msra.mxu0 0
      %2052 = vmatprep.mubr.bf16.mxu0 0
      %2053 = vmatmul.mubr.bf16.gmra.mxu0 %v2018
      %v2054 = vpop.f32.mrf.mxu0
      %v2055 = vadd.f32 0.0, %v2054
      %v2056 = vpop.f32.mrf.mxu0
      %v2057 = vpop.f32.mrf.mxu0
      %v2058 = vpop.f32.mrf.mxu0
      %2059 = vdwg.mxu0
      %v2060 = vadd.f32 %v1934, %v2055
      %v2061 = vld [vmem:[#allocation4 + $0x6] sm:$0xff]
      %v2062 = vpack.c.bf16 %v2061, %v2061
      %s2063 = scalar_lea.vmem %s4, 96
      %v2064 = vld [vmem:[%s2063] sm:$0xf]
      %v2065 = vld [vmem:[%s2063 + $0x4] sm:$0xf]
      %v2066 = vld [vmem:[%s2063 + $0x8] sm:$0xf]
      %v2067 = vld [vmem:[%s2063 + $0xc] sm:$0xf]
      %v2072 = vunpack.c.l.b16 %v2064
      %v2073 = vunpack.c.l.b16 %v2065
      %v2074 = vunpack.c.l.b16 %v2066
      %v2075 = vunpack.c.l.b16 %v2067
      %v2076 = vpack.c.b16 %v2073, %v2072
      %v2077 = vpack.c.b16 %v2075, %v2074
      %v2081 = vsel %vm443, %v2062, 0
      %2083 = vmatprep.subr.bf16.mxu0 0
      %2084 = vmatpush1.bf16.msra.mxu0 0
      %2085 = vmatprep.subr.bf16.mxu0 0
      %2086 = vmatpush1.bf16.msra.mxu0 0
      %2087 = vmatprep.subr.bf16.mxu0 0
      %2088 = vmatpush1.bf16.msra.mxu0 0
      %2089 = vmatprep.subr.bf16.mxu0 0
      %2090 = vmatpush1.bf16.msra.mxu0 0
      %2091 = vmatprep.subr.bf16.mxu0 0
      %2092 = vmatpush1.bf16.msra.mxu0 0
      %2093 = vmatprep.subr.bf16.mxu0 0
      %2094 = vmatpush1.bf16.msra.mxu0 0
      %2095 = vmatprep.subr.bf16.mxu0 0
      %2096 = vmatpush1.bf16.msra.mxu0 %v2077
      %2097 = vmatprep.subr.bf16.mxu0 0
      %2098 = vmatpush1.bf16.msra.mxu0 %v2076
      %2099 = vmatprep.subr.bf16.mxu0 0
      %2100 = vmatpush2.bf16.msra.mxu0 0
      %2101 = vmatprep.subr.bf16.mxu0 0
      %2102 = vmatpush2.bf16.msra.mxu0 0
      %2103 = vmatprep.subr.bf16.mxu0 0
      %2104 = vmatpush2.bf16.msra.mxu0 0
      %2105 = vmatprep.subr.bf16.mxu0 0
      %2106 = vmatpush2.bf16.msra.mxu0 0
      %2107 = vmatprep.subr.bf16.mxu0 0
      %2108 = vmatpush2.bf16.msra.mxu0 0
      %2109 = vmatprep.subr.bf16.mxu0 0
      %2110 = vmatpush2.bf16.msra.mxu0 0
      %2111 = vmatprep.subr.bf16.mxu0 0
      %2112 = vmatpush2.bf16.msra.mxu0 0
      %2113 = vmatprep.subr.bf16.mxu0 0
      %2114 = vmatpush2.bf16.msra.mxu0 0
      %2115 = vmatprep.mubr.bf16.mxu0 0
      %2116 = vmatmul.mubr.bf16.gmra.mxu0 %v2081
      %v2117 = vpop.f32.mrf.mxu0
      %v2118 = vadd.f32 0.0, %v2117
      %v2119 = vpop.f32.mrf.mxu0
      %v2120 = vpop.f32.mrf.mxu0
      %v2121 = vpop.f32.mrf.mxu0
      %2122 = vdwg.mxu0
      %v2123 = vadd.f32 %v1997, %v2118
      %v2124 = vld [vmem:[#allocation3 + $0x7] sm:$0xff]
      %v2125 = vpack.c.bf16 %v2124, %v2124
      %s2126 = scalar_lea.vmem %s3, 112
      %v2127 = vld [vmem:[%s2126] sm:$0xf]
      %v2128 = vld [vmem:[%s2126 + $0x4] sm:$0xf]
      %v2129 = vld [vmem:[%s2126 + $0x8] sm:$0xf]
      %v2130 = vld [vmem:[%s2126 + $0xc] sm:$0xf]
      %v2135 = vunpack.c.l.b16 %v2127
      %v2136 = vunpack.c.l.b16 %v2128
      %v2137 = vunpack.c.l.b16 %v2129
      %v2138 = vunpack.c.l.b16 %v2130
      %v2139 = vpack.c.b16 %v2136, %v2135
      %v2140 = vpack.c.b16 %v2138, %v2137
      %v2144 = vsel %vm443, %v2125, 0
      %2146 = vmatprep.subr.bf16.mxu0 0
      %2147 = vmatpush1.bf16.msra.mxu0 0
      %2148 = vmatprep.subr.bf16.mxu0 0
      %2149 = vmatpush1.bf16.msra.mxu0 0
      %2150 = vmatprep.subr.bf16.mxu0 0
      %2151 = vmatpush1.bf16.msra.mxu0 0
      %2152 = vmatprep.subr.bf16.mxu0 0
      %2153 = vmatpush1.bf16.msra.mxu0 0
      %2154 = vmatprep.subr.bf16.mxu0 0
      %2155 = vmatpush1.bf16.msra.mxu0 0
      %2156 = vmatprep.subr.bf16.mxu0 0
      %2157 = vmatpush1.bf16.msra.mxu0 0
      %2158 = vmatprep.subr.bf16.mxu0 0
      %2159 = vmatpush1.bf16.msra.mxu0 %v2140
      %2160 = vmatprep.subr.bf16.mxu0 0
      %2161 = vmatpush1.bf16.msra.mxu0 %v2139
      %2162 = vmatprep.subr.bf16.mxu0 0
      %2163 = vmatpush2.bf16.msra.mxu0 0
      %2164 = vmatprep.subr.bf16.mxu0 0
      %2165 = vmatpush2.bf16.msra.mxu0 0
      %2166 = vmatprep.subr.bf16.mxu0 0
      %2167 = vmatpush2.bf16.msra.mxu0 0
      %2168 = vmatprep.subr.bf16.mxu0 0
      %2169 = vmatpush2.bf16.msra.mxu0 0
      %2170 = vmatprep.subr.bf16.mxu0 0
      %2171 = vmatpush2.bf16.msra.mxu0 0
      %2172 = vmatprep.subr.bf16.mxu0 0
      %2173 = vmatpush2.bf16.msra.mxu0 0
      %2174 = vmatprep.subr.bf16.mxu0 0
      %2175 = vmatpush2.bf16.msra.mxu0 0
      %2176 = vmatprep.subr.bf16.mxu0 0
      %2177 = vmatpush2.bf16.msra.mxu0 0
      %2178 = vmatprep.mubr.bf16.mxu0 0
      %2179 = vmatmul.mubr.bf16.gmra.mxu0 %v2144
      %v2180 = vpop.f32.mrf.mxu0
      %v2181 = vadd.f32 0.0, %v2180
      %v2182 = vpop.f32.mrf.mxu0
      %v2183 = vpop.f32.mrf.mxu0
      %v2184 = vpop.f32.mrf.mxu0
      %2185 = vdwg.mxu0
      %v2186 = vadd.f32 %v2060, %v2181
      %v2187 = vld [vmem:[#allocation4 + $0x7] sm:$0xff]
      %v2188 = vpack.c.bf16 %v2187, %v2187
      %s2189 = scalar_lea.vmem %s4, 112
      %v2190 = vld [vmem:[%s2189] sm:$0xf]
      %v2191 = vld [vmem:[%s2189 + $0x4] sm:$0xf]
      %v2192 = vld [vmem:[%s2189 + $0x8] sm:$0xf]
      %v2193 = vld [vmem:[%s2189 + $0xc] sm:$0xf]
      %v2198 = vunpack.c.l.b16 %v2190
      %v2199 = vunpack.c.l.b16 %v2191
      %v2200 = vunpack.c.l.b16 %v2192
      %v2201 = vunpack.c.l.b16 %v2193
      %v2202 = vpack.c.b16 %v2199, %v2198
      %v2203 = vpack.c.b16 %v2201, %v2200
      %v2207 = vsel %vm443, %v2188, 0
      %2209 = vmatprep.subr.bf16.mxu0 0
      %2210 = vmatpush1.bf16.msra.mxu0 0
      %2211 = vmatprep.subr.bf16.mxu0 0
      %2212 = vmatpush1.bf16.msra.mxu0 0
      %2213 = vmatprep.subr.bf16.mxu0 0
      %2214 = vmatpush1.bf16.msra.mxu0 0
      %2215 = vmatprep.subr.bf16.mxu0 0
      %2216 = vmatpush1.bf16.msra.mxu0 0
      %2217 = vmatprep.subr.bf16.mxu0 0
      %2218 = vmatpush1.bf16.msra.mxu0 0
      %2219 = vmatprep.subr.bf16.mxu0 0
      %2220 = vmatpush1.bf16.msra.mxu0 0
      %2221 = vmatprep.subr.bf16.mxu0 0
      %2222 = vmatpush1.bf16.msra.mxu0 %v2203
      %2223 = vmatprep.subr.bf16.mxu0 0
      %2224 = vmatpush1.bf16.msra.mxu0 %v2202
      %2225 = vmatprep.subr.bf16.mxu0 0
      %2226 = vmatpush2.bf16.msra.mxu0 0
      %2227 = vmatprep.subr.bf16.mxu0 0
      %2228 = vmatpush2.bf16.msra.mxu0 0
      %2229 = vmatprep.subr.bf16.mxu0 0
      %2230 = vmatpush2.bf16.msra.mxu0 0
      %2231 = vmatprep.subr.bf16.mxu0 0
      %2232 = vmatpush2.bf16.msra.mxu0 0
      %2233 = vmatprep.subr.bf16.mxu0 0
      %2234 = vmatpush2.bf16.msra.mxu0 0
      %2235 = vmatprep.subr.bf16.mxu0 0
      %2236 = vmatpush2.bf16.msra.mxu0 0
      %2237 = vmatprep.subr.bf16.mxu0 0
      %2238 = vmatpush2.bf16.msra.mxu0 0
      %2239 = vmatprep.subr.bf16.mxu0 0
      %2240 = vmatpush2.bf16.msra.mxu0 0
      %2241 = vmatprep.mubr.bf16.mxu0 0
      %2242 = vmatmul.mubr.bf16.gmra.mxu0 %v2207
      %v2243 = vpop.f32.mrf.mxu0
      %v2244 = vadd.f32 0.0, %v2243
      %v2245 = vpop.f32.mrf.mxu0
      %v2246 = vpop.f32.mrf.mxu0
      %v2247 = vpop.f32.mrf.mxu0
      %2248 = vdwg.mxu0
      %v2249 = vadd.f32 %v2123, %v2244
      %v2250 = vpack.c.bf16 %v2186, %v2186
      %v2251 = vld [vmem:[%s5] sm:$0xf]
      %v2252 = vld [vmem:[%s5 + $0x4] sm:$0xf]
      %v2253 = vld [vmem:[%s5 + $0x8] sm:$0xf]
      %v2254 = vld [vmem:[%s5 + $0xc] sm:$0xf]
      %v2255 = vpack.c.bf16 %v2249, %v2249
      %v2256 = vld [vmem:[%s5 + $0x10] sm:$0xf]
      %v2257 = vld [vmem:[%s5 + $0x14] sm:$0xf]
      %v2258 = vld [vmem:[%s5 + $0x18] sm:$0xf]
      %v2259 = vld [vmem:[%s5 + $0x1c] sm:$0xf]
      %v2264 = vunpack.c.l.b16 %v2256
      %v2265 = vunpack.c.l.b16 %v2257
      %v2266 = vunpack.c.l.b16 %v2258
      %v2267 = vunpack.c.l.b16 %v2259
      %v2268 = vpack.c.b16 %v2265, %v2264
      %v2269 = vpack.c.b16 %v2267, %v2266
      %v2273 = vsel %vm443, %v2255, 0
      %2275 = vmatprep.subr.bf16.mxu0 0
      %2276 = vmatpush1.bf16.msra.mxu0 0
      %2277 = vmatprep.subr.bf16.mxu0 0
      %2278 = vmatpush1.bf16.msra.mxu0 0
      %2279 = vmatprep.subr.bf16.mxu0 0
      %2280 = vmatpush1.bf16.msra.mxu0 0
      %2281 = vmatprep.subr.bf16.mxu0 0
      %2282 = vmatpush1.bf16.msra.mxu0 0
      %2283 = vmatprep.subr.bf16.mxu0 0
      %2284 = vmatpush1.bf16.msra.mxu0 0
      %2285 = vmatprep.subr.bf16.mxu0 0
      %2286 = vmatpush1.bf16.msra.mxu0 0
      %2287 = vmatprep.subr.bf16.mxu0 0
      %2288 = vmatpush1.bf16.msra.mxu0 %v2269
      %2289 = vmatprep.subr.bf16.mxu0 0
      %2290 = vmatpush1.bf16.msra.mxu0 %v2268
      %2291 = vmatprep.subr.bf16.mxu0 0
      %2292 = vmatpush2.bf16.msra.mxu0 0
      %2293 = vmatprep.subr.bf16.mxu0 0
      %2294 = vmatpush2.bf16.msra.mxu0 0
      %2295 = vmatprep.subr.bf16.mxu0 0
      %2296 = vmatpush2.bf16.msra.mxu0 0
      %2297 = vmatprep.subr.bf16.mxu0 0
      %2298 = vmatpush2.bf16.msra.mxu0 0
      %2299 = vmatprep.subr.bf16.mxu0 0
      %2300 = vmatpush2.bf16.msra.mxu0 0
      %2301 = vmatprep.subr.bf16.mxu0 0
      %2302 = vmatpush2.bf16.msra.mxu0 0
      %2303 = vmatprep.subr.bf16.mxu0 0
      %2304 = vmatpush2.bf16.msra.mxu0 0
      %2305 = vmatprep.subr.bf16.mxu0 0
      %2306 = vmatpush2.bf16.msra.mxu0 0
      %2307 = vmatprep.mubr.bf16.mxu0 0
      %2308 = vmatmul.mubr.bf16.gmra.mxu0 %v2273
      %v2309 = vpop.f32.mrf.mxu0
      %v2310 = vadd.f32 0.0, %v2309
      %v2311 = vpop.f32.mrf.mxu0
      %v2312 = vpop.f32.mrf.mxu0
      %v2313 = vpop.f32.mrf.mxu0
      %2314 = vdwg.mxu0
      %v2319 = vunpack.c.l.b16 %v2251
      %v2320 = vunpack.c.l.b16 %v2252
      %v2321 = vunpack.c.l.b16 %v2253
      %v2322 = vunpack.c.l.b16 %v2254
      %v2323 = vpack.c.b16 %v2320, %v2319
      %v2324 = vpack.c.b16 %v2322, %v2321
      %v2328 = vsel %vm443, %v2250, 0
      %2330 = vmatprep.subr.bf16.mxu0 0
      %2331 = vmatpush1.bf16.msra.mxu0 0
      %2332 = vmatprep.subr.bf16.mxu0 0
      %2333 = vmatpush1.bf16.msra.mxu0 0
      %2334 = vmatprep.subr.bf16.mxu0 0
      %2335 = vmatpush1.bf16.msra.mxu0 0
      %2336 = vmatprep.subr.bf16.mxu0 0
      %2337 = vmatpush1.bf16.msra.mxu0 0
      %2338 = vmatprep.subr.bf16.mxu0 0
      %2339 = vmatpush1.bf16.msra.mxu0 0
      %2340 = vmatprep.subr.bf16.mxu0 0
      %2341 = vmatpush1.bf16.msra.mxu0 0
      %2342 = vmatprep.subr.bf16.mxu0 0
      %2343 = vmatpush1.bf16.msra.mxu0 %v2324
      %2344 = vmatprep.subr.bf16.mxu0 0
      %2345 = vmatpush1.bf16.msra.mxu0 %v2323
      %2346 = vmatprep.subr.bf16.mxu0 0
      %2347 = vmatpush2.bf16.msra.mxu0 0
      %2348 = vmatprep.subr.bf16.mxu0 0
      %2349 = vmatpush2.bf16.msra.mxu0 0
      %2350 = vmatprep.subr.bf16.mxu0 0
      %2351 = vmatpush2.bf16.msra.mxu0 0
      %2352 = vmatprep.subr.bf16.mxu0 0
      %2353 = vmatpush2.bf16.msra.mxu0 0
      %2354 = vmatprep.subr.bf16.mxu0 0
      %2355 = vmatpush2.bf16.msra.mxu0 0
      %2356 = vmatprep.subr.bf16.mxu0 0
      %2357 = vmatpush2.bf16.msra.mxu0 0
      %2358 = vmatprep.subr.bf16.mxu0 0
      %2359 = vmatpush2.bf16.msra.mxu0 0
      %2360 = vmatprep.subr.bf16.mxu0 0
      %2361 = vmatpush2.bf16.msra.mxu0 0
      %2362 = vmatprep.mubr.bf16.mxu0 0
      %2363 = vmatmul.mubr.bf16.gmra.mxu0 %v2328
      %v2364 = vpop.f32.mrf.mxu0
      %v2365 = vadd.f32 %v2310, %v2364
      %v2366 = vpop.f32.mrf.mxu0
      %v2367 = vpop.f32.mrf.mxu0
      %v2368 = vpop.f32.mrf.mxu0
      %2369 = vdwg.mxu0
      %v2370 = vld [vmem:[%s6] sm:$0x1]
      %v2372 = vlaneseq
      %v2373 = vshrl.u32 %v2372, 7
      %v2374 = vsub.s32 0, %v2373
      %v2375 = vrot.slane %v2370, %v2374
      %v2377 = vadd.f32 %v2365, %v2375
      %v2378 = vmax.f32 %v2377, 0.0
      %v2379 = vpack.c.bf16 %v2378, %v2378
      %v2380 = vld [vmem:[%s7] sm:$0xf]
      %v2381 = vld [vmem:[%s7 + $0x4] sm:$0xf]
      %v2382 = vld [vmem:[%s7 + $0x8] sm:$0xf]
      %v2383 = vld [vmem:[%s7 + $0xc] sm:$0xf]
      %v2384 = vld [vmem:[%s8] sm:$0x1]
      %v2386 = vlaneseq
      %v2387 = vshrl.u32 %v2386, 7
      %v2388 = vsub.s32 0, %v2387
      %v2389 = vrot.slane %v2384, %v2388
      %v2395 = vunpack.c.l.b16 %v2380
      %v2396 = vunpack.c.l.b16 %v2381
      %v2397 = vunpack.c.l.b16 %v2382
      %v2398 = vunpack.c.l.b16 %v2383
      %v2399 = vpack.c.b16 %v2396, %v2395
      %v2400 = vpack.c.b16 %v2398, %v2397
      %v2404 = vsel %vm443, %v2379, 0
      %2406 = vmatprep.subr.bf16.mxu0 0
      %2407 = vmatpush1.bf16.msra.mxu0 0
      %2408 = vmatprep.subr.bf16.mxu0 0
      %2409 = vmatpush1.bf16.msra.mxu0 0
      %2410 = vmatprep.subr.bf16.mxu0 0
      %2411 = vmatpush1.bf16.msra.mxu0 0
      %2412 = vmatprep.subr.bf16.mxu0 0
      %2413 = vmatpush1.bf16.msra.mxu0 0
      %2414 = vmatprep.subr.bf16.mxu0 0
      %2415 = vmatpush1.bf16.msra.mxu0 0
      %2416 = vmatprep.subr.bf16.mxu0 0
      %2417 = vmatpush1.bf16.msra.mxu0 0
      %2418 = vmatprep.subr.bf16.mxu0 0
      %2419 = vmatpush1.bf16.msra.mxu0 %v2400
      %2420 = vmatprep.subr.bf16.mxu0 0
      %2421 = vmatpush1.bf16.msra.mxu0 %v2399
      %2422 = vmatprep.subr.bf16.mxu0 0
      %2423 = vmatpush2.bf16.msra.mxu0 0
      %2424 = vmatprep.subr.bf16.mxu0 0
      %2425 = vmatpush2.bf16.msra.mxu0 0
      %2426 = vmatprep.subr.bf16.mxu0 0
      %2427 = vmatpush2.bf16.msra.mxu0 0
      %2428 = vmatprep.subr.bf16.mxu0 0
      %2429 = vmatpush2.bf16.msra.mxu0 0
      %2430 = vmatprep.subr.bf16.mxu0 0
      %2431 = vmatpush2.bf16.msra.mxu0 0
      %2432 = vmatprep.subr.bf16.mxu0 0
      %2433 = vmatpush2.bf16.msra.mxu0 0
      %2434 = vmatprep.subr.bf16.mxu0 0
      %2435 = vmatpush2.bf16.msra.mxu0 0
      %2436 = vmatprep.subr.bf16.mxu0 0
      %2437 = vmatpush2.bf16.msra.mxu0 0
      %2438 = vmatprep.mubr.bf16.mxu0 0
      %2439 = vmatmul.mubr.bf16.gmra.mxu0 %v2404
      %v2440 = vpop.f32.mrf.mxu0
      %v2441 = vadd.f32 %v2389, %v2440
      %v2442 = vpop.f32.mrf.mxu0
      %v2443 = vpop.f32.mrf.mxu0
      %v2444 = vpop.f32.mrf.mxu0
      %2445 = vdwg.mxu0
      %vm2446 = vcmask 523264
      %v2447 = vsel %vm2446, %v2441, 0.0
      %2448 = vadd.xlane.f32.xlu0 %v2447
      %v2449 = vpop.xlane.xlu0 %2448
      %v2450 = vrcp.pop 64.0
      %v2451 = vmul.f32 %v2449, %v2450
      %v2452 = vsub.f32 %v2441, %v2451
      %v2453 = vmul.f32 %v2452, %v2452
      %v2454 = vsel %vm2446, %v2453, 0.0
      %2455 = vadd.xlane.f32.xlu0 %v2454
      %v2456 = vpop.xlane.xlu0 %2455
      %v2457 = vmul.f32 %v2456, %v2450
      %v2458 = vadd.f32 %v2457, 1e-05
      %v2459 = vrsqrt.pop %v2458
      %v2460 = vmul.f32 %v2452, %v2459
      %v2461 = vld [vmem:[%s9] sm:$0x1]
      %v2463 = vlaneseq
      %v2464 = vshrl.u32 %v2463, 7
      %v2465 = vsub.s32 0, %v2464
      %v2466 = vrot.slane %v2461, %v2465
      %v2468 = vmul.f32 %v2460, %v2466
      %v2469 = vld [vmem:[%s10] sm:$0x1]
      %v2471 = vlaneseq
      %v2472 = vshrl.u32 %v2471, 7
      %v2473 = vsub.s32 0, %v2472
      %v2474 = vrot.slane %v2469, %v2473
      %v2476 = vadd.f32 %v2468, %v2474
      %v2477 = vld [vmem:[%s11] sm:$0x1]
      %v2479 = vlaneseq
      %v2480 = vshrl.u32 %v2479, 7
      %v2481 = vsub.s32 0, %v2480
      %v2482 = vrot.slane %v2477, %v2481
      %v2484 = vmul.f32 %v2476, %v2482
      %v2485 = vsel %vm2446, %v2484, 0.0
      %2486 = vadd.xlane.f32.xlu0 %v2485
      %v2487 = vpop.xlane.xlu0 %2486
      %v2488 = vld [vmem:[#allocation5] sm:$0x1]
      %v2490 = vlaneseq
      %v2491 = vshrl.u32 %v2490, 7
      %v2492 = vsub.s32 0, %v2491
      %v2493 = vrot.slane %v2488, %v2492
      %v2495 = vadd.f32 %v2487, %v2493
      %v2496 = vxor.u32 %v2495, 2147483648
      %v2497 = vmul.f32 %v2496, 1.442695
      %v2498 = vpow.pop %v2497
      %v2499 = vadd.f32 %v2498, 1.0
      %v2500 = vrcp.pop %v2499
      %v2501 = vmul.f32 1.0, %v2500
      %vm2502 = vcmask 7168
      %2503 = vst.msk [vmem:[%s437] sm:$0xff] %vm2502, %v2501
      %p2504 = scmp.lt.s32.totalorder %s26, 1
      %s2505 = scalar_select %p2504, %s26, 1
      %s2506 = smul.addr %s2505, 8
      %s2507 = scalar_lea.vmem %s13, %s2506
      // Predicated region
      $region73: #{forward.3} parent=71 // pred_check
        %p2508 = pneg %p322
      $region74: #{forward.3} parent=71 // pred_check_branch
        %2510 = sbr.rel (%p2508) target = $region76
      $region75: #{forward.3} parent=71 // pred_region
        _
      $region76: #{forward.3} parent=71 // pred_fallthru
        _
    $region72: #{forward.3} parent=5 // pred_fallthru
      _
    %p2511 = scmp.le.s32.totalorder 2, %s21
    // Predicated region
    $region77: #{forward.3} parent=5 // pred_check
      %p2512 = pneg %p2511
    $region78: #{forward.3} parent=5 // pred_check_branch
      %2514 = sbr.rel (%p2512) target = $region80
    $region79: #{forward.3} parent=5 // pred_region
      %s2515 = ssub.s32 %s21, 2
      // Predicated region
      $region81: #{forward.3} parent=79 // pred_check
        %p2516 = pneg %p328
      $region82: #{forward.3} parent=79 // pred_check_branch
        %2518 = sbr.rel (%p2516) target = $region84
      $region83: #{forward.3} parent=79 // pred_region
        %p2519 = scmp.lt.s32.totalorder %s27, 1
        %s2520 = scalar_select %p2519, %s27, 1
        %s2521 = smul.addr %s2520, 8
        %s2522 = scalar_lea.vmem %s13, %s2521
      $region84: #{forward.3} parent=79 // pred_fallthru
        _
    $region80: #{forward.3} parent=5 // pred_fallthru
      _
  $region6: #{forward.3} parent=0 // loop_footer
    %s25 = sadd.s32 1, %s21
  $region7: #{forward.3} parent=0 // loop_footer_branch
    %20 = sbr.rel target = $region3
  $region8: #{forward.3} parent=0 // loop_exit
    _

</llo_original>
